<compile_context>
chip_gen: v6e
topology: v6e:2x2x1
jax: 0.10.0
libtpu: 0.0.40
codegen_flags: <defaults>
</compile_context>

<pallas_src>
import functools

import numpy as np
import jax
import jax.numpy as jnp
from jax.experimental import pallas as pl
from jax.experimental.pallas import tpu as pltpu


def _silu_kernel(x):
    # SiLU / swish in f32: exp + reciprocal run on the EUP slot, mul/add on the VPU.
    return x * pl.reciprocal(1.0 + jnp.exp(-x), approx=False)


def _silu_ref(x):
    return x * (1.0 / (1.0 + jnp.exp(-x)))


# --------------------------------- kernel ----------------------------------- #

def _mpblock_kernel(idx_c_ref, idx_n_ref, edge_ref, node_ref, gamma_ref, beta_ref,
                    w1_ref, b1_ref, w2_ref, b2_ref, w3_ref, b3_ref,
                    out_ref, msg_ref, nn_ref, agg_ref, *, eps, num_edges):
    step = pl.program_id(0)
    last = pl.num_programs(0) - 1
    te = msg_ref.shape[0]
    n_nodes = nn_ref.shape[0]

    # --- step 0: LayerNorm into the resident node table, zero the aggregator.
    @pl.when(step == 0)
    def _init():
        x = node_ref[...]                                     # (N, D) f32
        mean = jnp.mean(x, axis=-1, keepdims=True)
        xc = x - mean
        var = jnp.mean(xc * xc, axis=-1, keepdims=True)
        inv = jax.lax.rsqrt(var + eps)
        nn_ref[...] = xc * inv * gamma_ref[...] + beta_ref[...]
        agg_ref[...] = jnp.zeros_like(agg_ref)

    nodes = nn_ref[...]                                       # (N, D) f32, VMEM resident

    # --- one-hot gather of center / neighbor rows (f32 MXU matmul == exact gather).
    idx_c = idx_c_ref[...]                                    # (te, 1) int32
    idx_n = idx_n_ref[...]
    cols = jax.lax.broadcasted_iota(jnp.int32, (te, n_nodes), 1)
    onehot_c = (cols == idx_c).astype(jnp.float32)            # (te, N)
    onehot_n = (cols == idx_n).astype(jnp.float32)
    center = jnp.dot(onehot_c, nodes, preferred_element_type=jnp.float32)
    neighbor = jnp.dot(onehot_n, nodes, preferred_element_type=jnp.float32)

    # --- phi MLP on the edge tile (bf16 MXU operands, f32 accumulation).
    s = edge_ref[...] + center + neighbor
    h = _silu_kernel(s)
    h = jnp.dot(h.astype(jnp.bfloat16), w1_ref[...],
                preferred_element_type=jnp.float32) + b1_ref[...]
    h = _silu_kernel(h)
    t = jnp.dot(h.astype(jnp.bfloat16), w2_ref[...],
                preferred_element_type=jnp.float32) + b2_ref[...]

    # Mask rows past num_edges (ragged last tile reads undefined VMEM data).
    eid = step * te + jax.lax.broadcasted_iota(jnp.int32, (te, 1), 0)
    msg = jnp.where(eid < num_edges, neighbor * t, 0.0)
    msg_ref[...] = msg.astype(msg_ref.dtype)

    # --- scatter-add (index_add_) folded into an MXU matmul: agg += onehot_c^T @ msg.
    agg_ref[...] += jax.lax.dot_general(
        onehot_c, msg, dimension_numbers=(((0,), (0,)), ((), ())),
        preferred_element_type=jnp.float32)

    # --- last step: theta update on the resident node table.
    @pl.when(step == last)
    def _finalize():
        h3 = _silu_kernel(nodes + agg_ref[...])
        out_ref[...] = (jnp.dot(h3.astype(jnp.bfloat16), w3_ref[...],
                                preferred_element_type=jnp.float32)
                        + b3_ref[...]).astype(out_ref.dtype)


# -------------------------------- wrapper ------------------------------------ #

def _edge_tile(num_edges, embed_dim, budget_bytes=4 << 20, max_tile=1024):
    # Bytes per edge row across the double-buffered streams: edge_emb in,
    # msg out, two int32 index columns.
    per_row = 4 * 2 * (2 * embed_dim + 2)
    te = min(budget_bytes // per_row, max_tile, num_edges)
    if te < num_edges:
        te = max(8, (te // 8) * 8)        # partial tiles need sublane-aligned rows
    return int(te)


def _vmem_bytes(n_nodes, num_edges, embed_dim, hidden_dim, te):
    f32 = 4
    stream = 2 * te * (2 * embed_dim + 2) * f32            # edge in + msg out + idx, x2 buffers
    resident = 2 * 2 * n_nodes * embed_dim * f32           # node table in + out block, x2 buffers
    weights = 2 * 2 * (embed_dim * hidden_dim + hidden_dim * embed_dim
                       + embed_dim * embed_dim)            # bf16 weights, x2 buffers
    weights += 2 * f32 * (hidden_dim + 5 * embed_dim)      # biases + gamma/beta
    scratch = 2 * n_nodes * embed_dim * f32                # node_norm + aggregator scratch
    return stream + resident + weights + scratch


@functools.partial(jax.jit, static_argnames=("eps",))
def mpblock_forward(node_emb, edge_emb, edge_index, w1, b1, w2, b2, w3, b3,
                    gamma, beta, *, eps):
    n_nodes, embed_dim = node_emb.shape
    num_edges = edge_emb.shape[0]
    hidden_dim = w1.shape[1]

    idx_c = edge_index[0, :].astype(jnp.int32).reshape(num_edges, 1)
    idx_n = edge_index[1, :].astype(jnp.int32).reshape(num_edges, 1)
    # bf16 MXU operands (per perf review); masters stay f32, accumulation is f32.
    w1_b, w2_b, w3_b = (w.astype(jnp.bfloat16) for w in (w1, w2, w3))

    te = _edge_tile(num_edges, embed_dim)
    grid = (pl.cdiv(num_edges, te),)

    vmem_limit = int(min(100 << 20, max(
        32 << 20, 2 * _vmem_bytes(n_nodes, num_edges, embed_dim, hidden_dim, te))))

    flops = (4 * num_edges * n_nodes * embed_dim            # gather matmuls
             + 4 * num_edges * embed_dim * hidden_dim       # phi matmuls
             + 2 * num_edges * n_nodes * embed_dim          # scatter matmul
             + 2 * n_nodes * embed_dim * embed_dim)         # theta matmul
    transcendentals = num_edges * (embed_dim + hidden_dim) + n_nodes * embed_dim
    bytes_accessed = 4 * (2 * n_nodes * embed_dim + 2 * num_edges * embed_dim
                          + 2 * num_edges + embed_dim * hidden_dim
                          + hidden_dim * embed_dim + embed_dim * embed_dim)

    edge_block = lambda i: (i, 0)
    const_block = lambda i: (0, 0)

    out, msg = pl.pallas_call(
        functools.partial(_mpblock_kernel, eps=eps, num_edges=num_edges),
        out_shape=(jax.ShapeDtypeStruct((n_nodes, embed_dim), node_emb.dtype),
                   jax.ShapeDtypeStruct((num_edges, embed_dim), edge_emb.dtype)),
        grid_spec=pltpu.PrefetchScalarGridSpec(
            num_scalar_prefetch=0,
            grid=grid,
            in_specs=[
                pl.BlockSpec((te, 1), edge_block),                    # center indices
                pl.BlockSpec((te, 1), edge_block),                    # neighbor indices
                pl.BlockSpec((te, embed_dim), edge_block),            # edge embeddings
                pl.BlockSpec((n_nodes, embed_dim), const_block),      # node embeddings (resident)
                pl.BlockSpec((1, embed_dim), const_block),            # LN gamma
                pl.BlockSpec((1, embed_dim), const_block),            # LN beta
                pl.BlockSpec((embed_dim, hidden_dim), const_block),   # W1 (bf16, resident)
                pl.BlockSpec((1, hidden_dim), const_block),           # b1
                pl.BlockSpec((hidden_dim, embed_dim), const_block),   # W2 (bf16, resident)
                pl.BlockSpec((1, embed_dim), const_block),            # b2
                pl.BlockSpec((embed_dim, embed_dim), const_block),    # W3 (bf16, resident)
                pl.BlockSpec((1, embed_dim), const_block),            # b3
            ],
            out_specs=[
                pl.BlockSpec((n_nodes, embed_dim), const_block),      # theta output (last step)
                pl.BlockSpec((te, embed_dim), edge_block),            # per-edge messages
            ],
            scratch_shapes=[
                pltpu.VMEM((n_nodes, embed_dim), jnp.float32),        # LayerNorm-ed node table
                pltpu.VMEM((n_nodes, embed_dim), jnp.float32),        # message aggregator
            ],
        ),
        compiler_params=pltpu.CompilerParams(
            # The single grid axis carries the scatter accumulation -> serial.
            dimension_semantics=("arbitrary",),
            vmem_limit_bytes=vmem_limit,
        ),
        cost_estimate=pl.CostEstimate(flops=int(flops),
                                      transcendentals=int(transcendentals),
                                      bytes_accessed=int(bytes_accessed)),
    )(idx_c, idx_n, edge_emb, node_emb, gamma, beta, w1_b, b1, w2_b, b2, w3_b, b3)
    return out, msg


class MPBlock:
    """JAX/Pallas port of the PyTorch MPBlock forward pass."""

    def __init__(self, embed_dim, hidden_dim, key):
        self.embed_dim = embed_dim
        self.hidden_dim = hidden_dim
        k1, k2, k3 = jax.random.split(key, 3)

        # Deterministic Xavier-uniform init (matches initialize_weights();
        # torch's seeded default Linear init is not reproducible from JAX).
        def xavier(k, fan_in, fan_out):
            limit = float(np.sqrt(6.0 / (fan_in + fan_out)))
            return jax.random.uniform(k, (fan_in, fan_out), jnp.float32, -limit, limit)

        # phi: SiLU -> Linear(D, H) -> SiLU -> Linear(H, D); weights stored (in, out).
        self.w1 = xavier(k1, embed_dim, hidden_dim)
        self.b1 = jnp.zeros((1, hidden_dim), jnp.float32)
        self.w2 = xavier(k2, hidden_dim, embed_dim)
        self.b2 = jnp.zeros((1, embed_dim), jnp.float32)
        # theta: SiLU -> Linear(D, D)
        self.w3 = xavier(k3, embed_dim, embed_dim)
        self.b3 = jnp.zeros((1, embed_dim), jnp.float32)
        # LayerNorm(embed_dim), PyTorch defaults: weight=1, bias=0, eps=1e-5.
        self.ln_gamma = jnp.ones((1, embed_dim), jnp.float32)
        self.ln_beta = jnp.zeros((1, embed_dim), jnp.float32)
        self.ln_eps = 1e-5
        self.edge_message_neigh_center = None

    def __call__(self, node_embeddings, edge_embeddings, edge_index_list):
        out, msg = mpblock_forward(
            node_embeddings, edge_embeddings, edge_index_list,
            self.w1, self.b1, self.w2, self.b2, self.w3, self.b3,
            self.ln_gamma, self.ln_beta, eps=self.ln_eps)
        self.edge_message_neigh_center = msg
        return out


# ------------------------------- reference ----------------------------------- #

def _reference(node_emb, edge_emb, edge_idx, m, *, bf16_matmul):
    def mm(a, w):
        if bf16_matmul:
            return jnp.dot(a.astype(jnp.bfloat16), w.astype(jnp.bfloat16),
                           preferred_element_type=jnp.float32)
        return jnp.dot(a, w, preferred_element_type=jnp.float32)

    x = node_emb
    mean = jnp.mean(x, axis=-1, keepdims=True)
    var = jnp.mean((x - mean) ** 2, axis=-1, keepdims=True)
    nrm = (x - mean) * jax.lax.rsqrt(var + m.ln_eps) * m.ln_gamma + m.ln_beta
    c = nrm[edge_idx[0]]
    n = nrm[edge_idx[1]]
    s = edge_emb + c + n
    h = _silu_ref(s)
    h = _silu_ref(mm(h, m.w1) + m.b1)
    t = mm(h, m.w2) + m.b2
    msg = n * t
    agg = jnp.zeros_like(nrm).at[edge_idx[0]].add(msg)
    out = mm(_silu_ref(nrm + agg), m.w3) + m.b3
    return out, msg


if __name__ == "__main__":
    key = jax.random.PRNGKey(0)
    k_nodes, k_edges, k_idx, k_params = jax.random.split(key, 4)

    N, E, D, H = 64, 256, 32, 64  # nodes, edges, embed_dim, hidden_dim
    node_emb = jax.random.normal(k_nodes, (N, D), dtype=jnp.float32)
    edge_emb = jax.random.normal(k_edges, (E, D), dtype=jnp.float32)
    edge_index = jax.random.randint(k_idx, (2, E), 0, N, dtype=jnp.int32)

    block = MPBlock(embed_dim=D, hidden_dim=H, key=k_params)
    out = jax.block_until_ready(block(node_emb, edge_emb, edge_index))
    msg = block.edge_message_neigh_center

    assert out.shape == (N, D) and out.dtype == jnp.float32, (out.shape, out.dtype)
    assert msg.shape == (E, D), msg.shape

    # Tier 1: tight structural check against a reference that mirrors the
    # kernel's bf16-operand matmuls -- validates the fused LayerNorm / gather /
    # phi / scatter-add / theta pipeline.
    ref_out, ref_msg = _reference(node_emb, edge_emb, edge_index, block, bf16_matmul=True)
    np.testing.assert_allclose(np.asarray(out), np.asarray(ref_out), rtol=2e-3, atol=2e-3)
    np.testing.assert_allclose(np.asarray(msg), np.asarray(ref_msg), rtol=2e-3, atol=2e-3)

    # Tier 2: envelope against the pure-f32 reference; the (small) gap is the
    # deliberate bf16-MXU-operand rounding requested by the perf review.
    f32_out, _ = _reference(node_emb, edge_emb, edge_index, block, bf16_matmul=False)
    rel_err = (np.linalg.norm(np.asarray(out) - np.asarray(f32_out))
               / np.linalg.norm(np.asarray(f32_out)))
    assert rel_err < 5e-2, f"bf16-vs-f32 relative error too large: {rel_err}"

    print("KERNEL_OK")
</pallas_src>

<mosaic_0001>
module attributes {stable_mosaic.version = 11 : i64} {
  func.func @_mpblock_kernel(%arg0: i32, %arg1: memref<256x1xi32, #tpu.memory_space<vmem>>, %arg2: memref<256x1xi32, #tpu.memory_space<vmem>>, %arg3: memref<256x32xf32, #tpu.memory_space<vmem>>, %arg4: memref<64x32xf32, #tpu.memory_space<vmem>>, %arg5: memref<1x32xf32, #tpu.memory_space<vmem>>, %arg6: memref<1x32xf32, #tpu.memory_space<vmem>>, %arg7: memref<32x64xbf16, #tpu.memory_space<vmem>>, %arg8: memref<1x64xf32, #tpu.memory_space<vmem>>, %arg9: memref<64x32xbf16, #tpu.memory_space<vmem>>, %arg10: memref<1x32xf32, #tpu.memory_space<vmem>>, %arg11: memref<32x32xbf16, #tpu.memory_space<vmem>>, %arg12: memref<1x32xf32, #tpu.memory_space<vmem>>, %arg13: memref<64x32xf32, #tpu.memory_space<vmem>>, %arg14: memref<256x32xf32, #tpu.memory_space<vmem>>, %arg15: memref<64x32xf32, #tpu.memory_space<vmem>>, %arg16: memref<64x32xf32, #tpu.memory_space<vmem>>) attributes {dimension_semantics = [#tpu.dimension_semantics<arbitrary>], iteration_bounds = array<i64: 1>, scalar_prefetch = 0 : i64, scratch_operands = 2 : i64, tpu.core_type = #tpu.core_type<tc>, window_params = [{transform_indices = @transform_0, window_bounds = array<i64: 256, 1>}, {transform_indices = @transform_1, window_bounds = array<i64: 256, 1>}, {transform_indices = @transform_2, window_bounds = array<i64: 256, 32>}, {pipeline_mode = #tpu.pipeline_mode<synchronous>, transform_indices = @transform_3, window_bounds = array<i64: 64, 32>}, {pipeline_mode = #tpu.pipeline_mode<synchronous>, transform_indices = @transform_4, window_bounds = array<i64: 1, 32>}, {pipeline_mode = #tpu.pipeline_mode<synchronous>, transform_indices = @transform_5, window_bounds = array<i64: 1, 32>}, {pipeline_mode = #tpu.pipeline_mode<synchronous>, transform_indices = @transform_6, window_bounds = array<i64: 32, 64>}, {pipeline_mode = #tpu.pipeline_mode<synchronous>, transform_indices = @transform_7, window_bounds = array<i64: 1, 64>}, {pipeline_mode = #tpu.pipeline_mode<synchronous>, transform_indices = @transform_8, window_bounds = array<i64: 64, 32>}, {pipeline_mode = #tpu.pipeline_mode<synchronous>, transform_indices = @transform_9, window_bounds = array<i64: 1, 32>}, {pipeline_mode = #tpu.pipeline_mode<synchronous>, transform_indices = @transform_10, window_bounds = array<i64: 32, 32>}, {pipeline_mode = #tpu.pipeline_mode<synchronous>, transform_indices = @transform_11, window_bounds = array<i64: 1, 32>}, {pipeline_mode = #tpu.pipeline_mode<synchronous>, transform_indices = @transform_12, window_bounds = array<i64: 64, 32>}, {transform_indices = @transform_13, window_bounds = array<i64: 256, 32>}]} {
    %c0_i32 = arith.constant 0 : i32
    %0 = arith.cmpi eq, %arg0, %c0_i32 : i32
    %1 = arith.extui %0 : i1 to i32
    %c0_i32_0 = arith.constant 0 : i32
    %2 = arith.cmpi ne, %1, %c0_i32_0 : i32
    scf.if %2 {
      %c0_34 = arith.constant 0 : index
      %c0_35 = arith.constant 0 : index
      %65 = vector.load %arg4[%c0_34, %c0_35] : memref<64x32xf32, #tpu.memory_space<vmem>>, vector<64x32xf32>
      %cst_36 = arith.constant dense<0.000000e+00> : vector<64xf32>
      %66 = vector.multi_reduction <add>, %65, %cst_36 [1] : vector<64x32xf32> to vector<64xf32>
      %67 = vector.shape_cast %66 : vector<64xf32> to vector<64x1xf32>
      %cst_37 = arith.constant 3.200000e+01 : f32
      %68 = vector.broadcast %cst_37 : f32 to vector<64x1xf32>
      %69 = arith.divf %67, %68 : vector<64x1xf32>
      %70 = vector.broadcast %69 : vector<64x1xf32> to vector<64x32xf32>
      %71 = arith.subf %65, %70 : vector<64x32xf32>
      %72 = arith.mulf %71, %71 : vector<64x32xf32>
      %cst_38 = arith.constant dense<0.000000e+00> : vector<64xf32>
      %73 = vector.multi_reduction <add>, %72, %cst_38 [1] : vector<64x32xf32> to vector<64xf32>
      %74 = vector.shape_cast %73 : vector<64xf32> to vector<64x1xf32>
      %cst_39 = arith.constant 3.200000e+01 : f32
      %75 = vector.broadcast %cst_39 : f32 to vector<64x1xf32>
      %76 = arith.divf %74, %75 : vector<64x1xf32>
      %cst_40 = arith.constant 9.99999974E-6 : f32
      %77 = vector.broadcast %cst_40 : f32 to vector<64x1xf32>
      %78 = arith.addf %76, %77 : vector<64x1xf32>
      %79 = math.rsqrt %78 : vector<64x1xf32>
      %80 = vector.broadcast %79 : vector<64x1xf32> to vector<64x32xf32>
      %81 = arith.mulf %71, %80 : vector<64x32xf32>
      %c0_41 = arith.constant 0 : index
      %c0_42 = arith.constant 0 : index
      %82 = vector.load %arg5[%c0_41, %c0_42] : memref<1x32xf32, #tpu.memory_space<vmem>>, vector<1x32xf32>
      %83 = vector.broadcast %82 : vector<1x32xf32> to vector<64x32xf32>
      %84 = arith.mulf %81, %83 : vector<64x32xf32>
      %c0_43 = arith.constant 0 : index
      %c0_44 = arith.constant 0 : index
      %85 = vector.load %arg6[%c0_43, %c0_44] : memref<1x32xf32, #tpu.memory_space<vmem>>, vector<1x32xf32>
      %86 = vector.broadcast %85 : vector<1x32xf32> to vector<64x32xf32>
      %87 = arith.addf %84, %86 : vector<64x32xf32>
      %c0_45 = arith.constant 0 : index
      %c0_46 = arith.constant 0 : index
      %88 = vector.load %arg15[%c0_45, %c0_46] : memref<64x32xf32, #tpu.memory_space<vmem>>, vector<64x32xf32>
      tpu.vector_store %arg15[%c0_45, %c0_46], %87 {strides = array<i32>} : memref<64x32xf32, #tpu.memory_space<vmem>>, vector<64x32xf32>,
      %cst_47 = arith.constant 0.000000e+00 : f32
      %89 = vector.broadcast %cst_47 : f32 to vector<64x32xf32>
      %c0_48 = arith.constant 0 : index
      %c0_49 = arith.constant 0 : index
      %90 = vector.load %arg16[%c0_48, %c0_49] : memref<64x32xf32, #tpu.memory_space<vmem>>, vector<64x32xf32>
      tpu.vector_store %arg16[%c0_48, %c0_49], %89 {strides = array<i32>} : memref<64x32xf32, #tpu.memory_space<vmem>>, vector<64x32xf32>,
    } else {
    }
    %c0 = arith.constant 0 : index
    %c0_1 = arith.constant 0 : index
    %3 = vector.load %arg15[%c0, %c0_1] : memref<64x32xf32, #tpu.memory_space<vmem>>, vector<64x32xf32>
    %c0_2 = arith.constant 0 : index
    %c0_3 = arith.constant 0 : index
    %4 = vector.load %arg1[%c0_2, %c0_3] : memref<256x1xi32, #tpu.memory_space<vmem>>, vector<256x1xi32>
    %c0_4 = arith.constant 0 : index
    %c0_5 = arith.constant 0 : index
    %5 = vector.load %arg2[%c0_4, %c0_5] : memref<256x1xi32, #tpu.memory_space<vmem>>, vector<256x1xi32>
    %6 = tpu.iota {dimensions = array<i32: 1>} : vector<256x64xi32>
    %7 = vector.broadcast %4 : vector<256x1xi32> to vector<256x64xi32>
    %8 = arith.cmpi eq, %6, %7 : vector<256x64xi32>
    %9 = arith.extui %8 : vector<256x64xi1> to vector<256x64xi32>
    %10 = arith.sitofp %9 : vector<256x64xi32> to vector<256x64xf32>
    %11 = vector.broadcast %5 : vector<256x1xi32> to vector<256x64xi32>
    %12 = arith.cmpi eq, %6, %11 : vector<256x64xi32>
    %13 = arith.extui %12 : vector<256x64xi1> to vector<256x64xi32>
    %14 = arith.sitofp %13 : vector<256x64xi32> to vector<256x64xf32>
    %cst = arith.constant dense<0.000000e+00> : vector<256x32xf32>
    %15 = tpu.matmul %10, %3, %cst {dimension_numbers = #tpu.dot_dimension_numbers<[1], [0], [0], [1], [0, 0, 1, 1], [], []>} : vector<256x64xf32>, vector<64x32xf32>, vector<256x32xf32> -> vector<256x32xf32>
    %cst_6 = arith.constant dense<0.000000e+00> : vector<256x32xf32>
    %16 = tpu.matmul %14, %3, %cst_6 {dimension_numbers = #tpu.dot_dimension_numbers<[1], [0], [0], [1], [0, 0, 1, 1], [], []>} : vector<256x64xf32>, vector<64x32xf32>, vector<256x32xf32> -> vector<256x32xf32>
    %c0_7 = arith.constant 0 : index
    %c0_8 = arith.constant 0 : index
    %17 = vector.load %arg3[%c0_7, %c0_8] : memref<256x32xf32, #tpu.memory_space<vmem>>, vector<256x32xf32>
    %18 = arith.addf %17, %15 : vector<256x32xf32>
    %19 = arith.addf %18, %16 : vector<256x32xf32>
    %cst_9 = arith.constant 0.000000e+00 : f32
    %20 = vector.broadcast %cst_9 : f32 to vector<256x32xf32>
    %21 = arith.subf %20, %19 : vector<256x32xf32>
    %22 = math.exp %21 : vector<256x32xf32>
    %cst_10 = arith.constant 1.000000e+00 : f32
    %23 = vector.broadcast %cst_10 : f32 to vector<256x32xf32>
    %24 = arith.addf %23, %22 : vector<256x32xf32>
    %25 = tpu.reciprocal %24 : vector<256x32xf32> -> vector<256x32xf32>
    %26 = arith.mulf %19, %25 : vector<256x32xf32>
    %27 = arith.truncf %26 : vector<256x32xf32> to vector<256x32xbf16>
    %c0_11 = arith.constant 0 : index
    %c0_12 = arith.constant 0 : index
    %28 = vector.load %arg7[%c0_11, %c0_12] : memref<32x64xbf16, #tpu.memory_space<vmem>>, vector<32x64xbf16>
    %cst_13 = arith.constant dense<0.000000e+00> : vector<256x64xf32>
    %29 = tpu.matmul %27, %28, %cst_13 {dimension_numbers = #tpu.dot_dimension_numbers<[1], [0], [0], [1], [0, 0, 1, 1], [], []>} : vector<256x32xbf16>, vector<32x64xbf16>, vector<256x64xf32> -> vector<256x64xf32>
    %c0_14 = arith.constant 0 : index
    %c0_15 = arith.constant 0 : index
    %30 = vector.load %arg8[%c0_14, %c0_15] : memref<1x64xf32, #tpu.memory_space<vmem>>, vector<1x64xf32>
    %31 = vector.broadcast %30 : vector<1x64xf32> to vector<256x64xf32>
    %32 = arith.addf %29, %31 : vector<256x64xf32>
    %cst_16 = arith.constant 0.000000e+00 : f32
    %33 = vector.broadcast %cst_16 : f32 to vector<256x64xf32>
    %34 = arith.subf %33, %32 : vector<256x64xf32>
    %35 = math.exp %34 : vector<256x64xf32>
    %cst_17 = arith.constant 1.000000e+00 : f32
    %36 = vector.broadcast %cst_17 : f32 to vector<256x64xf32>
    %37 = arith.addf %36, %35 : vector<256x64xf32>
    %38 = tpu.reciprocal %37 : vector<256x64xf32> -> vector<256x64xf32>
    %39 = arith.mulf %32, %38 : vector<256x64xf32>
    %40 = arith.truncf %39 : vector<256x64xf32> to vector<256x64xbf16>
    %c0_18 = arith.constant 0 : index
    %c0_19 = arith.constant 0 : index
    %41 = vector.load %arg9[%c0_18, %c0_19] : memref<64x32xbf16, #tpu.memory_space<vmem>>, vector<64x32xbf16>
    %cst_20 = arith.constant dense<0.000000e+00> : vector<256x32xf32>
    %42 = tpu.matmul %40, %41, %cst_20 {dimension_numbers = #tpu.dot_dimension_numbers<[1], [0], [0], [1], [0, 0, 1, 1], [], []>} : vector<256x64xbf16>, vector<64x32xbf16>, vector<256x32xf32> -> vector<256x32xf32>
    %c0_21 = arith.constant 0 : index
    %c0_22 = arith.constant 0 : index
    %43 = vector.load %arg10[%c0_21, %c0_22] : memref<1x32xf32, #tpu.memory_space<vmem>>, vector<1x32xf32>
    %44 = vector.broadcast %43 : vector<1x32xf32> to vector<256x32xf32>
    %45 = arith.addf %42, %44 : vector<256x32xf32>
    %c256_i32 = arith.constant 256 : i32
    %46 = arith.muli %arg0, %c256_i32 : i32
    %47 = tpu.iota {dimensions = array<i32: 0>} : vector<256x1xi32>
    %48 = vector.broadcast %46 : i32 to vector<256x1xi32>
    %49 = arith.addi %48, %47 : vector<256x1xi32>
    %c256_i32_23 = arith.constant 256 : i32
    %50 = vector.broadcast %c256_i32_23 : i32 to vector<256x1xi32>
    %51 = arith.cmpi slt, %49, %50 : vector<256x1xi32>
    %52 = arith.mulf %16, %45 : vector<256x32xf32>
    %cst_24 = arith.constant 0.000000e+00 : f32
    %53 = vector.shape_cast %51 : vector<256x1xi1> to vector<256x1xi1>
    %54 = vector.broadcast %53 : vector<256x1xi1> to vector<256x32xi1>
    %55 = vector.broadcast %cst_24 : f32 to vector<256x32xf32>
    %56 = arith.select %54, %52, %55 : vector<256x32xi1>, vector<256x32xf32>
    %c0_25 = arith.constant 0 : index
    %c0_26 = arith.constant 0 : index
    %57 = vector.load %arg14[%c0_25, %c0_26] : memref<256x32xf32, #tpu.memory_space<vmem>>, vector<256x32xf32>
    tpu.vector_store %arg14[%c0_25, %c0_26], %56 {strides = array<i32>} : memref<256x32xf32, #tpu.memory_space<vmem>>, vector<256x32xf32>,
    %c0_27 = arith.constant 0 : index
    %c0_28 = arith.constant 0 : index
    %58 = vector.load %arg16[%c0_27, %c0_28] : memref<64x32xf32, #tpu.memory_space<vmem>>, vector<64x32xf32>
    %cst_29 = arith.constant dense<0.000000e+00> : vector<64x32xf32>
    %59 = tpu.matmul %10, %56, %cst_29 {dimension_numbers = #tpu.dot_dimension_numbers<[0], [0], [1], [1], [0, 1, 1, 1], [], []>} : vector<256x64xf32>, vector<256x32xf32>, vector<64x32xf32> -> vector<64x32xf32>
    %60 = arith.addf %58, %59 : vector<64x32xf32>
    %c0_30 = arith.constant 0 : index
    %c0_31 = arith.constant 0 : index
    %61 = vector.load %arg16[%c0_30, %c0_31] : memref<64x32xf32, #tpu.memory_space<vmem>>, vector<64x32xf32>
    tpu.vector_store %arg16[%c0_30, %c0_31], %60 {strides = array<i32>} : memref<64x32xf32, #tpu.memory_space<vmem>>, vector<64x32xf32>,
    %c0_i32_32 = arith.constant 0 : i32
    %62 = arith.cmpi eq, %arg0, %c0_i32_32 : i32
    %63 = arith.extui %62 : i1 to i32
    %c0_i32_33 = arith.constant 0 : i32
    %64 = arith.cmpi ne, %63, %c0_i32_33 : i32
    scf.if %64 {
      %c0_34 = arith.constant 0 : index
      %c0_35 = arith.constant 0 : index
      %65 = vector.load %arg16[%c0_34, %c0_35] : memref<64x32xf32, #tpu.memory_space<vmem>>, vector<64x32xf32>
      %66 = arith.addf %3, %65 : vector<64x32xf32>
      %cst_36 = arith.constant 0.000000e+00 : f32
      %67 = vector.broadcast %cst_36 : f32 to vector<64x32xf32>
      %68 = arith.subf %67, %66 : vector<64x32xf32>
      %69 = math.exp %68 : vector<64x32xf32>
      %cst_37 = arith.constant 1.000000e+00 : f32
      %70 = vector.broadcast %cst_37 : f32 to vector<64x32xf32>
      %71 = arith.addf %70, %69 : vector<64x32xf32>
      %72 = tpu.reciprocal %71 : vector<64x32xf32> -> vector<64x32xf32>
      %73 = arith.mulf %66, %72 : vector<64x32xf32>
      %74 = arith.truncf %73 : vector<64x32xf32> to vector<64x32xbf16>
      %c0_38 = arith.constant 0 : index
      %c0_39 = arith.constant 0 : index
      %75 = vector.load %arg11[%c0_38, %c0_39] : memref<32x32xbf16, #tpu.memory_space<vmem>>, vector<32x32xbf16>
      %cst_40 = arith.constant dense<0.000000e+00> : vector<64x32xf32>
      %76 = tpu.matmul %74, %75, %cst_40 {dimension_numbers = #tpu.dot_dimension_numbers<[1], [0], [0], [1], [0, 0, 1, 1], [], []>} : vector<64x32xbf16>, vector<32x32xbf16>, vector<64x32xf32> -> vector<64x32xf32>
      %c0_41 = arith.constant 0 : index
      %c0_42 = arith.constant 0 : index
      %77 = vector.load %arg12[%c0_41, %c0_42] : memref<1x32xf32, #tpu.memory_space<vmem>>, vector<1x32xf32>
      %78 = vector.broadcast %77 : vector<1x32xf32> to vector<64x32xf32>
      %79 = arith.addf %76, %78 : vector<64x32xf32>
      %c0_43 = arith.constant 0 : index
      %c0_44 = arith.constant 0 : index
      %80 = vector.load %arg13[%c0_43, %c0_44] : memref<64x32xf32, #tpu.memory_space<vmem>>, vector<64x32xf32>
      tpu.vector_store %arg13[%c0_43, %c0_44], %79 {strides = array<i32>} : memref<64x32xf32, #tpu.memory_space<vmem>>, vector<64x32xf32>,
    } else {
    }
    return
  }
  func.func @transform_0(%arg0: i32) -> (i32, i32) {
    %c0_i32 = arith.constant 0 : i32
    %c0_i32_0 = arith.constant 0 : i32
    return %arg0, %c0_i32 : i32, i32
  }
  func.func @transform_1(%arg0: i32) -> (i32, i32) {
    %c0_i32 = arith.constant 0 : i32
    %c0_i32_0 = arith.constant 0 : i32
    return %arg0, %c0_i32 : i32, i32
  }
  func.func @transform_2(%arg0: i32) -> (i32, i32) {
    %c0_i32 = arith.constant 0 : i32
    %c0_i32_0 = arith.constant 0 : i32
    return %arg0, %c0_i32 : i32, i32
  }
  func.func @transform_3(%arg0: i32) -> (i32, i32) {
    %c0_i32 = arith.constant 0 : i32
    %c0_i32_0 = arith.constant 0 : i32
    %c0_i32_1 = arith.constant 0 : i32
    return %c0_i32, %c0_i32_0 : i32, i32
  }
  func.func @transform_4(%arg0: i32) -> (i32, i32) {
    %c0_i32 = arith.constant 0 : i32
    %c0_i32_0 = arith.constant 0 : i32
    %c0_i32_1 = arith.constant 0 : i32
    return %c0_i32, %c0_i32_0 : i32, i32
  }
  func.func @transform_5(%arg0: i32) -> (i32, i32) {
    %c0_i32 = arith.constant 0 : i32
    %c0_i32_0 = arith.constant 0 : i32
    %c0_i32_1 = arith.constant 0 : i32
    return %c0_i32, %c0_i32_0 : i32, i32
  }
  func.func @transform_6(%arg0: i32) -> (i32, i32) {
    %c0_i32 = arith.constant 0 : i32
    %c0_i32_0 = arith.constant 0 : i32
    %c0_i32_1 = arith.constant 0 : i32
    return %c0_i32, %c0_i32_0 : i32, i32
  }
  func.func @transform_7(%arg0: i32) -> (i32, i32) {
    %c0_i32 = arith.constant 0 : i32
    %c0_i32_0 = arith.constant 0 : i32
    %c0_i32_1 = arith.constant 0 : i32
    return %c0_i32, %c0_i32_0 : i32, i32
  }
  func.func @transform_8(%arg0: i32) -> (i32, i32) {
    %c0_i32 = arith.constant 0 : i32
    %c0_i32_0 = arith.constant 0 : i32
    %c0_i32_1 = arith.constant 0 : i32
    return %c0_i32, %c0_i32_0 : i32, i32
  }
  func.func @transform_9(%arg0: i32) -> (i32, i32) {
    %c0_i32 = arith.constant 0 : i32
    %c0_i32_0 = arith.constant 0 : i32
    %c0_i32_1 = arith.constant 0 : i32
    return %c0_i32, %c0_i32_0 : i32, i32
  }
  func.func @transform_10(%arg0: i32) -> (i32, i32) {
    %c0_i32 = arith.constant 0 : i32
    %c0_i32_0 = arith.constant 0 : i32
    %c0_i32_1 = arith.constant 0 : i32
    return %c0_i32, %c0_i32_0 : i32, i32
  }
  func.func @transform_11(%arg0: i32) -> (i32, i32) {
    %c0_i32 = arith.constant 0 : i32
    %c0_i32_0 = arith.constant 0 : i32
    %c0_i32_1 = arith.constant 0 : i32
    return %c0_i32, %c0_i32_0 : i32, i32
  }
  func.func @transform_12(%arg0: i32) -> (i32, i32) {
    %c0_i32 = arith.constant 0 : i32
    %c0_i32_0 = arith.constant 0 : i32
    %c0_i32_1 = arith.constant 0 : i32
    return %c0_i32, %c0_i32_0 : i32, i32
  }
  func.func @transform_13(%arg0: i32) -> (i32, i32) {
    %c0_i32 = arith.constant 0 : i32
    %c0_i32_0 = arith.constant 0 : i32
    return %arg0, %c0_i32 : i32, i32
  }
}

</mosaic_0001>

<llo_original>
// kernel: mpblock_forward.1
$region0: #{mpblock_forward.1}
  #allocation0 [shape = 'u32[]', space=smem, size = 0x4, offset = 0x4, fixed_abs, tag = 'smem constant byte address 0x4 - core index']
  #allocation1 [shape = 'u32[144,128]{1,0:T(1,128)}', space=vmem, size = 0x12000, scoped, tag = 'internal scratch']
  #allocation2 [shape = 'f32[64,32]{1,0:T(8,128)}', space=vmem, size = 0x8000, scoped, tag = 'scratch operand']
  #allocation3 [shape = 'f32[64,32]{1,0:T(8,128)}', space=vmem, size = 0x8000, scoped, tag = 'scratch operand']
  %s0 = inlined_call_operand.vmem [shape: s32[256,1], index: 0, kind: input, shape index: {}]
  %s1 = inlined_call_operand.vmem [shape: s32[256,1], index: 1, kind: input, shape index: {}]
  %s2 = inlined_call_operand.vmem [shape: f32[256,32], index: 2, kind: input, shape index: {}]
  %s3 = inlined_call_operand.vmem [shape: f32[64,32], index: 3, kind: input, shape index: {}]
  %s4 = inlined_call_operand.vmem [shape: f32[1,32], index: 4, kind: input, shape index: {}]
  %s5 = inlined_call_operand.vmem [shape: f32[1,32], index: 5, kind: input, shape index: {}]
  %s6 = inlined_call_operand.vmem [shape: bf16[32,64], index: 6, kind: input, shape index: {}]
  %s7 = inlined_call_operand.vmem [shape: f32[1,64], index: 7, kind: input, shape index: {}]
  %s8 = inlined_call_operand.vmem [shape: bf16[64,32], index: 8, kind: input, shape index: {}]
  %s9 = inlined_call_operand.vmem [shape: f32[1,32], index: 9, kind: input, shape index: {}]
  %s10 = inlined_call_operand.vmem [shape: bf16[32,32], index: 10, kind: input, shape index: {}]
  %s11 = inlined_call_operand.vmem [shape: f32[1,32], index: 11, kind: input, shape index: {}]
  %s12 = inlined_call_operand.vmem [shape: f32[64,32], index: 12, kind: output, shape index: {0}]
  %s13 = inlined_call_operand.vmem [shape: f32[256,32], index: 13, kind: output, shape index: {1}]
  %14 = xla_tuple %s12, %s13
  %s15 = sld [smem:[#allocation0]]
  $region74: #{mpblock_forward.1} parent=0
    _
  %s17 = ssub.s32 1, %s15
  %s18 = scalar_select 0, %s17, %s15
  // Predicated region
  $region2: #{mpblock_forward.1} parent=0 // pred_check
    _
  $region3: #{mpblock_forward.1} parent=0 // pred_check_branch
    %20 = sbr.rel (0) target = $region5
  $region4: #{mpblock_forward.1} parent=0 // pred_region
    _
  $region5: #{mpblock_forward.1} parent=0 // pred_fallthru
    _
  // Predicated region
  $region6: #{mpblock_forward.1} parent=0 // pred_check
    _
  $region7: #{mpblock_forward.1} parent=0 // pred_check_branch
    %22 = sbr.rel (0) target = $region9
  $region8: #{mpblock_forward.1} parent=0 // pred_region
    _
  $region9: #{mpblock_forward.1} parent=0 // pred_fallthru
    _
  // Predicated region
  $region10: #{mpblock_forward.1} parent=0 // pred_check
    _
  $region11: #{mpblock_forward.1} parent=0 // pred_check_branch
    %24 = sbr.rel (0) target = $region13
  $region12: #{mpblock_forward.1} parent=0 // pred_region
    _
  $region13: #{mpblock_forward.1} parent=0 // pred_fallthru
    _
  // Predicated region
  $region14: #{mpblock_forward.1} parent=0 // pred_check
    _
  $region15: #{mpblock_forward.1} parent=0 // pred_check_branch
    %26 = sbr.rel (0) target = $region17
  $region16: #{mpblock_forward.1} parent=0 // pred_region
    _
  $region17: #{mpblock_forward.1} parent=0 // pred_fallthru
    _
  // Predicated region
  $region18: #{mpblock_forward.1} parent=0 // pred_check
    _
  $region19: #{mpblock_forward.1} parent=0 // pred_check_branch
    %28 = sbr.rel (0) target = $region21
  $region20: #{mpblock_forward.1} parent=0 // pred_region
    _
  $region21: #{mpblock_forward.1} parent=0 // pred_fallthru
    _
  // Predicated region
  $region22: #{mpblock_forward.1} parent=0 // pred_check
    _
  $region23: #{mpblock_forward.1} parent=0 // pred_check_branch
    %30 = sbr.rel (0) target = $region25
  $region24: #{mpblock_forward.1} parent=0 // pred_region
    _
  $region25: #{mpblock_forward.1} parent=0 // pred_fallthru
    _
  // Predicated region
  $region26: #{mpblock_forward.1} parent=0 // pred_check
    _
  $region27: #{mpblock_forward.1} parent=0 // pred_check_branch
    %32 = sbr.rel (0) target = $region29
  $region28: #{mpblock_forward.1} parent=0 // pred_region
    _
  $region29: #{mpblock_forward.1} parent=0 // pred_fallthru
    _
  // Predicated region
  $region30: #{mpblock_forward.1} parent=0 // pred_check
    _
  $region31: #{mpblock_forward.1} parent=0 // pred_check_branch
    %34 = sbr.rel (0) target = $region33
  $region32: #{mpblock_forward.1} parent=0 // pred_region
    _
  $region33: #{mpblock_forward.1} parent=0 // pred_fallthru
    _
  // Predicated region
  $region34: #{mpblock_forward.1} parent=0 // pred_check
    _
  $region35: #{mpblock_forward.1} parent=0 // pred_check_branch
    %36 = sbr.rel (0) target = $region37
  $region36: #{mpblock_forward.1} parent=0 // pred_region
    _
  $region37: #{mpblock_forward.1} parent=0 // pred_fallthru
    _
  // Predicated region
  $region38: #{mpblock_forward.1} parent=0 // pred_check
    _
  $region39: #{mpblock_forward.1} parent=0 // pred_check_branch
    %38 = sbr.rel (0) target = $region41
  $region40: #{mpblock_forward.1} parent=0 // pred_region
    _
  $region41: #{mpblock_forward.1} parent=0 // pred_fallthru
    _
  // Predicated region
  $region42: #{mpblock_forward.1} parent=0 // pred_check
    _
  $region43: #{mpblock_forward.1} parent=0 // pred_check_branch
    %40 = sbr.rel (0) target = $region45
  $region44: #{mpblock_forward.1} parent=0 // pred_region
    _
  $region45: #{mpblock_forward.1} parent=0 // pred_fallthru
    _
  // Predicated region
  $region46: #{mpblock_forward.1} parent=0 // pred_check
    _
  $region47: #{mpblock_forward.1} parent=0 // pred_check_branch
    %42 = sbr.rel (0) target = $region49
  $region48: #{mpblock_forward.1} parent=0 // pred_region
    _
  $region49: #{mpblock_forward.1} parent=0 // pred_fallthru
    _
  %p44 = scmp.eq.s32.totalorder 0, 0
  // Predicated region
  $region50: #{mpblock_forward.1} parent=0 // pred_check
    %p45 = pneg %p44
  $region51: #{mpblock_forward.1} parent=0 // pred_check_branch
    %47 = sbr.rel (%p45) target = $region53
  $region52: #{mpblock_forward.1} parent=0 // pred_region
    %v48 = vld [vmem:[%s3] sm:$0xff]
    %v49 = vld [vmem:[%s3 + $0x8] sm:$0xff]
    %v50 = vld [vmem:[%s3 + $0x10] sm:$0xff]
    %v51 = vld [vmem:[%s3 + $0x18] sm:$0xff]
    %v52 = vld [vmem:[%s3 + $0x20] sm:$0xff]
    %v53 = vld [vmem:[%s3 + $0x28] sm:$0xff]
    %v54 = vld [vmem:[%s3 + $0x30] sm:$0xff]
    %v55 = vld [vmem:[%s3 + $0x38] sm:$0xff]
    %vm56 = vcmask 261120
    %v57 = vsel %vm56, %v48, 0.0
    %58 = vadd.xlane.f32.xlu0 %v57
    %v59 = vpop.xlane.xlu0 %58
    %v60 = vsel %vm56, %v49, 0.0
    %61 = vadd.xlane.f32.xlu0 %v60
    %v62 = vpop.xlane.xlu0 %61
    %v63 = vsel %vm56, %v50, 0.0
    %64 = vadd.xlane.f32.xlu0 %v63
    %v65 = vpop.xlane.xlu0 %64
    %v66 = vsel %vm56, %v51, 0.0
    %67 = vadd.xlane.f32.xlu0 %v66
    %v68 = vpop.xlane.xlu0 %67
    %v69 = vsel %vm56, %v52, 0.0
    %70 = vadd.xlane.f32.xlu0 %v69
    %v71 = vpop.xlane.xlu0 %70
    %v72 = vsel %vm56, %v53, 0.0
    %73 = vadd.xlane.f32.xlu0 %v72
    %v74 = vpop.xlane.xlu0 %73
    %v75 = vsel %vm56, %v54, 0.0
    %76 = vadd.xlane.f32.xlu0 %v75
    %v77 = vpop.xlane.xlu0 %76
    %v78 = vsel %vm56, %v55, 0.0
    %79 = vadd.xlane.f32.xlu0 %v78
    %v80 = vpop.xlane.xlu0 %79
    %v81 = vrcp.pop 32.0
    %v82 = vmul.f32 %v59, %v81
    %v83 = vmul.f32 %v62, %v81
    %v84 = vmul.f32 %v65, %v81
    %v85 = vmul.f32 %v68, %v81
    %v86 = vmul.f32 %v71, %v81
    %v87 = vmul.f32 %v74, %v81
    %v88 = vmul.f32 %v77, %v81
    %v89 = vmul.f32 %v80, %v81
    %v90 = vsub.f32 %v48, %v82
    %v91 = vsub.f32 %v49, %v83
    %v92 = vsub.f32 %v50, %v84
    %v93 = vsub.f32 %v51, %v85
    %v94 = vsub.f32 %v52, %v86
    %v95 = vsub.f32 %v53, %v87
    %v96 = vsub.f32 %v54, %v88
    %v97 = vsub.f32 %v55, %v89
    %v98 = vmul.f32 %v90, %v90
    %v99 = vmul.f32 %v91, %v91
    %v100 = vmul.f32 %v92, %v92
    %v101 = vmul.f32 %v93, %v93
    %v102 = vmul.f32 %v94, %v94
    %v103 = vmul.f32 %v95, %v95
    %v104 = vmul.f32 %v96, %v96
    %v105 = vmul.f32 %v97, %v97
    %v106 = vsel %vm56, %v98, 0.0
    %107 = vadd.xlane.f32.xlu0 %v106
    %v108 = vpop.xlane.xlu0 %107
    %v109 = vsel %vm56, %v99, 0.0
    %110 = vadd.xlane.f32.xlu0 %v109
    %v111 = vpop.xlane.xlu0 %110
    %v112 = vsel %vm56, %v100, 0.0
    %113 = vadd.xlane.f32.xlu0 %v112
    %v114 = vpop.xlane.xlu0 %113
    %v115 = vsel %vm56, %v101, 0.0
    %116 = vadd.xlane.f32.xlu0 %v115
    %v117 = vpop.xlane.xlu0 %116
    %v118 = vsel %vm56, %v102, 0.0
    %119 = vadd.xlane.f32.xlu0 %v118
    %v120 = vpop.xlane.xlu0 %119
    %v121 = vsel %vm56, %v103, 0.0
    %122 = vadd.xlane.f32.xlu0 %v121
    %v123 = vpop.xlane.xlu0 %122
    %v124 = vsel %vm56, %v104, 0.0
    %125 = vadd.xlane.f32.xlu0 %v124
    %v126 = vpop.xlane.xlu0 %125
    %v127 = vsel %vm56, %v105, 0.0
    %128 = vadd.xlane.f32.xlu0 %v127
    %v129 = vpop.xlane.xlu0 %128
    %v130 = vmul.f32 %v108, %v81
    %v131 = vmul.f32 %v111, %v81
    %v132 = vmul.f32 %v114, %v81
    %v133 = vmul.f32 %v117, %v81
    %v134 = vmul.f32 %v120, %v81
    %v135 = vmul.f32 %v123, %v81
    %v136 = vmul.f32 %v126, %v81
    %v137 = vmul.f32 %v129, %v81
    %v138 = vadd.f32 %v130, 1e-05
    %v139 = vadd.f32 %v131, 1e-05
    %v140 = vadd.f32 %v132, 1e-05
    %v141 = vadd.f32 %v133, 1e-05
    %v142 = vadd.f32 %v134, 1e-05
    %v143 = vadd.f32 %v135, 1e-05
    %v144 = vadd.f32 %v136, 1e-05
    %v145 = vadd.f32 %v137, 1e-05
    %v146 = vrsqrt.pop %v138
    %v147 = vrsqrt.pop %v139
    %v148 = vrsqrt.pop %v140
    %v149 = vrsqrt.pop %v141
    %v150 = vrsqrt.pop %v142
    %v151 = vrsqrt.pop %v143
    %v152 = vrsqrt.pop %v144
    %v153 = vrsqrt.pop %v145
    %v154 = vmul.f32 %v90, %v146
    %v155 = vmul.f32 %v91, %v147
    %v156 = vmul.f32 %v92, %v148
    %v157 = vmul.f32 %v93, %v149
    %v158 = vmul.f32 %v94, %v150
    %v159 = vmul.f32 %v95, %v151
    %v160 = vmul.f32 %v96, %v152
    %v161 = vmul.f32 %v97, %v153
    %v162 = vld [vmem:[%s4] sm:$0x1]
    %v164 = vlaneseq
    %v165 = vshrl.u32 %v164, 7
    %v166 = vsub.s32 0, %v165
    %v167 = vrot.slane %v162, %v166
    %v169 = vmul.f32 %v154, %v167
    %v170 = vmul.f32 %v155, %v167
    %v171 = vmul.f32 %v156, %v167
    %v172 = vmul.f32 %v157, %v167
    %v173 = vmul.f32 %v158, %v167
    %v174 = vmul.f32 %v159, %v167
    %v175 = vmul.f32 %v160, %v167
    %v176 = vmul.f32 %v161, %v167
    %v177 = vld [vmem:[%s5] sm:$0x1]
    %v179 = vlaneseq
    %v180 = vshrl.u32 %v179, 7
    %v181 = vsub.s32 0, %v180
    %v182 = vrot.slane %v177, %v181
    %v184 = vadd.f32 %v169, %v182
    %v185 = vadd.f32 %v170, %v182
    %v186 = vadd.f32 %v171, %v182
    %v187 = vadd.f32 %v172, %v182
    %v188 = vadd.f32 %v173, %v182
    %v189 = vadd.f32 %v174, %v182
    %v190 = vadd.f32 %v175, %v182
    %v191 = vadd.f32 %v176, %v182
    %192 = vst.msk [vmem:[#allocation2] sm:$0xff] %vm56, %v184
    %193 = vst.msk [vmem:[#allocation2 + $0x8] sm:$0xff] %vm56, %v185
    %194 = vst.msk [vmem:[#allocation2 + $0x10] sm:$0xff] %vm56, %v186
    %195 = vst.msk [vmem:[#allocation2 + $0x18] sm:$0xff] %vm56, %v187
    %196 = vst.msk [vmem:[#allocation2 + $0x20] sm:$0xff] %vm56, %v188
    %197 = vst.msk [vmem:[#allocation2 + $0x28] sm:$0xff] %vm56, %v189
    %198 = vst.msk [vmem:[#allocation2 + $0x30] sm:$0xff] %vm56, %v190
    %199 = vst.msk [vmem:[#allocation2 + $0x38] sm:$0xff] %vm56, %v191
    %200 = vst.msk [vmem:[#allocation3] sm:$0xff] %vm56, 0.0
    %201 = vst.msk [vmem:[#allocation3 + $0x8] sm:$0xff] %vm56, 0.0
    %202 = vst.msk [vmem:[#allocation3 + $0x10] sm:$0xff] %vm56, 0.0
    %203 = vst.msk [vmem:[#allocation3 + $0x18] sm:$0xff] %vm56, 0.0
    %204 = vst.msk [vmem:[#allocation3 + $0x20] sm:$0xff] %vm56, 0.0
    %205 = vst.msk [vmem:[#allocation3 + $0x28] sm:$0xff] %vm56, 0.0
    %206 = vst.msk [vmem:[#allocation3 + $0x30] sm:$0xff] %vm56, 0.0
    %207 = vst.msk [vmem:[#allocation3 + $0x38] sm:$0xff] %vm56, 0.0
  $region53: #{mpblock_forward.1} parent=0 // pred_fallthru
    _
  %v208 = vld [vmem:[#allocation2] sm:$0xff]
  %v209 = vld [vmem:[#allocation2 + $0x8] sm:$0xff]
  %v210 = vld [vmem:[#allocation2 + $0x10] sm:$0xff]
  %v211 = vld [vmem:[#allocation2 + $0x18] sm:$0xff]
  %v212 = vld [vmem:[#allocation2 + $0x20] sm:$0xff]
  %v213 = vld [vmem:[#allocation2 + $0x28] sm:$0xff]
  %v214 = vld [vmem:[#allocation2 + $0x30] sm:$0xff]
  %v215 = vld [vmem:[#allocation2 + $0x38] sm:$0xff]
  %v216 = vld [vmem:[%s0] sm:$0xff]
  %v217 = vld [vmem:[%s0 + $0x8] sm:$0xff]
  %v218 = vld [vmem:[%s0 + $0x10] sm:$0xff]
  %v219 = vld [vmem:[%s0 + $0x18] sm:$0xff]
  %v220 = vld [vmem:[%s0 + $0x20] sm:$0xff]
  %v221 = vld [vmem:[%s0 + $0x28] sm:$0xff]
  %v222 = vld [vmem:[%s0 + $0x30] sm:$0xff]
  %v223 = vld [vmem:[%s0 + $0x38] sm:$0xff]
  %v224 = vld [vmem:[%s0 + $0x40] sm:$0xff]
  %v225 = vld [vmem:[%s0 + $0x48] sm:$0xff]
  %v226 = vld [vmem:[%s0 + $0x50] sm:$0xff]
  %v227 = vld [vmem:[%s0 + $0x58] sm:$0xff]
  %v228 = vld [vmem:[%s0 + $0x60] sm:$0xff]
  %v229 = vld [vmem:[%s0 + $0x68] sm:$0xff]
  %v230 = vld [vmem:[%s0 + $0x70] sm:$0xff]
  %v231 = vld [vmem:[%s0 + $0x78] sm:$0xff]
  %v232 = vld [vmem:[%s0 + $0x80] sm:$0xff]
  %v233 = vld [vmem:[%s0 + $0x88] sm:$0xff]
  %v234 = vld [vmem:[%s0 + $0x90] sm:$0xff]
  %v235 = vld [vmem:[%s0 + $0x98] sm:$0xff]
  %v236 = vld [vmem:[%s0 + $0xa0] sm:$0xff]
  %v237 = vld [vmem:[%s0 + $0xa8] sm:$0xff]
  %v238 = vld [vmem:[%s0 + $0xb0] sm:$0xff]
  %v239 = vld [vmem:[%s0 + $0xb8] sm:$0xff]
  %v240 = vld [vmem:[%s0 + $0xc0] sm:$0xff]
  %v241 = vld [vmem:[%s0 + $0xc8] sm:$0xff]
  %v242 = vld [vmem:[%s0 + $0xd0] sm:$0xff]
  %v243 = vld [vmem:[%s0 + $0xd8] sm:$0xff]
  %v244 = vld [vmem:[%s0 + $0xe0] sm:$0xff]
  %v245 = vld [vmem:[%s0 + $0xe8] sm:$0xff]
  %v246 = vld [vmem:[%s0 + $0xf0] sm:$0xff]
  %v247 = vld [vmem:[%s0 + $0xf8] sm:$0xff]
  %v248 = vld [vmem:[%s1] sm:$0xff]
  %v249 = vld [vmem:[%s1 + $0x8] sm:$0xff]
  %v250 = vld [vmem:[%s1 + $0x10] sm:$0xff]
  %v251 = vld [vmem:[%s1 + $0x18] sm:$0xff]
  %v252 = vld [vmem:[%s1 + $0x20] sm:$0xff]
  %v253 = vld [vmem:[%s1 + $0x28] sm:$0xff]
  %v254 = vld [vmem:[%s1 + $0x30] sm:$0xff]
  %v255 = vld [vmem:[%s1 + $0x38] sm:$0xff]
  %v256 = vld [vmem:[%s1 + $0x40] sm:$0xff]
  %v257 = vld [vmem:[%s1 + $0x48] sm:$0xff]
  %v258 = vld [vmem:[%s1 + $0x50] sm:$0xff]
  %v259 = vld [vmem:[%s1 + $0x58] sm:$0xff]
  %v260 = vld [vmem:[%s1 + $0x60] sm:$0xff]
  %v261 = vld [vmem:[%s1 + $0x68] sm:$0xff]
  %v262 = vld [vmem:[%s1 + $0x70] sm:$0xff]
  %v263 = vld [vmem:[%s1 + $0x78] sm:$0xff]
  %v264 = vld [vmem:[%s1 + $0x80] sm:$0xff]
  %v265 = vld [vmem:[%s1 + $0x88] sm:$0xff]
  %v266 = vld [vmem:[%s1 + $0x90] sm:$0xff]
  %v267 = vld [vmem:[%s1 + $0x98] sm:$0xff]
  %v268 = vld [vmem:[%s1 + $0xa0] sm:$0xff]
  %v269 = vld [vmem:[%s1 + $0xa8] sm:$0xff]
  %v270 = vld [vmem:[%s1 + $0xb0] sm:$0xff]
  %v271 = vld [vmem:[%s1 + $0xb8] sm:$0xff]
  %v272 = vld [vmem:[%s1 + $0xc0] sm:$0xff]
  %v273 = vld [vmem:[%s1 + $0xc8] sm:$0xff]
  %v274 = vld [vmem:[%s1 + $0xd0] sm:$0xff]
  %v275 = vld [vmem:[%s1 + $0xd8] sm:$0xff]
  %v276 = vld [vmem:[%s1 + $0xe0] sm:$0xff]
  %v277 = vld [vmem:[%s1 + $0xe8] sm:$0xff]
  %v278 = vld [vmem:[%s1 + $0xf0] sm:$0xff]
  %v279 = vld [vmem:[%s1 + $0xf8] sm:$0xff]
  %v280 = vlaneseq
  %v281 = vand.u32 %v280, 127
  %282 = vset.pattern.permute.xlu0 0
  %283 = vperm.xlu0 %282, %v216
  %v284 = vpop.permute.xlu0 %283
  %285 = vset.pattern.permute.xlu0 0
  %286 = vperm.xlu0 %285, %v217
  %v287 = vpop.permute.xlu0 %286
  %288 = vset.pattern.permute.xlu0 0
  %289 = vperm.xlu0 %288, %v218
  %v290 = vpop.permute.xlu0 %289
  %291 = vset.pattern.permute.xlu0 0
  %292 = vperm.xlu0 %291, %v219
  %v293 = vpop.permute.xlu0 %292
  %294 = vset.pattern.permute.xlu0 0
  %295 = vperm.xlu0 %294, %v220
  %v296 = vpop.permute.xlu0 %295
  %297 = vset.pattern.permute.xlu0 0
  %298 = vperm.xlu0 %297, %v221
  %v299 = vpop.permute.xlu0 %298
  %300 = vset.pattern.permute.xlu0 0
  %301 = vperm.xlu0 %300, %v222
  %v302 = vpop.permute.xlu0 %301
  %303 = vset.pattern.permute.xlu0 0
  %304 = vperm.xlu0 %303, %v223
  %v305 = vpop.permute.xlu0 %304
  %306 = vset.pattern.permute.xlu0 0
  %307 = vperm.xlu0 %306, %v224
  %v308 = vpop.permute.xlu0 %307
  %309 = vset.pattern.permute.xlu0 0
  %310 = vperm.xlu0 %309, %v225
  %v311 = vpop.permute.xlu0 %310
  %312 = vset.pattern.permute.xlu0 0
  %313 = vperm.xlu0 %312, %v226
  %v314 = vpop.permute.xlu0 %313
  %315 = vset.pattern.permute.xlu0 0
  %316 = vperm.xlu0 %315, %v227
  %v317 = vpop.permute.xlu0 %316
  %318 = vset.pattern.permute.xlu0 0
  %319 = vperm.xlu0 %318, %v228
  %v320 = vpop.permute.xlu0 %319
  %321 = vset.pattern.permute.xlu0 0
  %322 = vperm.xlu0 %321, %v229
  %v323 = vpop.permute.xlu0 %322
  %324 = vset.pattern.permute.xlu0 0
  %325 = vperm.xlu0 %324, %v230
  %v326 = vpop.permute.xlu0 %325
  %327 = vset.pattern.permute.xlu0 0
  %328 = vperm.xlu0 %327, %v231
  %v329 = vpop.permute.xlu0 %328
  %330 = vset.pattern.permute.xlu0 0
  %331 = vperm.xlu0 %330, %v232
  %v332 = vpop.permute.xlu0 %331
  %333 = vset.pattern.permute.xlu0 0
  %334 = vperm.xlu0 %333, %v233
  %v335 = vpop.permute.xlu0 %334
  %336 = vset.pattern.permute.xlu0 0
  %337 = vperm.xlu0 %336, %v234
  %v338 = vpop.permute.xlu0 %337
  %339 = vset.pattern.permute.xlu0 0
  %340 = vperm.xlu0 %339, %v235
  %v341 = vpop.permute.xlu0 %340
  %342 = vset.pattern.permute.xlu0 0
  %343 = vperm.xlu0 %342, %v236
  %v344 = vpop.permute.xlu0 %343
  %345 = vset.pattern.permute.xlu0 0
  %346 = vperm.xlu0 %345, %v237
  %v347 = vpop.permute.xlu0 %346
  %348 = vset.pattern.permute.xlu0 0
  %349 = vperm.xlu0 %348, %v238
  %v350 = vpop.permute.xlu0 %349
  %351 = vset.pattern.permute.xlu0 0
  %352 = vperm.xlu0 %351, %v239
  %v353 = vpop.permute.xlu0 %352
  %354 = vset.pattern.permute.xlu0 0
  %355 = vperm.xlu0 %354, %v240
  %v356 = vpop.permute.xlu0 %355
  %357 = vset.pattern.permute.xlu0 0
  %358 = vperm.xlu0 %357, %v241
  %v359 = vpop.permute.xlu0 %358
  %360 = vset.pattern.permute.xlu0 0
  %361 = vperm.xlu0 %360, %v242
  %v362 = vpop.permute.xlu0 %361
  %363 = vset.pattern.permute.xlu0 0
  %364 = vperm.xlu0 %363, %v243
  %v365 = vpop.permute.xlu0 %364
  %366 = vset.pattern.permute.xlu0 0
  %367 = vperm.xlu0 %366, %v244
  %v368 = vpop.permute.xlu0 %367
  %369 = vset.pattern.permute.xlu0 0
  %370 = vperm.xlu0 %369, %v245
  %v371 = vpop.permute.xlu0 %370
  %372 = vset.pattern.permute.xlu0 0
  %373 = vperm.xlu0 %372, %v246
  %v374 = vpop.permute.xlu0 %373
  %375 = vset.pattern.permute.xlu0 0
  %376 = vperm.xlu0 %375, %v247
  %v377 = vpop.permute.xlu0 %376
  %vm378 = vcmp.eq.s32.totalorder %v281, %v284
  %vm379 = vcmp.eq.s32.totalorder %v281, %v287
  %vm380 = vcmp.eq.s32.totalorder %v281, %v290
  %vm381 = vcmp.eq.s32.totalorder %v281, %v293
  %vm382 = vcmp.eq.s32.totalorder %v281, %v296
  %vm383 = vcmp.eq.s32.totalorder %v281, %v299
  %vm384 = vcmp.eq.s32.totalorder %v281, %v302
  %vm385 = vcmp.eq.s32.totalorder %v281, %v305
  %vm386 = vcmp.eq.s32.totalorder %v281, %v308
  %vm387 = vcmp.eq.s32.totalorder %v281, %v311
  %vm388 = vcmp.eq.s32.totalorder %v281, %v314
  %vm389 = vcmp.eq.s32.totalorder %v281, %v317
  %vm390 = vcmp.eq.s32.totalorder %v281, %v320
  %vm391 = vcmp.eq.s32.totalorder %v281, %v323
  %vm392 = vcmp.eq.s32.totalorder %v281, %v326
  %vm393 = vcmp.eq.s32.totalorder %v281, %v329
  %vm394 = vcmp.eq.s32.totalorder %v281, %v332
  %vm395 = vcmp.eq.s32.totalorder %v281, %v335
  %vm396 = vcmp.eq.s32.totalorder %v281, %v338
  %vm397 = vcmp.eq.s32.totalorder %v281, %v341
  %vm398 = vcmp.eq.s32.totalorder %v281, %v344
  %vm399 = vcmp.eq.s32.totalorder %v281, %v347
  %vm400 = vcmp.eq.s32.totalorder %v281, %v350
  %vm401 = vcmp.eq.s32.totalorder %v281, %v353
  %vm402 = vcmp.eq.s32.totalorder %v281, %v356
  %vm403 = vcmp.eq.s32.totalorder %v281, %v359
  %vm404 = vcmp.eq.s32.totalorder %v281, %v362
  %vm405 = vcmp.eq.s32.totalorder %v281, %v365
  %vm406 = vcmp.eq.s32.totalorder %v281, %v368
  %vm407 = vcmp.eq.s32.totalorder %v281, %v371
  %vm408 = vcmp.eq.s32.totalorder %v281, %v374
  %vm409 = vcmp.eq.s32.totalorder %v281, %v377
  %v410 = vsel %vm378, 1, 0
  %v411 = vsel %vm379, 1, 0
  %v412 = vsel %vm380, 1, 0
  %v413 = vsel %vm381, 1, 0
  %v414 = vsel %vm382, 1, 0
  %v415 = vsel %vm383, 1, 0
  %v416 = vsel %vm384, 1, 0
  %v417 = vsel %vm385, 1, 0
  %v418 = vsel %vm386, 1, 0
  %v419 = vsel %vm387, 1, 0
  %v420 = vsel %vm388, 1, 0
  %v421 = vsel %vm389, 1, 0
  %v422 = vsel %vm390, 1, 0
  %v423 = vsel %vm391, 1, 0
  %v424 = vsel %vm392, 1, 0
  %v425 = vsel %vm393, 1, 0
  %v426 = vsel %vm394, 1, 0
  %v427 = vsel %vm395, 1, 0
  %v428 = vsel %vm396, 1, 0
  %v429 = vsel %vm397, 1, 0
  %v430 = vsel %vm398, 1, 0
  %v431 = vsel %vm399, 1, 0
  %v432 = vsel %vm400, 1, 0
  %v433 = vsel %vm401, 1, 0
  %v434 = vsel %vm402, 1, 0
  %v435 = vsel %vm403, 1, 0
  %v436 = vsel %vm404, 1, 0
  %v437 = vsel %vm405, 1, 0
  %v438 = vsel %vm406, 1, 0
  %v439 = vsel %vm407, 1, 0
  %v440 = vsel %vm408, 1, 0
  %v441 = vsel %vm409, 1, 0
  %v442 = vcvt.s32.f32 %v410
  %v443 = vcvt.s32.f32 %v411
  %v444 = vcvt.s32.f32 %v412
  %v445 = vcvt.s32.f32 %v413
  %v446 = vcvt.s32.f32 %v414
  %v447 = vcvt.s32.f32 %v415
  %v448 = vcvt.s32.f32 %v416
  %v449 = vcvt.s32.f32 %v417
  %v450 = vcvt.s32.f32 %v418
  %v451 = vcvt.s32.f32 %v419
  %v452 = vcvt.s32.f32 %v420
  %v453 = vcvt.s32.f32 %v421
  %v454 = vcvt.s32.f32 %v422
  %v455 = vcvt.s32.f32 %v423
  %v456 = vcvt.s32.f32 %v424
  %v457 = vcvt.s32.f32 %v425
  %v458 = vcvt.s32.f32 %v426
  %v459 = vcvt.s32.f32 %v427
  %v460 = vcvt.s32.f32 %v428
  %v461 = vcvt.s32.f32 %v429
  %v462 = vcvt.s32.f32 %v430
  %v463 = vcvt.s32.f32 %v431
  %v464 = vcvt.s32.f32 %v432
  %v465 = vcvt.s32.f32 %v433
  %v466 = vcvt.s32.f32 %v434
  %v467 = vcvt.s32.f32 %v435
  %v468 = vcvt.s32.f32 %v436
  %v469 = vcvt.s32.f32 %v437
  %v470 = vcvt.s32.f32 %v438
  %v471 = vcvt.s32.f32 %v439
  %v472 = vcvt.s32.f32 %v440
  %v473 = vcvt.s32.f32 %v441
  %474 = vset.pattern.permute.xlu0 0
  %475 = vperm.xlu0 %474, %v248
  %v476 = vpop.permute.xlu0 %475
  %477 = vset.pattern.permute.xlu0 0
  %478 = vperm.xlu0 %477, %v249
  %v479 = vpop.permute.xlu0 %478
  %480 = vset.pattern.permute.xlu0 0
  %481 = vperm.xlu0 %480, %v250
  %v482 = vpop.permute.xlu0 %481
  %483 = vset.pattern.permute.xlu0 0
  %484 = vperm.xlu0 %483, %v251
  %v485 = vpop.permute.xlu0 %484
  %486 = vset.pattern.permute.xlu0 0
  %487 = vperm.xlu0 %486, %v252
  %v488 = vpop.permute.xlu0 %487
  %489 = vset.pattern.permute.xlu0 0
  %490 = vperm.xlu0 %489, %v253
  %v491 = vpop.permute.xlu0 %490
  %492 = vset.pattern.permute.xlu0 0
  %493 = vperm.xlu0 %492, %v254
  %v494 = vpop.permute.xlu0 %493
  %495 = vset.pattern.permute.xlu0 0
  %496 = vperm.xlu0 %495, %v255
  %v497 = vpop.permute.xlu0 %496
  %498 = vset.pattern.permute.xlu0 0
  %499 = vperm.xlu0 %498, %v256
  %v500 = vpop.permute.xlu0 %499
  %501 = vset.pattern.permute.xlu0 0
  %502 = vperm.xlu0 %501, %v257
  %v503 = vpop.permute.xlu0 %502
  %504 = vset.pattern.permute.xlu0 0
  %505 = vperm.xlu0 %504, %v258
  %v506 = vpop.permute.xlu0 %505
  %507 = vset.pattern.permute.xlu0 0
  %508 = vperm.xlu0 %507, %v259
  %v509 = vpop.permute.xlu0 %508
  %510 = vset.pattern.permute.xlu0 0
  %511 = vperm.xlu0 %510, %v260
  %v512 = vpop.permute.xlu0 %511
  %513 = vset.pattern.permute.xlu0 0
  %514 = vperm.xlu0 %513, %v261
  %v515 = vpop.permute.xlu0 %514
  %516 = vset.pattern.permute.xlu0 0
  %517 = vperm.xlu0 %516, %v262
  %v518 = vpop.permute.xlu0 %517
  %519 = vset.pattern.permute.xlu0 0
  %520 = vperm.xlu0 %519, %v263
  %v521 = vpop.permute.xlu0 %520
  %522 = vset.pattern.permute.xlu0 0
  %523 = vperm.xlu0 %522, %v264
  %v524 = vpop.permute.xlu0 %523
  %525 = vset.pattern.permute.xlu0 0
  %526 = vperm.xlu0 %525, %v265
  %v527 = vpop.permute.xlu0 %526
  %528 = vset.pattern.permute.xlu0 0
  %529 = vperm.xlu0 %528, %v266
  %v530 = vpop.permute.xlu0 %529
  %531 = vset.pattern.permute.xlu0 0
  %532 = vperm.xlu0 %531, %v267
  %v533 = vpop.permute.xlu0 %532
  %534 = vset.pattern.permute.xlu0 0
  %535 = vperm.xlu0 %534, %v268
  %v536 = vpop.permute.xlu0 %535
  %537 = vset.pattern.permute.xlu0 0
  %538 = vperm.xlu0 %537, %v269
  %v539 = vpop.permute.xlu0 %538
  %540 = vset.pattern.permute.xlu0 0
  %541 = vperm.xlu0 %540, %v270
  %v542 = vpop.permute.xlu0 %541
  %543 = vset.pattern.permute.xlu0 0
  %544 = vperm.xlu0 %543, %v271
  %v545 = vpop.permute.xlu0 %544
  %546 = vset.pattern.permute.xlu0 0
  %547 = vperm.xlu0 %546, %v272
  %v548 = vpop.permute.xlu0 %547
  %549 = vset.pattern.permute.xlu0 0
  %550 = vperm.xlu0 %549, %v273
  %v551 = vpop.permute.xlu0 %550
  %552 = vset.pattern.permute.xlu0 0
  %553 = vperm.xlu0 %552, %v274
  %v554 = vpop.permute.xlu0 %553
  %555 = vset.pattern.permute.xlu0 0
  %556 = vperm.xlu0 %555, %v275
  %v557 = vpop.permute.xlu0 %556
  %558 = vset.pattern.permute.xlu0 0
  %559 = vperm.xlu0 %558, %v276
  %v560 = vpop.permute.xlu0 %559
  %561 = vset.pattern.permute.xlu0 0
  %562 = vperm.xlu0 %561, %v277
  %v563 = vpop.permute.xlu0 %562
  %564 = vset.pattern.permute.xlu0 0
  %565 = vperm.xlu0 %564, %v278
  %v566 = vpop.permute.xlu0 %565
  %567 = vset.pattern.permute.xlu0 0
  %568 = vperm.xlu0 %567, %v279
  %v569 = vpop.permute.xlu0 %568
  %vm570 = vcmp.eq.s32.totalorder %v281, %v476
  %vm571 = vcmp.eq.s32.totalorder %v281, %v479
  %vm572 = vcmp.eq.s32.totalorder %v281, %v482
  %vm573 = vcmp.eq.s32.totalorder %v281, %v485
  %vm574 = vcmp.eq.s32.totalorder %v281, %v488
  %vm575 = vcmp.eq.s32.totalorder %v281, %v491
  %vm576 = vcmp.eq.s32.totalorder %v281, %v494
  %vm577 = vcmp.eq.s32.totalorder %v281, %v497
  %vm578 = vcmp.eq.s32.totalorder %v281, %v500
  %vm579 = vcmp.eq.s32.totalorder %v281, %v503
  %vm580 = vcmp.eq.s32.totalorder %v281, %v506
  %vm581 = vcmp.eq.s32.totalorder %v281, %v509
  %vm582 = vcmp.eq.s32.totalorder %v281, %v512
  %vm583 = vcmp.eq.s32.totalorder %v281, %v515
  %vm584 = vcmp.eq.s32.totalorder %v281, %v518
  %vm585 = vcmp.eq.s32.totalorder %v281, %v521
  %vm586 = vcmp.eq.s32.totalorder %v281, %v524
  %vm587 = vcmp.eq.s32.totalorder %v281, %v527
  %vm588 = vcmp.eq.s32.totalorder %v281, %v530
  %vm589 = vcmp.eq.s32.totalorder %v281, %v533
  %vm590 = vcmp.eq.s32.totalorder %v281, %v536
  %vm591 = vcmp.eq.s32.totalorder %v281, %v539
  %vm592 = vcmp.eq.s32.totalorder %v281, %v542
  %vm593 = vcmp.eq.s32.totalorder %v281, %v545
  %vm594 = vcmp.eq.s32.totalorder %v281, %v548
  %vm595 = vcmp.eq.s32.totalorder %v281, %v551
  %vm596 = vcmp.eq.s32.totalorder %v281, %v554
  %vm597 = vcmp.eq.s32.totalorder %v281, %v557
  %vm598 = vcmp.eq.s32.totalorder %v281, %v560
  %vm599 = vcmp.eq.s32.totalorder %v281, %v563
  %vm600 = vcmp.eq.s32.totalorder %v281, %v566
  %vm601 = vcmp.eq.s32.totalorder %v281, %v569
  %v602 = vsel %vm570, 1, 0
  %v603 = vsel %vm571, 1, 0
  %v604 = vsel %vm572, 1, 0
  %v605 = vsel %vm573, 1, 0
  %v606 = vsel %vm574, 1, 0
  %v607 = vsel %vm575, 1, 0
  %v608 = vsel %vm576, 1, 0
  %v609 = vsel %vm577, 1, 0
  %v610 = vsel %vm578, 1, 0
  %v611 = vsel %vm579, 1, 0
  %v612 = vsel %vm580, 1, 0
  %v613 = vsel %vm581, 1, 0
  %v614 = vsel %vm582, 1, 0
  %v615 = vsel %vm583, 1, 0
  %v616 = vsel %vm584, 1, 0
  %v617 = vsel %vm585, 1, 0
  %v618 = vsel %vm586, 1, 0
  %v619 = vsel %vm587, 1, 0
  %v620 = vsel %vm588, 1, 0
  %v621 = vsel %vm589, 1, 0
  %v622 = vsel %vm590, 1, 0
  %v623 = vsel %vm591, 1, 0
  %v624 = vsel %vm592, 1, 0
  %v625 = vsel %vm593, 1, 0
  %v626 = vsel %vm594, 1, 0
  %v627 = vsel %vm595, 1, 0
  %v628 = vsel %vm596, 1, 0
  %v629 = vsel %vm597, 1, 0
  %v630 = vsel %vm598, 1, 0
  %v631 = vsel %vm599, 1, 0
  %v632 = vsel %vm600, 1, 0
  %v633 = vsel %vm601, 1, 0
  %v634 = vcvt.s32.f32 %v602
  %v635 = vcvt.s32.f32 %v603
  %v636 = vcvt.s32.f32 %v604
  %v637 = vcvt.s32.f32 %v605
  %v638 = vcvt.s32.f32 %v606
  %v639 = vcvt.s32.f32 %v607
  %v640 = vcvt.s32.f32 %v608
  %v641 = vcvt.s32.f32 %v609
  %v642 = vcvt.s32.f32 %v610
  %v643 = vcvt.s32.f32 %v611
  %v644 = vcvt.s32.f32 %v612
  %v645 = vcvt.s32.f32 %v613
  %v646 = vcvt.s32.f32 %v614
  %v647 = vcvt.s32.f32 %v615
  %v648 = vcvt.s32.f32 %v616
  %v649 = vcvt.s32.f32 %v617
  %v650 = vcvt.s32.f32 %v618
  %v651 = vcvt.s32.f32 %v619
  %v652 = vcvt.s32.f32 %v620
  %v653 = vcvt.s32.f32 %v621
  %v654 = vcvt.s32.f32 %v622
  %v655 = vcvt.s32.f32 %v623
  %v656 = vcvt.s32.f32 %v624
  %v657 = vcvt.s32.f32 %v625
  %v658 = vcvt.s32.f32 %v626
  %v659 = vcvt.s32.f32 %v627
  %v660 = vcvt.s32.f32 %v628
  %v661 = vcvt.s32.f32 %v629
  %v662 = vcvt.s32.f32 %v630
  %v663 = vcvt.s32.f32 %v631
  %v664 = vcvt.s32.f32 %v632
  %v665 = vcvt.s32.f32 %v633
  %vm666 = vcmask 523264
  %v668 = vsel %vm666, %v442, 0
  %v671 = vsel %vm666, %v443, 0
  %v674 = vsel %vm666, %v444, 0
  %v677 = vsel %vm666, %v445, 0
  %v680 = vsel %vm666, %v446, 0
  %v683 = vsel %vm666, %v447, 0
  %v686 = vsel %vm666, %v448, 0
  %v689 = vsel %vm666, %v449, 0
  %v692 = vsel %vm666, %v450, 0
  %v695 = vsel %vm666, %v451, 0
  %v698 = vsel %vm666, %v452, 0
  %v701 = vsel %vm666, %v453, 0
  %v704 = vsel %vm666, %v454, 0
  %v707 = vsel %vm666, %v455, 0
  %v710 = vsel %vm666, %v456, 0
  %v713 = vsel %vm666, %v457, 0
  %v716 = vsel %vm666, %v458, 0
  %v719 = vsel %vm666, %v459, 0
  %v722 = vsel %vm666, %v460, 0
  %v725 = vsel %vm666, %v461, 0
  %v728 = vsel %vm666, %v462, 0
  %v731 = vsel %vm666, %v463, 0
  %v734 = vsel %vm666, %v464, 0
  %v737 = vsel %vm666, %v465, 0
  %v740 = vsel %vm666, %v466, 0
  %v743 = vsel %vm666, %v467, 0
  %v746 = vsel %vm666, %v468, 0
  %v749 = vsel %vm666, %v469, 0
  %v752 = vsel %vm666, %v470, 0
  %v755 = vsel %vm666, %v471, 0
  %v758 = vsel %vm666, %v472, 0
  %v761 = vsel %vm666, %v473, 0
  %763 = vmatprep.subr.mxu0 0.0
  %764 = vmatpush1.msra.mxu0 0.0
  %765 = vmatprep.subr.mxu0 0.0
  %766 = vmatpush1.msra.mxu0 0.0
  %767 = vmatprep.subr.mxu0 0.0
  %768 = vmatpush1.msra.mxu0 0.0
  %769 = vmatprep.subr.mxu0 0.0
  %770 = vmatpush1.msra.mxu0 0.0
  %771 = vmatprep.subr.mxu0 0.0
  %772 = vmatpush1.msra.mxu0 0.0
  %773 = vmatprep.subr.mxu0 0.0
  %774 = vmatpush1.msra.mxu0 0.0
  %775 = vmatprep.subr.mxu0 0.0
  %776 = vmatpush1.msra.mxu0 0.0
  %777 = vmatprep.subr.mxu0 0.0
  %778 = vmatpush1.msra.mxu0 0.0
  %779 = vmatprep.subr.mxu0 0.0
  %780 = vmatpush1.msra.mxu0 %v215
  %781 = vmatprep.subr.mxu0 0.0
  %782 = vmatpush1.msra.mxu0 %v214
  %783 = vmatprep.subr.mxu0 0.0
  %784 = vmatpush1.msra.mxu0 %v213
  %785 = vmatprep.subr.mxu0 0.0
  %786 = vmatpush1.msra.mxu0 %v212
  %787 = vmatprep.subr.mxu0 0.0
  %788 = vmatpush1.msra.mxu0 %v211
  %789 = vmatprep.subr.mxu0 0.0
  %790 = vmatpush1.msra.mxu0 %v210
  %791 = vmatprep.subr.mxu0 0.0
  %792 = vmatpush1.msra.mxu0 %v209
  %793 = vmatprep.subr.mxu0 0.0
  %794 = vmatpush1.msra.mxu0 %v208
  %795 = vmatprep.subr.mxu0 0.0
  %796 = vmatpush2.msra.mxu0 0.0
  %797 = vmatprep.subr.mxu0 0.0
  %798 = vmatpush2.msra.mxu0 0.0
  %799 = vmatprep.subr.mxu0 0.0
  %800 = vmatpush2.msra.mxu0 0.0
  %801 = vmatprep.subr.mxu0 0.0
  %802 = vmatpush2.msra.mxu0 0.0
  %803 = vmatprep.subr.mxu0 0.0
  %804 = vmatpush2.msra.mxu0 0.0
  %805 = vmatprep.subr.mxu0 0.0
  %806 = vmatpush2.msra.mxu0 0.0
  %807 = vmatprep.subr.mxu0 0.0
  %808 = vmatpush2.msra.mxu0 0.0
  %809 = vmatprep.subr.mxu0 0.0
  %810 = vmatpush2.msra.mxu0 0.0
  %811 = vmatprep.subr.mxu0 0.0
  %812 = vmatpush2.msra.mxu0 0.0
  %813 = vmatprep.subr.mxu0 0.0
  %814 = vmatpush2.msra.mxu0 0.0
  %815 = vmatprep.subr.mxu0 0.0
  %816 = vmatpush2.msra.mxu0 0.0
  %817 = vmatprep.subr.mxu0 0.0
  %818 = vmatpush2.msra.mxu0 0.0
  %819 = vmatprep.subr.mxu0 0.0
  %820 = vmatpush2.msra.mxu0 0.0
  %821 = vmatprep.subr.mxu0 0.0
  %822 = vmatpush2.msra.mxu0 0.0
  %823 = vmatprep.subr.mxu0 0.0
  %824 = vmatpush2.msra.mxu0 0.0
  %825 = vmatprep.subr.mxu0 0.0
  %826 = vmatpush2.msra.mxu0 0.0
  %827 = vmatprep.mubr.f32.mxu0 0.0
  %828 = vmatmul.mubr.f32.gmra.mxu0 %v668
  %v829 = vpop.f32.mrf.mxu0
  %v830 = vadd.f32 0.0, %v829
  %v831 = vpop.f32.mrf.mxu0
  %832 = vmatprep.mubr.f32.mxu0 0.0
  %833 = vmatmul.mubr.f32.gmra.mxu0 %v671
  %v834 = vpop.f32.mrf.mxu0
  %v835 = vadd.f32 0.0, %v834
  %v836 = vpop.f32.mrf.mxu0
  %837 = vmatprep.mubr.f32.mxu0 0.0
  %838 = vmatmul.mubr.f32.gmra.mxu0 %v674
  %v839 = vpop.f32.mrf.mxu0
  %v840 = vadd.f32 0.0, %v839
  %v841 = vpop.f32.mrf.mxu0
  %842 = vmatprep.mubr.f32.mxu0 0.0
  %843 = vmatmul.mubr.f32.gmra.mxu0 %v677
  %v844 = vpop.f32.mrf.mxu0
  %v845 = vadd.f32 0.0, %v844
  %v846 = vpop.f32.mrf.mxu0
  %847 = vmatprep.mubr.f32.mxu0 0.0
  %848 = vmatmul.mubr.f32.gmra.mxu0 %v680
  %v849 = vpop.f32.mrf.mxu0
  %v850 = vadd.f32 0.0, %v849
  %v851 = vpop.f32.mrf.mxu0
  %852 = vmatprep.mubr.f32.mxu0 0.0
  %853 = vmatmul.mubr.f32.gmra.mxu0 %v683
  %v854 = vpop.f32.mrf.mxu0
  %v855 = vadd.f32 0.0, %v854
  %v856 = vpop.f32.mrf.mxu0
  %857 = vmatprep.mubr.f32.mxu0 0.0
  %858 = vmatmul.mubr.f32.gmra.mxu0 %v686
  %v859 = vpop.f32.mrf.mxu0
  %v860 = vadd.f32 0.0, %v859
  %v861 = vpop.f32.mrf.mxu0
  %862 = vmatprep.mubr.f32.mxu0 0.0
  %863 = vmatmul.mubr.f32.gmra.mxu0 %v689
  %v864 = vpop.f32.mrf.mxu0
  %v865 = vadd.f32 0.0, %v864
  %v866 = vpop.f32.mrf.mxu0
  %867 = vmatprep.mubr.f32.mxu0 0.0
  %868 = vmatmul.mubr.f32.gmra.mxu0 %v692
  %v869 = vpop.f32.mrf.mxu0
  %v870 = vadd.f32 0.0, %v869
  %v871 = vpop.f32.mrf.mxu0
  %872 = vmatprep.mubr.f32.mxu0 0.0
  %873 = vmatmul.mubr.f32.gmra.mxu0 %v695
  %v874 = vpop.f32.mrf.mxu0
  %v875 = vadd.f32 0.0, %v874
  %v876 = vpop.f32.mrf.mxu0
  %877 = vmatprep.mubr.f32.mxu0 0.0
  %878 = vmatmul.mubr.f32.gmra.mxu0 %v698
  %v879 = vpop.f32.mrf.mxu0
  %v880 = vadd.f32 0.0, %v879
  %v881 = vpop.f32.mrf.mxu0
  %882 = vmatprep.mubr.f32.mxu0 0.0
  %883 = vmatmul.mubr.f32.gmra.mxu0 %v701
  %v884 = vpop.f32.mrf.mxu0
  %v885 = vadd.f32 0.0, %v884
  %v886 = vpop.f32.mrf.mxu0
  %887 = vmatprep.mubr.f32.mxu0 0.0
  %888 = vmatmul.mubr.f32.gmra.mxu0 %v704
  %v889 = vpop.f32.mrf.mxu0
  %v890 = vadd.f32 0.0, %v889
  %v891 = vpop.f32.mrf.mxu0
  %892 = vmatprep.mubr.f32.mxu0 0.0
  %893 = vmatmul.mubr.f32.gmra.mxu0 %v707
  %v894 = vpop.f32.mrf.mxu0
  %v895 = vadd.f32 0.0, %v894
  %v896 = vpop.f32.mrf.mxu0
  %897 = vmatprep.mubr.f32.mxu0 0.0
  %898 = vmatmul.mubr.f32.gmra.mxu0 %v710
  %v899 = vpop.f32.mrf.mxu0
  %v900 = vadd.f32 0.0, %v899
  %v901 = vpop.f32.mrf.mxu0
  %902 = vmatprep.mubr.f32.mxu0 0.0
  %903 = vmatmul.mubr.f32.gmra.mxu0 %v713
  %v904 = vpop.f32.mrf.mxu0
  %v905 = vadd.f32 0.0, %v904
  %v906 = vpop.f32.mrf.mxu0
  %907 = vmatprep.mubr.f32.mxu0 0.0
  %908 = vmatmul.mubr.f32.gmra.mxu0 %v716
  %v909 = vpop.f32.mrf.mxu0
  %v910 = vadd.f32 0.0, %v909
  %v911 = vpop.f32.mrf.mxu0
  %912 = vmatprep.mubr.f32.mxu0 0.0
  %913 = vmatmul.mubr.f32.gmra.mxu0 %v719
  %v914 = vpop.f32.mrf.mxu0
  %v915 = vadd.f32 0.0, %v914
  %v916 = vpop.f32.mrf.mxu0
  %917 = vmatprep.mubr.f32.mxu0 0.0
  %918 = vmatmul.mubr.f32.gmra.mxu0 %v722
  %v919 = vpop.f32.mrf.mxu0
  %v920 = vadd.f32 0.0, %v919
  %v921 = vpop.f32.mrf.mxu0
  %922 = vmatprep.mubr.f32.mxu0 0.0
  %923 = vmatmul.mubr.f32.gmra.mxu0 %v725
  %v924 = vpop.f32.mrf.mxu0
  %v925 = vadd.f32 0.0, %v924
  %v926 = vpop.f32.mrf.mxu0
  %927 = vmatprep.mubr.f32.mxu0 0.0
  %928 = vmatmul.mubr.f32.gmra.mxu0 %v728
  %v929 = vpop.f32.mrf.mxu0
  %v930 = vadd.f32 0.0, %v929
  %v931 = vpop.f32.mrf.mxu0
  %932 = vmatprep.mubr.f32.mxu0 0.0
  %933 = vmatmul.mubr.f32.gmra.mxu0 %v731
  %v934 = vpop.f32.mrf.mxu0
  %v935 = vadd.f32 0.0, %v934
  %v936 = vpop.f32.mrf.mxu0
  %937 = vmatprep.mubr.f32.mxu0 0.0
  %938 = vmatmul.mubr.f32.gmra.mxu0 %v734
  %v939 = vpop.f32.mrf.mxu0
  %v940 = vadd.f32 0.0, %v939
  %v941 = vpop.f32.mrf.mxu0
  %942 = vmatprep.mubr.f32.mxu0 0.0
  %943 = vmatmul.mubr.f32.gmra.mxu0 %v737
  %v944 = vpop.f32.mrf.mxu0
  %v945 = vadd.f32 0.0, %v944
  %v946 = vpop.f32.mrf.mxu0
  %947 = vmatprep.mubr.f32.mxu0 0.0
  %948 = vmatmul.mubr.f32.gmra.mxu0 %v740
  %v949 = vpop.f32.mrf.mxu0
  %v950 = vadd.f32 0.0, %v949
  %v951 = vpop.f32.mrf.mxu0
  %952 = vmatprep.mubr.f32.mxu0 0.0
  %953 = vmatmul.mubr.f32.gmra.mxu0 %v743
  %v954 = vpop.f32.mrf.mxu0
  %v955 = vadd.f32 0.0, %v954
  %v956 = vpop.f32.mrf.mxu0
  %957 = vmatprep.mubr.f32.mxu0 0.0
  %958 = vmatmul.mubr.f32.gmra.mxu0 %v746
  %v959 = vpop.f32.mrf.mxu0
  %v960 = vadd.f32 0.0, %v959
  %v961 = vpop.f32.mrf.mxu0
  %962 = vmatprep.mubr.f32.mxu0 0.0
  %963 = vmatmul.mubr.f32.gmra.mxu0 %v749
  %v964 = vpop.f32.mrf.mxu0
  %v965 = vadd.f32 0.0, %v964
  %v966 = vpop.f32.mrf.mxu0
  %967 = vmatprep.mubr.f32.mxu0 0.0
  %968 = vmatmul.mubr.f32.gmra.mxu0 %v752
  %v969 = vpop.f32.mrf.mxu0
  %v970 = vadd.f32 0.0, %v969
  %v971 = vpop.f32.mrf.mxu0
  %972 = vmatprep.mubr.f32.mxu0 0.0
  %973 = vmatmul.mubr.f32.gmra.mxu0 %v755
  %v974 = vpop.f32.mrf.mxu0
  %v975 = vadd.f32 0.0, %v974
  %v976 = vpop.f32.mrf.mxu0
  %977 = vmatprep.mubr.f32.mxu0 0.0
  %978 = vmatmul.mubr.f32.gmra.mxu0 %v758
  %v979 = vpop.f32.mrf.mxu0
  %v980 = vadd.f32 0.0, %v979
  %v981 = vpop.f32.mrf.mxu0
  %982 = vmatprep.mubr.f32.mxu0 0.0
  %983 = vmatmul.mubr.f32.gmra.mxu0 %v761
  %v984 = vpop.f32.mrf.mxu0
  %v985 = vadd.f32 0.0, %v984
  %v986 = vpop.f32.mrf.mxu0
  %987 = vdwg.mxu0
  %v989 = vsel %vm666, %v634, 0
  %v992 = vsel %vm666, %v635, 0
  %v995 = vsel %vm666, %v636, 0
  %v998 = vsel %vm666, %v637, 0
  %v1001 = vsel %vm666, %v638, 0
  %v1004 = vsel %vm666, %v639, 0
  %v1007 = vsel %vm666, %v640, 0
  %v1010 = vsel %vm666, %v641, 0
  %v1013 = vsel %vm666, %v642, 0
  %v1016 = vsel %vm666, %v643, 0
  %v1019 = vsel %vm666, %v644, 0
  %v1022 = vsel %vm666, %v645, 0
  %v1025 = vsel %vm666, %v646, 0
  %v1028 = vsel %vm666, %v647, 0
  %v1031 = vsel %vm666, %v648, 0
  %v1034 = vsel %vm666, %v649, 0
  %v1037 = vsel %vm666, %v650, 0
  %v1040 = vsel %vm666, %v651, 0
  %v1043 = vsel %vm666, %v652, 0
  %v1046 = vsel %vm666, %v653, 0
  %v1049 = vsel %vm666, %v654, 0
  %v1052 = vsel %vm666, %v655, 0
  %v1055 = vsel %vm666, %v656, 0
  %v1058 = vsel %vm666, %v657, 0
  %v1061 = vsel %vm666, %v658, 0
  %v1064 = vsel %vm666, %v659, 0
  %v1067 = vsel %vm666, %v660, 0
  %v1070 = vsel %vm666, %v661, 0
  %v1073 = vsel %vm666, %v662, 0
  %v1076 = vsel %vm666, %v663, 0
  %v1079 = vsel %vm666, %v664, 0
  %v1082 = vsel %vm666, %v665, 0
  %1084 = vmatprep.subr.mxu0 0.0
  %1085 = vmatpush1.msra.mxu0 0.0
  %1086 = vmatprep.subr.mxu0 0.0
  %1087 = vmatpush1.msra.mxu0 0.0
  %1088 = vmatprep.subr.mxu0 0.0
  %1089 = vmatpush1.msra.mxu0 0.0
  %1090 = vmatprep.subr.mxu0 0.0
  %1091 = vmatpush1.msra.mxu0 0.0
  %1092 = vmatprep.subr.mxu0 0.0
  %1093 = vmatpush1.msra.mxu0 0.0
  %1094 = vmatprep.subr.mxu0 0.0
  %1095 = vmatpush1.msra.mxu0 0.0
  %1096 = vmatprep.subr.mxu0 0.0
  %1097 = vmatpush1.msra.mxu0 0.0
  %1098 = vmatprep.subr.mxu0 0.0
  %1099 = vmatpush1.msra.mxu0 0.0
  %1100 = vmatprep.subr.mxu0 0.0
  %1101 = vmatpush1.msra.mxu0 %v215
  %1102 = vmatprep.subr.mxu0 0.0
  %1103 = vmatpush1.msra.mxu0 %v214
  %1104 = vmatprep.subr.mxu0 0.0
  %1105 = vmatpush1.msra.mxu0 %v213
  %1106 = vmatprep.subr.mxu0 0.0
  %1107 = vmatpush1.msra.mxu0 %v212
  %1108 = vmatprep.subr.mxu0 0.0
  %1109 = vmatpush1.msra.mxu0 %v211
  %1110 = vmatprep.subr.mxu0 0.0
  %1111 = vmatpush1.msra.mxu0 %v210
  %1112 = vmatprep.subr.mxu0 0.0
  %1113 = vmatpush1.msra.mxu0 %v209
  %1114 = vmatprep.subr.mxu0 0.0
  %1115 = vmatpush1.msra.mxu0 %v208
  %1116 = vmatprep.subr.mxu0 0.0
  %1117 = vmatpush2.msra.mxu0 0.0
  %1118 = vmatprep.subr.mxu0 0.0
  %1119 = vmatpush2.msra.mxu0 0.0
  %1120 = vmatprep.subr.mxu0 0.0
  %1121 = vmatpush2.msra.mxu0 0.0
  %1122 = vmatprep.subr.mxu0 0.0
  %1123 = vmatpush2.msra.mxu0 0.0
  %1124 = vmatprep.subr.mxu0 0.0
  %1125 = vmatpush2.msra.mxu0 0.0
  %1126 = vmatprep.subr.mxu0 0.0
  %1127 = vmatpush2.msra.mxu0 0.0
  %1128 = vmatprep.subr.mxu0 0.0
  %1129 = vmatpush2.msra.mxu0 0.0
  %1130 = vmatprep.subr.mxu0 0.0
  %1131 = vmatpush2.msra.mxu0 0.0
  %1132 = vmatprep.subr.mxu0 0.0
  %1133 = vmatpush2.msra.mxu0 0.0
  %1134 = vmatprep.subr.mxu0 0.0
  %1135 = vmatpush2.msra.mxu0 0.0
  %1136 = vmatprep.subr.mxu0 0.0
  %1137 = vmatpush2.msra.mxu0 0.0
  %1138 = vmatprep.subr.mxu0 0.0
  %1139 = vmatpush2.msra.mxu0 0.0
  %1140 = vmatprep.subr.mxu0 0.0
  %1141 = vmatpush2.msra.mxu0 0.0
  %1142 = vmatprep.subr.mxu0 0.0
  %1143 = vmatpush2.msra.mxu0 0.0
  %1144 = vmatprep.subr.mxu0 0.0
  %1145 = vmatpush2.msra.mxu0 0.0
  %1146 = vmatprep.subr.mxu0 0.0
  %1147 = vmatpush2.msra.mxu0 0.0
  %1148 = vmatprep.mubr.f32.mxu0 0.0
  %1149 = vmatmul.mubr.f32.gmra.mxu0 %v989
  %v1150 = vpop.f32.mrf.mxu0
  %v1151 = vadd.f32 0.0, %v1150
  %v1152 = vpop.f32.mrf.mxu0
  %1153 = vmatprep.mubr.f32.mxu0 0.0
  %1154 = vmatmul.mubr.f32.gmra.mxu0 %v992
  %v1155 = vpop.f32.mrf.mxu0
  %v1156 = vadd.f32 0.0, %v1155
  %v1157 = vpop.f32.mrf.mxu0
  %1158 = vmatprep.mubr.f32.mxu0 0.0
  %1159 = vmatmul.mubr.f32.gmra.mxu0 %v995
  %v1160 = vpop.f32.mrf.mxu0
  %v1161 = vadd.f32 0.0, %v1160
  %v1162 = vpop.f32.mrf.mxu0
  %1163 = vmatprep.mubr.f32.mxu0 0.0
  %1164 = vmatmul.mubr.f32.gmra.mxu0 %v998
  %v1165 = vpop.f32.mrf.mxu0
  %v1166 = vadd.f32 0.0, %v1165
  %v1167 = vpop.f32.mrf.mxu0
  %1168 = vmatprep.mubr.f32.mxu0 0.0
  %1169 = vmatmul.mubr.f32.gmra.mxu0 %v1001
  %v1170 = vpop.f32.mrf.mxu0
  %v1171 = vadd.f32 0.0, %v1170
  %v1172 = vpop.f32.mrf.mxu0
  %1173 = vmatprep.mubr.f32.mxu0 0.0
  %1174 = vmatmul.mubr.f32.gmra.mxu0 %v1004
  %v1175 = vpop.f32.mrf.mxu0
  %v1176 = vadd.f32 0.0, %v1175
  %v1177 = vpop.f32.mrf.mxu0
  %1178 = vmatprep.mubr.f32.mxu0 0.0
  %1179 = vmatmul.mubr.f32.gmra.mxu0 %v1007
  %v1180 = vpop.f32.mrf.mxu0
  %v1181 = vadd.f32 0.0, %v1180
  %v1182 = vpop.f32.mrf.mxu0
  %1183 = vmatprep.mubr.f32.mxu0 0.0
  %1184 = vmatmul.mubr.f32.gmra.mxu0 %v1010
  %v1185 = vpop.f32.mrf.mxu0
  %v1186 = vadd.f32 0.0, %v1185
  %v1187 = vpop.f32.mrf.mxu0
  %1188 = vmatprep.mubr.f32.mxu0 0.0
  %1189 = vmatmul.mubr.f32.gmra.mxu0 %v1013
  %v1190 = vpop.f32.mrf.mxu0
  %v1191 = vadd.f32 0.0, %v1190
  %v1192 = vpop.f32.mrf.mxu0
  %1193 = vmatprep.mubr.f32.mxu0 0.0
  %1194 = vmatmul.mubr.f32.gmra.mxu0 %v1016
  %v1195 = vpop.f32.mrf.mxu0
  %v1196 = vadd.f32 0.0, %v1195
  %v1197 = vpop.f32.mrf.mxu0
  %1198 = vmatprep.mubr.f32.mxu0 0.0
  %1199 = vmatmul.mubr.f32.gmra.mxu0 %v1019
  %v1200 = vpop.f32.mrf.mxu0
  %v1201 = vadd.f32 0.0, %v1200
  %v1202 = vpop.f32.mrf.mxu0
  %1203 = vmatprep.mubr.f32.mxu0 0.0
  %1204 = vmatmul.mubr.f32.gmra.mxu0 %v1022
  %v1205 = vpop.f32.mrf.mxu0
  %v1206 = vadd.f32 0.0, %v1205
  %v1207 = vpop.f32.mrf.mxu0
  %1208 = vmatprep.mubr.f32.mxu0 0.0
  %1209 = vmatmul.mubr.f32.gmra.mxu0 %v1025
  %v1210 = vpop.f32.mrf.mxu0
  %v1211 = vadd.f32 0.0, %v1210
  %v1212 = vpop.f32.mrf.mxu0
  %1213 = vmatprep.mubr.f32.mxu0 0.0
  %1214 = vmatmul.mubr.f32.gmra.mxu0 %v1028
  %v1215 = vpop.f32.mrf.mxu0
  %v1216 = vadd.f32 0.0, %v1215
  %v1217 = vpop.f32.mrf.mxu0
  %1218 = vmatprep.mubr.f32.mxu0 0.0
  %1219 = vmatmul.mubr.f32.gmra.mxu0 %v1031
  %v1220 = vpop.f32.mrf.mxu0
  %v1221 = vadd.f32 0.0, %v1220
  %v1222 = vpop.f32.mrf.mxu0
  %1223 = vmatprep.mubr.f32.mxu0 0.0
  %1224 = vmatmul.mubr.f32.gmra.mxu0 %v1034
  %v1225 = vpop.f32.mrf.mxu0
  %v1226 = vadd.f32 0.0, %v1225
  %v1227 = vpop.f32.mrf.mxu0
  %1228 = vmatprep.mubr.f32.mxu0 0.0
  %1229 = vmatmul.mubr.f32.gmra.mxu0 %v1037
  %v1230 = vpop.f32.mrf.mxu0
  %v1231 = vadd.f32 0.0, %v1230
  %v1232 = vpop.f32.mrf.mxu0
  %1233 = vmatprep.mubr.f32.mxu0 0.0
  %1234 = vmatmul.mubr.f32.gmra.mxu0 %v1040
  %v1235 = vpop.f32.mrf.mxu0
  %v1236 = vadd.f32 0.0, %v1235
  %v1237 = vpop.f32.mrf.mxu0
  %1238 = vmatprep.mubr.f32.mxu0 0.0
  %1239 = vmatmul.mubr.f32.gmra.mxu0 %v1043
  %v1240 = vpop.f32.mrf.mxu0
  %v1241 = vadd.f32 0.0, %v1240
  %v1242 = vpop.f32.mrf.mxu0
  %1243 = vmatprep.mubr.f32.mxu0 0.0
  %1244 = vmatmul.mubr.f32.gmra.mxu0 %v1046
  %v1245 = vpop.f32.mrf.mxu0
  %v1246 = vadd.f32 0.0, %v1245
  %v1247 = vpop.f32.mrf.mxu0
  %1248 = vmatprep.mubr.f32.mxu0 0.0
  %1249 = vmatmul.mubr.f32.gmra.mxu0 %v1049
  %v1250 = vpop.f32.mrf.mxu0
  %v1251 = vadd.f32 0.0, %v1250
  %v1252 = vpop.f32.mrf.mxu0
  %1253 = vmatprep.mubr.f32.mxu0 0.0
  %1254 = vmatmul.mubr.f32.gmra.mxu0 %v1052
  %v1255 = vpop.f32.mrf.mxu0
  %v1256 = vadd.f32 0.0, %v1255
  %v1257 = vpop.f32.mrf.mxu0
  %1258 = vmatprep.mubr.f32.mxu0 0.0
  %1259 = vmatmul.mubr.f32.gmra.mxu0 %v1055
  %v1260 = vpop.f32.mrf.mxu0
  %v1261 = vadd.f32 0.0, %v1260
  %v1262 = vpop.f32.mrf.mxu0
  %1263 = vmatprep.mubr.f32.mxu0 0.0
  %1264 = vmatmul.mubr.f32.gmra.mxu0 %v1058
  %v1265 = vpop.f32.mrf.mxu0
  %v1266 = vadd.f32 0.0, %v1265
  %v1267 = vpop.f32.mrf.mxu0
  %1268 = vmatprep.mubr.f32.mxu0 0.0
  %1269 = vmatmul.mubr.f32.gmra.mxu0 %v1061
  %v1270 = vpop.f32.mrf.mxu0
  %v1271 = vadd.f32 0.0, %v1270
  %v1272 = vpop.f32.mrf.mxu0
  %1273 = vmatprep.mubr.f32.mxu0 0.0
  %1274 = vmatmul.mubr.f32.gmra.mxu0 %v1064
  %v1275 = vpop.f32.mrf.mxu0
  %v1276 = vadd.f32 0.0, %v1275
  %v1277 = vpop.f32.mrf.mxu0
  %1278 = vmatprep.mubr.f32.mxu0 0.0
  %1279 = vmatmul.mubr.f32.gmra.mxu0 %v1067
  %v1280 = vpop.f32.mrf.mxu0
  %v1281 = vadd.f32 0.0, %v1280
  %v1282 = vpop.f32.mrf.mxu0
  %1283 = vmatprep.mubr.f32.mxu0 0.0
  %1284 = vmatmul.mubr.f32.gmra.mxu0 %v1070
  %v1285 = vpop.f32.mrf.mxu0
  %v1286 = vadd.f32 0.0, %v1285
  %v1287 = vpop.f32.mrf.mxu0
  %1288 = vmatprep.mubr.f32.mxu0 0.0
  %1289 = vmatmul.mubr.f32.gmra.mxu0 %v1073
  %v1290 = vpop.f32.mrf.mxu0
  %v1291 = vadd.f32 0.0, %v1290
  %v1292 = vpop.f32.mrf.mxu0
  %1293 = vmatprep.mubr.f32.mxu0 0.0
  %1294 = vmatmul.mubr.f32.gmra.mxu0 %v1076
  %v1295 = vpop.f32.mrf.mxu0
  %v1296 = vadd.f32 0.0, %v1295
  %v1297 = vpop.f32.mrf.mxu0
  %1298 = vmatprep.mubr.f32.mxu0 0.0
  %1299 = vmatmul.mubr.f32.gmra.mxu0 %v1079
  %v1300 = vpop.f32.mrf.mxu0
  %v1301 = vadd.f32 0.0, %v1300
  %v1302 = vpop.f32.mrf.mxu0
  %1303 = vmatprep.mubr.f32.mxu0 0.0
  %1304 = vmatmul.mubr.f32.gmra.mxu0 %v1082
  %v1305 = vpop.f32.mrf.mxu0
  %v1306 = vadd.f32 0.0, %v1305
  %v1307 = vpop.f32.mrf.mxu0
  %1308 = vdwg.mxu0
  %v1309 = vld [vmem:[%s2] sm:$0xff]
  %v1310 = vld [vmem:[%s2 + $0x8] sm:$0xff]
  %v1311 = vld [vmem:[%s2 + $0x10] sm:$0xff]
  %v1312 = vld [vmem:[%s2 + $0x18] sm:$0xff]
  %v1313 = vld [vmem:[%s2 + $0x20] sm:$0xff]
  %v1314 = vld [vmem:[%s2 + $0x28] sm:$0xff]
  %v1315 = vld [vmem:[%s2 + $0x30] sm:$0xff]
  %v1316 = vld [vmem:[%s2 + $0x38] sm:$0xff]
  %v1317 = vld [vmem:[%s2 + $0x40] sm:$0xff]
  %v1318 = vld [vmem:[%s2 + $0x48] sm:$0xff]
  %v1319 = vld [vmem:[%s2 + $0x50] sm:$0xff]
  %v1320 = vld [vmem:[%s2 + $0x58] sm:$0xff]
  %v1321 = vld [vmem:[%s2 + $0x60] sm:$0xff]
  %v1322 = vld [vmem:[%s2 + $0x68] sm:$0xff]
  %v1323 = vld [vmem:[%s2 + $0x70] sm:$0xff]
  %v1324 = vld [vmem:[%s2 + $0x78] sm:$0xff]
  %v1325 = vld [vmem:[%s2 + $0x80] sm:$0xff]
  %v1326 = vld [vmem:[%s2 + $0x88] sm:$0xff]
  %v1327 = vld [vmem:[%s2 + $0x90] sm:$0xff]
  %v1328 = vld [vmem:[%s2 + $0x98] sm:$0xff]
  %v1329 = vld [vmem:[%s2 + $0xa0] sm:$0xff]
  %v1330 = vld [vmem:[%s2 + $0xa8] sm:$0xff]
  %v1331 = vld [vmem:[%s2 + $0xb0] sm:$0xff]
  %v1332 = vld [vmem:[%s2 + $0xb8] sm:$0xff]
  %v1333 = vld [vmem:[%s2 + $0xc0] sm:$0xff]
  %v1334 = vld [vmem:[%s2 + $0xc8] sm:$0xff]
  %v1335 = vld [vmem:[%s2 + $0xd0] sm:$0xff]
  %v1336 = vld [vmem:[%s2 + $0xd8] sm:$0xff]
  %v1337 = vld [vmem:[%s2 + $0xe0] sm:$0xff]
  %v1338 = vld [vmem:[%s2 + $0xe8] sm:$0xff]
  %v1339 = vld [vmem:[%s2 + $0xf0] sm:$0xff]
  %v1340 = vld [vmem:[%s2 + $0xf8] sm:$0xff]
  %v1341 = vadd.f32 %v1309, %v830
  %v1342 = vadd.f32 %v1310, %v835
  %v1343 = vadd.f32 %v1311, %v840
  %v1344 = vadd.f32 %v1312, %v845
  %v1345 = vadd.f32 %v1313, %v850
  %v1346 = vadd.f32 %v1314, %v855
  %v1347 = vadd.f32 %v1315, %v860
  %v1348 = vadd.f32 %v1316, %v865
  %v1349 = vadd.f32 %v1317, %v870
  %v1350 = vadd.f32 %v1318, %v875
  %v1351 = vadd.f32 %v1319, %v880
  %v1352 = vadd.f32 %v1320, %v885
  %v1353 = vadd.f32 %v1321, %v890
  %v1354 = vadd.f32 %v1322, %v895
  %v1355 = vadd.f32 %v1323, %v900
  %v1356 = vadd.f32 %v1324, %v905
  %v1357 = vadd.f32 %v1325, %v910
  %v1358 = vadd.f32 %v1326, %v915
  %v1359 = vadd.f32 %v1327, %v920
  %v1360 = vadd.f32 %v1328, %v925
  %v1361 = vadd.f32 %v1329, %v930
  %v1362 = vadd.f32 %v1330, %v935
  %v1363 = vadd.f32 %v1331, %v940
  %v1364 = vadd.f32 %v1332, %v945
  %v1365 = vadd.f32 %v1333, %v950
  %v1366 = vadd.f32 %v1334, %v955
  %v1367 = vadd.f32 %v1335, %v960
  %v1368 = vadd.f32 %v1336, %v965
  %v1369 = vadd.f32 %v1337, %v970
  %v1370 = vadd.f32 %v1338, %v975
  %v1371 = vadd.f32 %v1339, %v980
  %v1372 = vadd.f32 %v1340, %v985
  %v1373 = vadd.f32 %v1341, %v1151
  %v1374 = vadd.f32 %v1342, %v1156
  %v1375 = vadd.f32 %v1343, %v1161
  %v1376 = vadd.f32 %v1344, %v1166
  %v1377 = vadd.f32 %v1345, %v1171
  %v1378 = vadd.f32 %v1346, %v1176
  %v1379 = vadd.f32 %v1347, %v1181
  %v1380 = vadd.f32 %v1348, %v1186
  %v1381 = vadd.f32 %v1349, %v1191
  %v1382 = vadd.f32 %v1350, %v1196
  %v1383 = vadd.f32 %v1351, %v1201
  %v1384 = vadd.f32 %v1352, %v1206
  %v1385 = vadd.f32 %v1353, %v1211
  %v1386 = vadd.f32 %v1354, %v1216
  %v1387 = vadd.f32 %v1355, %v1221
  %v1388 = vadd.f32 %v1356, %v1226
  %v1389 = vadd.f32 %v1357, %v1231
  %v1390 = vadd.f32 %v1358, %v1236
  %v1391 = vadd.f32 %v1359, %v1241
  %v1392 = vadd.f32 %v1360, %v1246
  %v1393 = vadd.f32 %v1361, %v1251
  %v1394 = vadd.f32 %v1362, %v1256
  %v1395 = vadd.f32 %v1363, %v1261
  %v1396 = vadd.f32 %v1364, %v1266
  %v1397 = vadd.f32 %v1365, %v1271
  %v1398 = vadd.f32 %v1366, %v1276
  %v1399 = vadd.f32 %v1367, %v1281
  %v1400 = vadd.f32 %v1368, %v1286
  %v1401 = vadd.f32 %v1369, %v1291
  %v1402 = vadd.f32 %v1370, %v1296
  %v1403 = vadd.f32 %v1371, %v1301
  %v1404 = vadd.f32 %v1372, %v1306
  %v1405 = vsub.f32 0.0, %v1373
  %v1406 = vsub.f32 0.0, %v1374
  %v1407 = vsub.f32 0.0, %v1375
  %v1408 = vsub.f32 0.0, %v1376
  %v1409 = vsub.f32 0.0, %v1377
  %v1410 = vsub.f32 0.0, %v1378
  %v1411 = vsub.f32 0.0, %v1379
  %v1412 = vsub.f32 0.0, %v1380
  %v1413 = vsub.f32 0.0, %v1381
  %v1414 = vsub.f32 0.0, %v1382
  %v1415 = vsub.f32 0.0, %v1383
  %v1416 = vsub.f32 0.0, %v1384
  %v1417 = vsub.f32 0.0, %v1385
  %v1418 = vsub.f32 0.0, %v1386
  %v1419 = vsub.f32 0.0, %v1387
  %v1420 = vsub.f32 0.0, %v1388
  %v1421 = vsub.f32 0.0, %v1389
  %v1422 = vsub.f32 0.0, %v1390
  %v1423 = vsub.f32 0.0, %v1391
  %v1424 = vsub.f32 0.0, %v1392
  %v1425 = vsub.f32 0.0, %v1393
  %v1426 = vsub.f32 0.0, %v1394
  %v1427 = vsub.f32 0.0, %v1395
  %v1428 = vsub.f32 0.0, %v1396
  %v1429 = vsub.f32 0.0, %v1397
  %v1430 = vsub.f32 0.0, %v1398
  %v1431 = vsub.f32 0.0, %v1399
  %v1432 = vsub.f32 0.0, %v1400
  %v1433 = vsub.f32 0.0, %v1401
  %v1434 = vsub.f32 0.0, %v1402
  %v1435 = vsub.f32 0.0, %v1403
  %v1436 = vsub.f32 0.0, %v1404
  %v1437 = vmul.f32 %v1405, 1.442695
  %v1438 = vpow.pop %v1437
  %v1439 = vmul.f32 %v1406, 1.442695
  %v1440 = vpow.pop %v1439
  %v1441 = vmul.f32 %v1407, 1.442695
  %v1442 = vpow.pop %v1441
  %v1443 = vmul.f32 %v1408, 1.442695
  %v1444 = vpow.pop %v1443
  %v1445 = vmul.f32 %v1409, 1.442695
  %v1446 = vpow.pop %v1445
  %v1447 = vmul.f32 %v1410, 1.442695
  %v1448 = vpow.pop %v1447
  %v1449 = vmul.f32 %v1411, 1.442695
  %v1450 = vpow.pop %v1449
  %v1451 = vmul.f32 %v1412, 1.442695
  %v1452 = vpow.pop %v1451
  %v1453 = vmul.f32 %v1413, 1.442695
  %v1454 = vpow.pop %v1453
  %v1455 = vmul.f32 %v1414, 1.442695
  %v1456 = vpow.pop %v1455
  %v1457 = vmul.f32 %v1415, 1.442695
  %v1458 = vpow.pop %v1457
  %v1459 = vmul.f32 %v1416, 1.442695
  %v1460 = vpow.pop %v1459
  %v1461 = vmul.f32 %v1417, 1.442695
  %v1462 = vpow.pop %v1461
  %v1463 = vmul.f32 %v1418, 1.442695
  %v1464 = vpow.pop %v1463
  %v1465 = vmul.f32 %v1419, 1.442695
  %v1466 = vpow.pop %v1465
  %v1467 = vmul.f32 %v1420, 1.442695
  %v1468 = vpow.pop %v1467
  %v1469 = vmul.f32 %v1421, 1.442695
  %v1470 = vpow.pop %v1469
  %v1471 = vmul.f32 %v1422, 1.442695
  %v1472 = vpow.pop %v1471
  %v1473 = vmul.f32 %v1423, 1.442695
  %v1474 = vpow.pop %v1473
  %v1475 = vmul.f32 %v1424, 1.442695
  %v1476 = vpow.pop %v1475
  %v1477 = vmul.f32 %v1425, 1.442695
  %v1478 = vpow.pop %v1477
  %v1479 = vmul.f32 %v1426, 1.442695
  %v1480 = vpow.pop %v1479
  %v1481 = vmul.f32 %v1427, 1.442695
  %v1482 = vpow.pop %v1481
  %v1483 = vmul.f32 %v1428, 1.442695
  %v1484 = vpow.pop %v1483
  %v1485 = vmul.f32 %v1429, 1.442695
  %v1486 = vpow.pop %v1485
  %v1487 = vmul.f32 %v1430, 1.442695
  %v1488 = vpow.pop %v1487
  %v1489 = vmul.f32 %v1431, 1.442695
  %v1490 = vpow.pop %v1489
  %v1491 = vmul.f32 %v1432, 1.442695
  %v1492 = vpow.pop %v1491
  %v1493 = vmul.f32 %v1433, 1.442695
  %v1494 = vpow.pop %v1493
  %v1495 = vmul.f32 %v1434, 1.442695
  %v1496 = vpow.pop %v1495
  %v1497 = vmul.f32 %v1435, 1.442695
  %v1498 = vpow.pop %v1497
  %v1499 = vmul.f32 %v1436, 1.442695
  %v1500 = vpow.pop %v1499
  %v1501 = vadd.f32 %v1438, 1.0
  %v1502 = vadd.f32 %v1440, 1.0
  %v1503 = vadd.f32 %v1442, 1.0
  %v1504 = vadd.f32 %v1444, 1.0
  %v1505 = vadd.f32 %v1446, 1.0
  %v1506 = vadd.f32 %v1448, 1.0
  %v1507 = vadd.f32 %v1450, 1.0
  %v1508 = vadd.f32 %v1452, 1.0
  %v1509 = vadd.f32 %v1454, 1.0
  %v1510 = vadd.f32 %v1456, 1.0
  %v1511 = vadd.f32 %v1458, 1.0
  %v1512 = vadd.f32 %v1460, 1.0
  %v1513 = vadd.f32 %v1462, 1.0
  %v1514 = vadd.f32 %v1464, 1.0
  %v1515 = vadd.f32 %v1466, 1.0
  %v1516 = vadd.f32 %v1468, 1.0
  %v1517 = vadd.f32 %v1470, 1.0
  %v1518 = vadd.f32 %v1472, 1.0
  %v1519 = vadd.f32 %v1474, 1.0
  %v1520 = vadd.f32 %v1476, 1.0
  %v1521 = vadd.f32 %v1478, 1.0
  %v1522 = vadd.f32 %v1480, 1.0
  %v1523 = vadd.f32 %v1482, 1.0
  %v1524 = vadd.f32 %v1484, 1.0
  %v1525 = vadd.f32 %v1486, 1.0
  %v1526 = vadd.f32 %v1488, 1.0
  %v1527 = vadd.f32 %v1490, 1.0
  %v1528 = vadd.f32 %v1492, 1.0
  %v1529 = vadd.f32 %v1494, 1.0
  %v1530 = vadd.f32 %v1496, 1.0
  %v1531 = vadd.f32 %v1498, 1.0
  %v1532 = vadd.f32 %v1500, 1.0
  %v1533 = vrcp.pop %v1501
  %v1534 = vrcp.pop %v1502
  %v1535 = vrcp.pop %v1503
  %v1536 = vrcp.pop %v1504
  %v1537 = vrcp.pop %v1505
  %v1538 = vrcp.pop %v1506
  %v1539 = vrcp.pop %v1507
  %v1540 = vrcp.pop %v1508
  %v1541 = vrcp.pop %v1509
  %v1542 = vrcp.pop %v1510
  %v1543 = vrcp.pop %v1511
  %v1544 = vrcp.pop %v1512
  %v1545 = vrcp.pop %v1513
  %v1546 = vrcp.pop %v1514
  %v1547 = vrcp.pop %v1515
  %v1548 = vrcp.pop %v1516
  %v1549 = vrcp.pop %v1517
  %v1550 = vrcp.pop %v1518
  %v1551 = vrcp.pop %v1519
  %v1552 = vrcp.pop %v1520
  %v1553 = vrcp.pop %v1521
  %v1554 = vrcp.pop %v1522
  %v1555 = vrcp.pop %v1523
  %v1556 = vrcp.pop %v1524
  %v1557 = vrcp.pop %v1525
  %v1558 = vrcp.pop %v1526
  %v1559 = vrcp.pop %v1527
  %v1560 = vrcp.pop %v1528
  %v1561 = vrcp.pop %v1529
  %v1562 = vrcp.pop %v1530
  %v1563 = vrcp.pop %v1531
  %v1564 = vrcp.pop %v1532
  %v1565 = vmul.f32 %v1373, %v1533
  %v1566 = vmul.f32 %v1374, %v1534
  %v1567 = vmul.f32 %v1375, %v1535
  %v1568 = vmul.f32 %v1376, %v1536
  %v1569 = vmul.f32 %v1377, %v1537
  %v1570 = vmul.f32 %v1378, %v1538
  %v1571 = vmul.f32 %v1379, %v1539
  %v1572 = vmul.f32 %v1380, %v1540
  %v1573 = vmul.f32 %v1381, %v1541
  %v1574 = vmul.f32 %v1382, %v1542
  %v1575 = vmul.f32 %v1383, %v1543
  %v1576 = vmul.f32 %v1384, %v1544
  %v1577 = vmul.f32 %v1385, %v1545
  %v1578 = vmul.f32 %v1386, %v1546
  %v1579 = vmul.f32 %v1387, %v1547
  %v1580 = vmul.f32 %v1388, %v1548
  %v1581 = vmul.f32 %v1389, %v1549
  %v1582 = vmul.f32 %v1390, %v1550
  %v1583 = vmul.f32 %v1391, %v1551
  %v1584 = vmul.f32 %v1392, %v1552
  %v1585 = vmul.f32 %v1393, %v1553
  %v1586 = vmul.f32 %v1394, %v1554
  %v1587 = vmul.f32 %v1395, %v1555
  %v1588 = vmul.f32 %v1396, %v1556
  %v1589 = vmul.f32 %v1397, %v1557
  %v1590 = vmul.f32 %v1398, %v1558
  %v1591 = vmul.f32 %v1399, %v1559
  %v1592 = vmul.f32 %v1400, %v1560
  %v1593 = vmul.f32 %v1401, %v1561
  %v1594 = vmul.f32 %v1402, %v1562
  %v1595 = vmul.f32 %v1403, %v1563
  %v1596 = vmul.f32 %v1404, %v1564
  %v1597 = vpack.c.bf16 %v1566, %v1565
  %v1598 = vpack.c.bf16 %v1568, %v1567
  %v1599 = vpack.c.bf16 %v1570, %v1569
  %v1600 = vpack.c.bf16 %v1572, %v1571
  %v1601 = vpack.c.bf16 %v1574, %v1573
  %v1602 = vpack.c.bf16 %v1576, %v1575
  %v1603 = vpack.c.bf16 %v1578, %v1577
  %v1604 = vpack.c.bf16 %v1580, %v1579
  %v1605 = vpack.c.bf16 %v1582, %v1581
  %v1606 = vpack.c.bf16 %v1584, %v1583
  %v1607 = vpack.c.bf16 %v1586, %v1585
  %v1608 = vpack.c.bf16 %v1588, %v1587
  %v1609 = vpack.c.bf16 %v1590, %v1589
  %v1610 = vpack.c.bf16 %v1592, %v1591
  %v1611 = vpack.c.bf16 %v1594, %v1593
  %v1612 = vpack.c.bf16 %v1596, %v1595
  %v1613 = vld [vmem:[%s6] sm:$0xf]
  %v1614 = vld [vmem:[%s6 + $0x4] sm:$0xf]
  %v1615 = vld [vmem:[%s6 + $0x8] sm:$0xf]
  %v1616 = vld [vmem:[%s6 + $0xc] sm:$0xf]
  %v1617 = vld [vmem:[%s7] sm:$0x1]
  %v1619 = vlaneseq
  %v1620 = vshrl.u32 %v1619, 7
  %v1621 = vsub.s32 0, %v1620
  %v1622 = vrot.slane %v1617, %v1621
  %v1628 = vunpack.c.l.b16 %v1613
  %v1629 = vunpack.c.l.b16 %v1614
  %v1630 = vunpack.c.l.b16 %v1615
  %v1631 = vunpack.c.l.b16 %v1616
  %v1632 = vpack.c.b16 %v1629, %v1628
  %v1633 = vpack.c.b16 %v1631, %v1630
  %vm1636 = vcmask 261120
  %v1638 = vsel %vm1636, %v1597, 0
  %v1641 = vsel %vm1636, %v1598, 0
  %v1644 = vsel %vm1636, %v1599, 0
  %v1647 = vsel %vm1636, %v1600, 0
  %v1650 = vsel %vm1636, %v1601, 0
  %v1653 = vsel %vm1636, %v1602, 0
  %v1656 = vsel %vm1636, %v1603, 0
  %v1659 = vsel %vm1636, %v1604, 0
  %v1662 = vsel %vm1636, %v1605, 0
  %v1665 = vsel %vm1636, %v1606, 0
  %v1668 = vsel %vm1636, %v1607, 0
  %v1671 = vsel %vm1636, %v1608, 0
  %v1674 = vsel %vm1636, %v1609, 0
  %v1677 = vsel %vm1636, %v1610, 0
  %v1680 = vsel %vm1636, %v1611, 0
  %v1683 = vsel %vm1636, %v1612, 0
  %1685 = vmatprep.subr.bf16.mxu0 0
  %1686 = vmatpush1.bf16.msra.mxu0 0
  %1687 = vmatprep.subr.bf16.mxu0 0
  %1688 = vmatpush1.bf16.msra.mxu0 0
  %1689 = vmatprep.subr.bf16.mxu0 0
  %1690 = vmatpush1.bf16.msra.mxu0 0
  %1691 = vmatprep.subr.bf16.mxu0 0
  %1692 = vmatpush1.bf16.msra.mxu0 0
  %1693 = vmatprep.subr.bf16.mxu0 0
  %1694 = vmatpush1.bf16.msra.mxu0 0
  %1695 = vmatprep.subr.bf16.mxu0 0
  %1696 = vmatpush1.bf16.msra.mxu0 0
  %1697 = vmatprep.subr.bf16.mxu0 0
  %1698 = vmatpush1.bf16.msra.mxu0 %v1633
  %1699 = vmatprep.subr.bf16.mxu0 0
  %1700 = vmatpush1.bf16.msra.mxu0 %v1632
  %1701 = vmatprep.subr.bf16.mxu0 0
  %1702 = vmatpush2.bf16.msra.mxu0 0
  %1703 = vmatprep.subr.bf16.mxu0 0
  %1704 = vmatpush2.bf16.msra.mxu0 0
  %1705 = vmatprep.subr.bf16.mxu0 0
  %1706 = vmatpush2.bf16.msra.mxu0 0
  %1707 = vmatprep.subr.bf16.mxu0 0
  %1708 = vmatpush2.bf16.msra.mxu0 0
  %1709 = vmatprep.subr.bf16.mxu0 0
  %1710 = vmatpush2.bf16.msra.mxu0 0
  %1711 = vmatprep.subr.bf16.mxu0 0
  %1712 = vmatpush2.bf16.msra.mxu0 0
  %1713 = vmatprep.subr.bf16.mxu0 0
  %1714 = vmatpush2.bf16.msra.mxu0 0
  %1715 = vmatprep.subr.bf16.mxu0 0
  %1716 = vmatpush2.bf16.msra.mxu0 0
  %1717 = vmatprep.mubr.bf16.mxu0 0
  %1718 = vmatmul.mubr.bf16.gmra.mxu0 %v1638
  %v1719 = vpop.f32.mrf.mxu0
  %v1720 = vadd.f32 %v1622, %v1719
  %v1721 = vpop.f32.mrf.mxu0
  %v1722 = vpop.f32.mrf.mxu0
  %v1723 = vadd.f32 %v1622, %v1722
  %v1724 = vpop.f32.mrf.mxu0
  %1725 = vmatprep.mubr.bf16.mxu0 0
  %1726 = vmatmul.mubr.bf16.gmra.mxu0 %v1641
  %v1727 = vpop.f32.mrf.mxu0
  %v1728 = vadd.f32 %v1622, %v1727
  %v1729 = vpop.f32.mrf.mxu0
  %v1730 = vpop.f32.mrf.mxu0
  %v1731 = vadd.f32 %v1622, %v1730
  %v1732 = vpop.f32.mrf.mxu0
  %1733 = vmatprep.mubr.bf16.mxu0 0
  %1734 = vmatmul.mubr.bf16.gmra.mxu0 %v1644
  %v1735 = vpop.f32.mrf.mxu0
  %v1736 = vadd.f32 %v1622, %v1735
  %v1737 = vpop.f32.mrf.mxu0
  %v1738 = vpop.f32.mrf.mxu0
  %v1739 = vadd.f32 %v1622, %v1738
  %v1740 = vpop.f32.mrf.mxu0
  %1741 = vmatprep.mubr.bf16.mxu0 0
  %1742 = vmatmul.mubr.bf16.gmra.mxu0 %v1647
  %v1743 = vpop.f32.mrf.mxu0
  %v1744 = vadd.f32 %v1622, %v1743
  %v1745 = vpop.f32.mrf.mxu0
  %v1746 = vpop.f32.mrf.mxu0
  %v1747 = vadd.f32 %v1622, %v1746
  %v1748 = vpop.f32.mrf.mxu0
  %1749 = vmatprep.mubr.bf16.mxu0 0
  %1750 = vmatmul.mubr.bf16.gmra.mxu0 %v1650
  %v1751 = vpop.f32.mrf.mxu0
  %v1752 = vadd.f32 %v1622, %v1751
  %v1753 = vpop.f32.mrf.mxu0
  %v1754 = vpop.f32.mrf.mxu0
  %v1755 = vadd.f32 %v1622, %v1754
  %v1756 = vpop.f32.mrf.mxu0
  %1757 = vmatprep.mubr.bf16.mxu0 0
  %1758 = vmatmul.mubr.bf16.gmra.mxu0 %v1653
  %v1759 = vpop.f32.mrf.mxu0
  %v1760 = vadd.f32 %v1622, %v1759
  %v1761 = vpop.f32.mrf.mxu0
  %v1762 = vpop.f32.mrf.mxu0
  %v1763 = vadd.f32 %v1622, %v1762
  %v1764 = vpop.f32.mrf.mxu0
  %1765 = vmatprep.mubr.bf16.mxu0 0
  %1766 = vmatmul.mubr.bf16.gmra.mxu0 %v1656
  %v1767 = vpop.f32.mrf.mxu0
  %v1768 = vadd.f32 %v1622, %v1767
  %v1769 = vpop.f32.mrf.mxu0
  %v1770 = vpop.f32.mrf.mxu0
  %v1771 = vadd.f32 %v1622, %v1770
  %v1772 = vpop.f32.mrf.mxu0
  %1773 = vmatprep.mubr.bf16.mxu0 0
  %1774 = vmatmul.mubr.bf16.gmra.mxu0 %v1659
  %v1775 = vpop.f32.mrf.mxu0
  %v1776 = vadd.f32 %v1622, %v1775
  %v1777 = vpop.f32.mrf.mxu0
  %v1778 = vpop.f32.mrf.mxu0
  %v1779 = vadd.f32 %v1622, %v1778
  %v1780 = vpop.f32.mrf.mxu0
  %1781 = vmatprep.mubr.bf16.mxu0 0
  %1782 = vmatmul.mubr.bf16.gmra.mxu0 %v1662
  %v1783 = vpop.f32.mrf.mxu0
  %v1784 = vadd.f32 %v1622, %v1783
  %v1785 = vpop.f32.mrf.mxu0
  %v1786 = vpop.f32.mrf.mxu0
  %v1787 = vadd.f32 %v1622, %v1786
  %v1788 = vpop.f32.mrf.mxu0
  %1789 = vmatprep.mubr.bf16.mxu0 0
  %1790 = vmatmul.mubr.bf16.gmra.mxu0 %v1665
  %v1791 = vpop.f32.mrf.mxu0
  %v1792 = vadd.f32 %v1622, %v1791
  %v1793 = vpop.f32.mrf.mxu0
  %v1794 = vpop.f32.mrf.mxu0
  %v1795 = vadd.f32 %v1622, %v1794
  %v1796 = vpop.f32.mrf.mxu0
  %1797 = vmatprep.mubr.bf16.mxu0 0
  %1798 = vmatmul.mubr.bf16.gmra.mxu0 %v1668
  %v1799 = vpop.f32.mrf.mxu0
  %v1800 = vadd.f32 %v1622, %v1799
  %v1801 = vpop.f32.mrf.mxu0
  %v1802 = vpop.f32.mrf.mxu0
  %v1803 = vadd.f32 %v1622, %v1802
  %v1804 = vpop.f32.mrf.mxu0
  %1805 = vmatprep.mubr.bf16.mxu0 0
  %1806 = vmatmul.mubr.bf16.gmra.mxu0 %v1671
  %v1807 = vpop.f32.mrf.mxu0
  %v1808 = vadd.f32 %v1622, %v1807
  %v1809 = vpop.f32.mrf.mxu0
  %v1810 = vpop.f32.mrf.mxu0
  %v1811 = vadd.f32 %v1622, %v1810
  %v1812 = vpop.f32.mrf.mxu0
  %1813 = vmatprep.mubr.bf16.mxu0 0
  %1814 = vmatmul.mubr.bf16.gmra.mxu0 %v1674
  %v1815 = vpop.f32.mrf.mxu0
  %v1816 = vadd.f32 %v1622, %v1815
  %v1817 = vpop.f32.mrf.mxu0
  %v1818 = vpop.f32.mrf.mxu0
  %v1819 = vadd.f32 %v1622, %v1818
  %v1820 = vpop.f32.mrf.mxu0
  %1821 = vmatprep.mubr.bf16.mxu0 0
  %1822 = vmatmul.mubr.bf16.gmra.mxu0 %v1677
  %v1823 = vpop.f32.mrf.mxu0
  %v1824 = vadd.f32 %v1622, %v1823
  %v1825 = vpop.f32.mrf.mxu0
  %v1826 = vpop.f32.mrf.mxu0
  %v1827 = vadd.f32 %v1622, %v1826
  %v1828 = vpop.f32.mrf.mxu0
  %1829 = vmatprep.mubr.bf16.mxu0 0
  %1830 = vmatmul.mubr.bf16.gmra.mxu0 %v1680
  %v1831 = vpop.f32.mrf.mxu0
  %v1832 = vadd.f32 %v1622, %v1831
  %v1833 = vpop.f32.mrf.mxu0
  %v1834 = vpop.f32.mrf.mxu0
  %v1835 = vadd.f32 %v1622, %v1834
  %v1836 = vpop.f32.mrf.mxu0
  %1837 = vmatprep.mubr.bf16.mxu0 0
  %1838 = vmatmul.mubr.bf16.gmra.mxu0 %v1683
  %v1839 = vpop.f32.mrf.mxu0
  %v1840 = vadd.f32 %v1622, %v1839
  %v1841 = vpop.f32.mrf.mxu0
  %v1842 = vpop.f32.mrf.mxu0
  %v1843 = vadd.f32 %v1622, %v1842
  %v1844 = vpop.f32.mrf.mxu0
  %1845 = vdwg.mxu0
  %v1846 = vsub.f32 0.0, %v1720
  %v1847 = vsub.f32 0.0, %v1723
  %v1848 = vsub.f32 0.0, %v1728
  %v1849 = vsub.f32 0.0, %v1731
  %v1850 = vsub.f32 0.0, %v1736
  %v1851 = vsub.f32 0.0, %v1739
  %v1852 = vsub.f32 0.0, %v1744
  %v1853 = vsub.f32 0.0, %v1747
  %v1854 = vsub.f32 0.0, %v1752
  %v1855 = vsub.f32 0.0, %v1755
  %v1856 = vsub.f32 0.0, %v1760
  %v1857 = vsub.f32 0.0, %v1763
  %v1858 = vsub.f32 0.0, %v1768
  %v1859 = vsub.f32 0.0, %v1771
  %v1860 = vsub.f32 0.0, %v1776
  %v1861 = vsub.f32 0.0, %v1779
  %v1862 = vsub.f32 0.0, %v1784
  %v1863 = vsub.f32 0.0, %v1787
  %v1864 = vsub.f32 0.0, %v1792
  %v1865 = vsub.f32 0.0, %v1795
  %v1866 = vsub.f32 0.0, %v1800
  %v1867 = vsub.f32 0.0, %v1803
  %v1868 = vsub.f32 0.0, %v1808
  %v1869 = vsub.f32 0.0, %v1811
  %v1870 = vsub.f32 0.0, %v1816
  %v1871 = vsub.f32 0.0, %v1819
  %v1872 = vsub.f32 0.0, %v1824
  %v1873 = vsub.f32 0.0, %v1827
  %v1874 = vsub.f32 0.0, %v1832
  %v1875 = vsub.f32 0.0, %v1835
  %v1876 = vsub.f32 0.0, %v1840
  %v1877 = vsub.f32 0.0, %v1843
  %v1878 = vmul.f32 %v1846, 1.442695
  %v1879 = vpow.pop %v1878
  %v1880 = vmul.f32 %v1847, 1.442695
  %v1881 = vpow.pop %v1880
  %v1882 = vmul.f32 %v1848, 1.442695
  %v1883 = vpow.pop %v1882
  %v1884 = vmul.f32 %v1849, 1.442695
  %v1885 = vpow.pop %v1884
  %v1886 = vmul.f32 %v1850, 1.442695
  %v1887 = vpow.pop %v1886
  %v1888 = vmul.f32 %v1851, 1.442695
  %v1889 = vpow.pop %v1888
  %v1890 = vmul.f32 %v1852, 1.442695
  %v1891 = vpow.pop %v1890
  %v1892 = vmul.f32 %v1853, 1.442695
  %v1893 = vpow.pop %v1892
  %v1894 = vmul.f32 %v1854, 1.442695
  %v1895 = vpow.pop %v1894
  %v1896 = vmul.f32 %v1855, 1.442695
  %v1897 = vpow.pop %v1896
  %v1898 = vmul.f32 %v1856, 1.442695
  %v1899 = vpow.pop %v1898
  %v1900 = vmul.f32 %v1857, 1.442695
  %v1901 = vpow.pop %v1900
  %v1902 = vmul.f32 %v1858, 1.442695
  %v1903 = vpow.pop %v1902
  %v1904 = vmul.f32 %v1859, 1.442695
  %v1905 = vpow.pop %v1904
  %v1906 = vmul.f32 %v1860, 1.442695
  %v1907 = vpow.pop %v1906
  %v1908 = vmul.f32 %v1861, 1.442695
  %v1909 = vpow.pop %v1908
  %v1910 = vmul.f32 %v1862, 1.442695
  %v1911 = vpow.pop %v1910
  %v1912 = vmul.f32 %v1863, 1.442695
  %v1913 = vpow.pop %v1912
  %v1914 = vmul.f32 %v1864, 1.442695
  %v1915 = vpow.pop %v1914
  %v1916 = vmul.f32 %v1865, 1.442695
  %v1917 = vpow.pop %v1916
  %v1918 = vmul.f32 %v1866, 1.442695
  %v1919 = vpow.pop %v1918
  %v1920 = vmul.f32 %v1867, 1.442695
  %v1921 = vpow.pop %v1920
  %v1922 = vmul.f32 %v1868, 1.442695
  %v1923 = vpow.pop %v1922
  %v1924 = vmul.f32 %v1869, 1.442695
  %v1925 = vpow.pop %v1924
  %v1926 = vmul.f32 %v1870, 1.442695
  %v1927 = vpow.pop %v1926
  %v1928 = vmul.f32 %v1871, 1.442695
  %v1929 = vpow.pop %v1928
  %v1930 = vmul.f32 %v1872, 1.442695
  %v1931 = vpow.pop %v1930
  %v1932 = vmul.f32 %v1873, 1.442695
  %v1933 = vpow.pop %v1932
  %v1934 = vmul.f32 %v1874, 1.442695
  %v1935 = vpow.pop %v1934
  %v1936 = vmul.f32 %v1875, 1.442695
  %v1937 = vpow.pop %v1936
  %v1938 = vmul.f32 %v1876, 1.442695
  %v1939 = vpow.pop %v1938
  %v1940 = vmul.f32 %v1877, 1.442695
  %v1941 = vpow.pop %v1940
  %v1942 = vadd.f32 %v1879, 1.0
  %v1943 = vadd.f32 %v1881, 1.0
  %v1944 = vadd.f32 %v1883, 1.0
  %v1945 = vadd.f32 %v1885, 1.0
  %v1946 = vadd.f32 %v1887, 1.0
  %v1947 = vadd.f32 %v1889, 1.0
  %v1948 = vadd.f32 %v1891, 1.0
  %v1949 = vadd.f32 %v1893, 1.0
  %v1950 = vadd.f32 %v1895, 1.0
  %v1951 = vadd.f32 %v1897, 1.0
  %v1952 = vadd.f32 %v1899, 1.0
  %v1953 = vadd.f32 %v1901, 1.0
  %v1954 = vadd.f32 %v1903, 1.0
  %v1955 = vadd.f32 %v1905, 1.0
  %v1956 = vadd.f32 %v1907, 1.0
  %v1957 = vadd.f32 %v1909, 1.0
  %v1958 = vadd.f32 %v1911, 1.0
  %v1959 = vadd.f32 %v1913, 1.0
  %v1960 = vadd.f32 %v1915, 1.0
  %v1961 = vadd.f32 %v1917, 1.0
  %v1962 = vadd.f32 %v1919, 1.0
  %v1963 = vadd.f32 %v1921, 1.0
  %v1964 = vadd.f32 %v1923, 1.0
  %v1965 = vadd.f32 %v1925, 1.0
  %v1966 = vadd.f32 %v1927, 1.0
  %v1967 = vadd.f32 %v1929, 1.0
  %v1968 = vadd.f32 %v1931, 1.0
  %v1969 = vadd.f32 %v1933, 1.0
  %v1970 = vadd.f32 %v1935, 1.0
  %v1971 = vadd.f32 %v1937, 1.0
  %v1972 = vadd.f32 %v1939, 1.0
  %v1973 = vadd.f32 %v1941, 1.0
  %v1974 = vrcp.pop %v1942
  %v1975 = vrcp.pop %v1943
  %v1976 = vrcp.pop %v1944
  %v1977 = vrcp.pop %v1945
  %v1978 = vrcp.pop %v1946
  %v1979 = vrcp.pop %v1947
  %v1980 = vrcp.pop %v1948
  %v1981 = vrcp.pop %v1949
  %v1982 = vrcp.pop %v1950
  %v1983 = vrcp.pop %v1951
  %v1984 = vrcp.pop %v1952
  %v1985 = vrcp.pop %v1953
  %v1986 = vrcp.pop %v1954
  %v1987 = vrcp.pop %v1955
  %v1988 = vrcp.pop %v1956
  %v1989 = vrcp.pop %v1957
  %v1990 = vrcp.pop %v1958
  %v1991 = vrcp.pop %v1959
  %v1992 = vrcp.pop %v1960
  %v1993 = vrcp.pop %v1961
  %v1994 = vrcp.pop %v1962
  %v1995 = vrcp.pop %v1963
  %v1996 = vrcp.pop %v1964
  %v1997 = vrcp.pop %v1965
  %v1998 = vrcp.pop %v1966
  %v1999 = vrcp.pop %v1967
  %v2000 = vrcp.pop %v1968
  %v2001 = vrcp.pop %v1969
  %v2002 = vrcp.pop %v1970
  %v2003 = vrcp.pop %v1971
  %v2004 = vrcp.pop %v1972
  %v2005 = vrcp.pop %v1973
  %v2006 = vmul.f32 %v1720, %v1974
  %v2007 = vmul.f32 %v1723, %v1975
  %v2008 = vmul.f32 %v1728, %v1976
  %v2009 = vmul.f32 %v1731, %v1977
  %v2010 = vmul.f32 %v1736, %v1978
  %v2011 = vmul.f32 %v1739, %v1979
  %v2012 = vmul.f32 %v1744, %v1980
  %v2013 = vmul.f32 %v1747, %v1981
  %v2014 = vmul.f32 %v1752, %v1982
  %v2015 = vmul.f32 %v1755, %v1983
  %v2016 = vmul.f32 %v1760, %v1984
  %v2017 = vmul.f32 %v1763, %v1985
  %v2018 = vmul.f32 %v1768, %v1986
  %v2019 = vmul.f32 %v1771, %v1987
  %v2020 = vmul.f32 %v1776, %v1988
  %v2021 = vmul.f32 %v1779, %v1989
  %v2022 = vmul.f32 %v1784, %v1990
  %v2023 = vmul.f32 %v1787, %v1991
  %v2024 = vmul.f32 %v1792, %v1992
  %v2025 = vmul.f32 %v1795, %v1993
  %v2026 = vmul.f32 %v1800, %v1994
  %v2027 = vmul.f32 %v1803, %v1995
  %v2028 = vmul.f32 %v1808, %v1996
  %v2029 = vmul.f32 %v1811, %v1997
  %v2030 = vmul.f32 %v1816, %v1998
  %v2031 = vmul.f32 %v1819, %v1999
  %v2032 = vmul.f32 %v1824, %v2000
  %v2033 = vmul.f32 %v1827, %v2001
  %v2034 = vmul.f32 %v1832, %v2002
  %v2035 = vmul.f32 %v1835, %v2003
  %v2036 = vmul.f32 %v1840, %v2004
  %v2037 = vmul.f32 %v1843, %v2005
  %v2038 = vpack.c.bf16 %v2007, %v2006
  %v2039 = vpack.c.bf16 %v2009, %v2008
  %v2040 = vpack.c.bf16 %v2011, %v2010
  %v2041 = vpack.c.bf16 %v2013, %v2012
  %v2042 = vpack.c.bf16 %v2015, %v2014
  %v2043 = vpack.c.bf16 %v2017, %v2016
  %v2044 = vpack.c.bf16 %v2019, %v2018
  %v2045 = vpack.c.bf16 %v2021, %v2020
  %v2046 = vpack.c.bf16 %v2023, %v2022
  %v2047 = vpack.c.bf16 %v2025, %v2024
  %v2048 = vpack.c.bf16 %v2027, %v2026
  %v2049 = vpack.c.bf16 %v2029, %v2028
  %v2050 = vpack.c.bf16 %v2031, %v2030
  %v2051 = vpack.c.bf16 %v2033, %v2032
  %v2052 = vpack.c.bf16 %v2035, %v2034
  %v2053 = vpack.c.bf16 %v2037, %v2036
  %v2054 = vld [vmem:[%s8] sm:$0xf]
  %v2055 = vld [vmem:[%s8 + $0x4] sm:$0xf]
  %v2056 = vld [vmem:[%s8 + $0x8] sm:$0xf]
  %v2057 = vld [vmem:[%s8 + $0xc] sm:$0xf]
  %v2058 = vld [vmem:[%s8 + $0x10] sm:$0xf]
  %v2059 = vld [vmem:[%s8 + $0x14] sm:$0xf]
  %v2060 = vld [vmem:[%s8 + $0x18] sm:$0xf]
  %v2061 = vld [vmem:[%s8 + $0x1c] sm:$0xf]
  %v2062 = vld [vmem:[%s9] sm:$0x1]
  %v2064 = vlaneseq
  %v2065 = vshrl.u32 %v2064, 7
  %v2066 = vsub.s32 0, %v2065
  %v2067 = vrot.slane %v2062, %v2066
  %v2077 = vunpack.c.l.b16 %v2054
  %v2078 = vunpack.c.l.b16 %v2055
  %v2079 = vunpack.c.l.b16 %v2056
  %v2080 = vunpack.c.l.b16 %v2057
  %v2081 = vunpack.c.l.b16 %v2058
  %v2082 = vunpack.c.l.b16 %v2059
  %v2083 = vunpack.c.l.b16 %v2060
  %v2084 = vunpack.c.l.b16 %v2061
  %v2085 = vpack.c.b16 %v2078, %v2077
  %v2086 = vpack.c.b16 %v2080, %v2079
  %v2087 = vpack.c.b16 %v2082, %v2081
  %v2088 = vpack.c.b16 %v2084, %v2083
  %v2094 = vsel %vm666, %v2038, 0
  %v2097 = vsel %vm666, %v2039, 0
  %v2100 = vsel %vm666, %v2040, 0
  %v2103 = vsel %vm666, %v2041, 0
  %v2106 = vsel %vm666, %v2042, 0
  %v2109 = vsel %vm666, %v2043, 0
  %v2112 = vsel %vm666, %v2044, 0
  %v2115 = vsel %vm666, %v2045, 0
  %v2118 = vsel %vm666, %v2046, 0
  %v2121 = vsel %vm666, %v2047, 0
  %v2124 = vsel %vm666, %v2048, 0
  %v2127 = vsel %vm666, %v2049, 0
  %v2130 = vsel %vm666, %v2050, 0
  %v2133 = vsel %vm666, %v2051, 0
  %v2136 = vsel %vm666, %v2052, 0
  %v2139 = vsel %vm666, %v2053, 0
  %2141 = vmatprep.subr.bf16.mxu0 0
  %2142 = vmatpush1.bf16.msra.mxu0 0
  %2143 = vmatprep.subr.bf16.mxu0 0
  %2144 = vmatpush1.bf16.msra.mxu0 0
  %2145 = vmatprep.subr.bf16.mxu0 0
  %2146 = vmatpush1.bf16.msra.mxu0 0
  %2147 = vmatprep.subr.bf16.mxu0 0
  %2148 = vmatpush1.bf16.msra.mxu0 0
  %2149 = vmatprep.subr.bf16.mxu0 0
  %2150 = vmatpush1.bf16.msra.mxu0 %v2088
  %2151 = vmatprep.subr.bf16.mxu0 0
  %2152 = vmatpush1.bf16.msra.mxu0 %v2087
  %2153 = vmatprep.subr.bf16.mxu0 0
  %2154 = vmatpush1.bf16.msra.mxu0 %v2086
  %2155 = vmatprep.subr.bf16.mxu0 0
  %2156 = vmatpush1.bf16.msra.mxu0 %v2085
  %2157 = vmatprep.subr.bf16.mxu0 0
  %2158 = vmatpush2.bf16.msra.mxu0 0
  %2159 = vmatprep.subr.bf16.mxu0 0
  %2160 = vmatpush2.bf16.msra.mxu0 0
  %2161 = vmatprep.subr.bf16.mxu0 0
  %2162 = vmatpush2.bf16.msra.mxu0 0
  %2163 = vmatprep.subr.bf16.mxu0 0
  %2164 = vmatpush2.bf16.msra.mxu0 0
  %2165 = vmatprep.subr.bf16.mxu0 0
  %2166 = vmatpush2.bf16.msra.mxu0 0
  %2167 = vmatprep.subr.bf16.mxu0 0
  %2168 = vmatpush2.bf16.msra.mxu0 0
  %2169 = vmatprep.subr.bf16.mxu0 0
  %2170 = vmatpush2.bf16.msra.mxu0 0
  %2171 = vmatprep.subr.bf16.mxu0 0
  %2172 = vmatpush2.bf16.msra.mxu0 0
  %2173 = vmatprep.mubr.bf16.mxu0 0
  %2174 = vmatmul.mubr.bf16.gmra.mxu0 %v2094
  %v2175 = vpop.f32.mrf.mxu0
  %v2176 = vadd.f32 %v2067, %v2175
  %v2177 = vpop.f32.mrf.mxu0
  %v2178 = vpop.f32.mrf.mxu0
  %v2179 = vadd.f32 %v2067, %v2178
  %v2180 = vpop.f32.mrf.mxu0
  %2181 = vmatprep.mubr.bf16.mxu0 0
  %2182 = vmatmul.mubr.bf16.gmra.mxu0 %v2097
  %v2183 = vpop.f32.mrf.mxu0
  %v2184 = vadd.f32 %v2067, %v2183
  %v2185 = vpop.f32.mrf.mxu0
  %v2186 = vpop.f32.mrf.mxu0
  %v2187 = vadd.f32 %v2067, %v2186
  %v2188 = vpop.f32.mrf.mxu0
  %2189 = vmatprep.mubr.bf16.mxu0 0
  %2190 = vmatmul.mubr.bf16.gmra.mxu0 %v2100
  %v2191 = vpop.f32.mrf.mxu0
  %v2192 = vadd.f32 %v2067, %v2191
  %v2193 = vpop.f32.mrf.mxu0
  %v2194 = vpop.f32.mrf.mxu0
  %v2195 = vadd.f32 %v2067, %v2194
  %v2196 = vpop.f32.mrf.mxu0
  %2197 = vmatprep.mubr.bf16.mxu0 0
  %2198 = vmatmul.mubr.bf16.gmra.mxu0 %v2103
  %v2199 = vpop.f32.mrf.mxu0
  %v2200 = vadd.f32 %v2067, %v2199
  %v2201 = vpop.f32.mrf.mxu0
  %v2202 = vpop.f32.mrf.mxu0
  %v2203 = vadd.f32 %v2067, %v2202
  %v2204 = vpop.f32.mrf.mxu0
  %2205 = vmatprep.mubr.bf16.mxu0 0
  %2206 = vmatmul.mubr.bf16.gmra.mxu0 %v2106
  %v2207 = vpop.f32.mrf.mxu0
  %v2208 = vadd.f32 %v2067, %v2207
  %v2209 = vpop.f32.mrf.mxu0
  %v2210 = vpop.f32.mrf.mxu0
  %v2211 = vadd.f32 %v2067, %v2210
  %v2212 = vpop.f32.mrf.mxu0
  %2213 = vmatprep.mubr.bf16.mxu0 0
  %2214 = vmatmul.mubr.bf16.gmra.mxu0 %v2109
  %v2215 = vpop.f32.mrf.mxu0
  %v2216 = vadd.f32 %v2067, %v2215
  %v2217 = vpop.f32.mrf.mxu0
  %v2218 = vpop.f32.mrf.mxu0
  %v2219 = vadd.f32 %v2067, %v2218
  %v2220 = vpop.f32.mrf.mxu0
  %2221 = vmatprep.mubr.bf16.mxu0 0
  %2222 = vmatmul.mubr.bf16.gmra.mxu0 %v2112
  %v2223 = vpop.f32.mrf.mxu0
  %v2224 = vadd.f32 %v2067, %v2223
  %v2225 = vpop.f32.mrf.mxu0
  %v2226 = vpop.f32.mrf.mxu0
  %v2227 = vadd.f32 %v2067, %v2226
  %v2228 = vpop.f32.mrf.mxu0
  %2229 = vmatprep.mubr.bf16.mxu0 0
  %2230 = vmatmul.mubr.bf16.gmra.mxu0 %v2115
  %v2231 = vpop.f32.mrf.mxu0
  %v2232 = vadd.f32 %v2067, %v2231
  %v2233 = vpop.f32.mrf.mxu0
  %v2234 = vpop.f32.mrf.mxu0
  %v2235 = vadd.f32 %v2067, %v2234
  %v2236 = vpop.f32.mrf.mxu0
  %2237 = vmatprep.mubr.bf16.mxu0 0
  %2238 = vmatmul.mubr.bf16.gmra.mxu0 %v2118
  %v2239 = vpop.f32.mrf.mxu0
  %v2240 = vadd.f32 %v2067, %v2239
  %v2241 = vpop.f32.mrf.mxu0
  %v2242 = vpop.f32.mrf.mxu0
  %v2243 = vadd.f32 %v2067, %v2242
  %v2244 = vpop.f32.mrf.mxu0
  %2245 = vmatprep.mubr.bf16.mxu0 0
  %2246 = vmatmul.mubr.bf16.gmra.mxu0 %v2121
  %v2247 = vpop.f32.mrf.mxu0
  %v2248 = vadd.f32 %v2067, %v2247
  %v2249 = vpop.f32.mrf.mxu0
  %v2250 = vpop.f32.mrf.mxu0
  %v2251 = vadd.f32 %v2067, %v2250
  %v2252 = vpop.f32.mrf.mxu0
  %2253 = vmatprep.mubr.bf16.mxu0 0
  %2254 = vmatmul.mubr.bf16.gmra.mxu0 %v2124
  %v2255 = vpop.f32.mrf.mxu0
  %v2256 = vadd.f32 %v2067, %v2255
  %v2257 = vpop.f32.mrf.mxu0
  %v2258 = vpop.f32.mrf.mxu0
  %v2259 = vadd.f32 %v2067, %v2258
  %v2260 = vpop.f32.mrf.mxu0
  %2261 = vmatprep.mubr.bf16.mxu0 0
  %2262 = vmatmul.mubr.bf16.gmra.mxu0 %v2127
  %v2263 = vpop.f32.mrf.mxu0
  %v2264 = vadd.f32 %v2067, %v2263
  %v2265 = vpop.f32.mrf.mxu0
  %v2266 = vpop.f32.mrf.mxu0
  %v2267 = vadd.f32 %v2067, %v2266
  %v2268 = vpop.f32.mrf.mxu0
  %2269 = vmatprep.mubr.bf16.mxu0 0
  %2270 = vmatmul.mubr.bf16.gmra.mxu0 %v2130
  %v2271 = vpop.f32.mrf.mxu0
  %v2272 = vadd.f32 %v2067, %v2271
  %v2273 = vpop.f32.mrf.mxu0
  %v2274 = vpop.f32.mrf.mxu0
  %v2275 = vadd.f32 %v2067, %v2274
  %v2276 = vpop.f32.mrf.mxu0
  %2277 = vmatprep.mubr.bf16.mxu0 0
  %2278 = vmatmul.mubr.bf16.gmra.mxu0 %v2133
  %v2279 = vpop.f32.mrf.mxu0
  %v2280 = vadd.f32 %v2067, %v2279
  %v2281 = vpop.f32.mrf.mxu0
  %v2282 = vpop.f32.mrf.mxu0
  %v2283 = vadd.f32 %v2067, %v2282
  %v2284 = vpop.f32.mrf.mxu0
  %2285 = vmatprep.mubr.bf16.mxu0 0
  %2286 = vmatmul.mubr.bf16.gmra.mxu0 %v2136
  %v2287 = vpop.f32.mrf.mxu0
  %v2288 = vadd.f32 %v2067, %v2287
  %v2289 = vpop.f32.mrf.mxu0
  %v2290 = vpop.f32.mrf.mxu0
  %v2291 = vadd.f32 %v2067, %v2290
  %v2292 = vpop.f32.mrf.mxu0
  %2293 = vmatprep.mubr.bf16.mxu0 0
  %2294 = vmatmul.mubr.bf16.gmra.mxu0 %v2139
  %v2295 = vpop.f32.mrf.mxu0
  %v2296 = vadd.f32 %v2067, %v2295
  %v2297 = vpop.f32.mrf.mxu0
  %v2298 = vpop.f32.mrf.mxu0
  %v2299 = vadd.f32 %v2067, %v2298
  %v2300 = vpop.f32.mrf.mxu0
  %2301 = vdwg.mxu0
  %s2302 = smul.u32 0, 256
  %v2303 = vlaneseq
  %v2304 = vshrl.u32 %v2303, 7
  %v2305 = vadd.s32 %v2304, 8
  %v2306 = vadd.s32 %v2304, 16
  %v2307 = vadd.s32 %v2304, 24
  %v2308 = vadd.s32 %v2304, 32
  %v2309 = vadd.s32 %v2304, 40
  %v2310 = vadd.s32 %v2304, 48
  %v2311 = vadd.s32 %v2304, 56
  %v2312 = vadd.s32 %v2304, 64
  %v2313 = vadd.s32 %v2304, 72
  %v2314 = vadd.s32 %v2304, 80
  %v2315 = vadd.s32 %v2304, 88
  %v2316 = vadd.s32 %v2304, 96
  %v2317 = vadd.s32 %v2304, 104
  %v2318 = vadd.s32 %v2304, 112
  %v2319 = vadd.s32 %v2304, 120
  %v2320 = vadd.s32 %v2304, 128
  %v2321 = vadd.s32 %v2304, 136
  %v2322 = vadd.s32 %v2304, 144
  %v2323 = vadd.s32 %v2304, 152
  %v2324 = vadd.s32 %v2304, 160
  %v2325 = vadd.s32 %v2304, 168
  %v2326 = vadd.s32 %v2304, 176
  %v2327 = vadd.s32 %v2304, 184
  %v2328 = vadd.s32 %v2304, 192
  %v2329 = vadd.s32 %v2304, 200
  %v2330 = vadd.s32 %v2304, 208
  %v2331 = vadd.s32 %v2304, 216
  %v2332 = vadd.s32 %v2304, 224
  %v2333 = vadd.s32 %v2304, 232
  %v2334 = vadd.s32 %v2304, 240
  %v2335 = vadd.s32 %v2304, 248
  %v2336 = vstv %s2302
  %v2337 = vadd.s32 %v2336, %v2304
  %v2338 = vadd.s32 %v2336, %v2305
  %v2339 = vadd.s32 %v2336, %v2306
  %v2340 = vadd.s32 %v2336, %v2307
  %v2341 = vadd.s32 %v2336, %v2308
  %v2342 = vadd.s32 %v2336, %v2309
  %v2343 = vadd.s32 %v2336, %v2310
  %v2344 = vadd.s32 %v2336, %v2311
  %v2345 = vadd.s32 %v2336, %v2312
  %v2346 = vadd.s32 %v2336, %v2313
  %v2347 = vadd.s32 %v2336, %v2314
  %v2348 = vadd.s32 %v2336, %v2315
  %v2349 = vadd.s32 %v2336, %v2316
  %v2350 = vadd.s32 %v2336, %v2317
  %v2351 = vadd.s32 %v2336, %v2318
  %v2352 = vadd.s32 %v2336, %v2319
  %v2353 = vadd.s32 %v2336, %v2320
  %v2354 = vadd.s32 %v2336, %v2321
  %v2355 = vadd.s32 %v2336, %v2322
  %v2356 = vadd.s32 %v2336, %v2323
  %v2357 = vadd.s32 %v2336, %v2324
  %v2358 = vadd.s32 %v2336, %v2325
  %v2359 = vadd.s32 %v2336, %v2326
  %v2360 = vadd.s32 %v2336, %v2327
  %v2361 = vadd.s32 %v2336, %v2328
  %v2362 = vadd.s32 %v2336, %v2329
  %v2363 = vadd.s32 %v2336, %v2330
  %v2364 = vadd.s32 %v2336, %v2331
  %v2365 = vadd.s32 %v2336, %v2332
  %v2366 = vadd.s32 %v2336, %v2333
  %v2367 = vadd.s32 %v2336, %v2334
  %v2368 = vadd.s32 %v2336, %v2335
  %vm2369 = vcmp.lt.s32.totalorder %v2337, 256
  %vm2370 = vcmp.lt.s32.totalorder %v2338, 256
  %vm2371 = vcmp.lt.s32.totalorder %v2339, 256
  %vm2372 = vcmp.lt.s32.totalorder %v2340, 256
  %vm2373 = vcmp.lt.s32.totalorder %v2341, 256
  %vm2374 = vcmp.lt.s32.totalorder %v2342, 256
  %vm2375 = vcmp.lt.s32.totalorder %v2343, 256
  %vm2376 = vcmp.lt.s32.totalorder %v2344, 256
  %vm2377 = vcmp.lt.s32.totalorder %v2345, 256
  %vm2378 = vcmp.lt.s32.totalorder %v2346, 256
  %vm2379 = vcmp.lt.s32.totalorder %v2347, 256
  %vm2380 = vcmp.lt.s32.totalorder %v2348, 256
  %vm2381 = vcmp.lt.s32.totalorder %v2349, 256
  %vm2382 = vcmp.lt.s32.totalorder %v2350, 256
  %vm2383 = vcmp.lt.s32.totalorder %v2351, 256
  %vm2384 = vcmp.lt.s32.totalorder %v2352, 256
  %vm2385 = vcmp.lt.s32.totalorder %v2353, 256
  %vm2386 = vcmp.lt.s32.totalorder %v2354, 256
  %vm2387 = vcmp.lt.s32.totalorder %v2355, 256
  %vm2388 = vcmp.lt.s32.totalorder %v2356, 256
  %vm2389 = vcmp.lt.s32.totalorder %v2357, 256
  %vm2390 = vcmp.lt.s32.totalorder %v2358, 256
  %vm2391 = vcmp.lt.s32.totalorder %v2359, 256
  %vm2392 = vcmp.lt.s32.totalorder %v2360, 256
  %vm2393 = vcmp.lt.s32.totalorder %v2361, 256
  %vm2394 = vcmp.lt.s32.totalorder %v2362, 256
  %vm2395 = vcmp.lt.s32.totalorder %v2363, 256
  %vm2396 = vcmp.lt.s32.totalorder %v2364, 256
  %vm2397 = vcmp.lt.s32.totalorder %v2365, 256
  %vm2398 = vcmp.lt.s32.totalorder %v2366, 256
  %vm2399 = vcmp.lt.s32.totalorder %v2367, 256
  %vm2400 = vcmp.lt.s32.totalorder %v2368, 256
  %v2401 = vmul.f32 %v1151, %v2176
  %v2402 = vmul.f32 %v1156, %v2179
  %v2403 = vmul.f32 %v1161, %v2184
  %v2404 = vmul.f32 %v1166, %v2187
  %v2405 = vmul.f32 %v1171, %v2192
  %v2406 = vmul.f32 %v1176, %v2195
  %v2407 = vmul.f32 %v1181, %v2200
  %v2408 = vmul.f32 %v1186, %v2203
  %v2409 = vmul.f32 %v1191, %v2208
  %v2410 = vmul.f32 %v1196, %v2211
  %v2411 = vmul.f32 %v1201, %v2216
  %v2412 = vmul.f32 %v1206, %v2219
  %v2413 = vmul.f32 %v1211, %v2224
  %v2414 = vmul.f32 %v1216, %v2227
  %v2415 = vmul.f32 %v1221, %v2232
  %v2416 = vmul.f32 %v1226, %v2235
  %v2417 = vmul.f32 %v1231, %v2240
  %v2418 = vmul.f32 %v1236, %v2243
  %v2419 = vmul.f32 %v1241, %v2248
  %v2420 = vmul.f32 %v1246, %v2251
  %v2421 = vmul.f32 %v1251, %v2256
  %v2422 = vmul.f32 %v1256, %v2259
  %v2423 = vmul.f32 %v1261, %v2264
  %v2424 = vmul.f32 %v1266, %v2267
  %v2425 = vmul.f32 %v1271, %v2272
  %v2426 = vmul.f32 %v1276, %v2275
  %v2427 = vmul.f32 %v1281, %v2280
  %v2428 = vmul.f32 %v1286, %v2283
  %v2429 = vmul.f32 %v1291, %v2288
  %v2430 = vmul.f32 %v1296, %v2291
  %v2431 = vmul.f32 %v1301, %v2296
  %v2432 = vmul.f32 %v1306, %v2299
  %v2433 = vsel %vm2369, 1, 0
  %v2434 = vsel %vm2370, 1, 0
  %v2435 = vsel %vm2371, 1, 0
  %v2436 = vsel %vm2372, 1, 0
  %v2437 = vsel %vm2373, 1, 0
  %v2438 = vsel %vm2374, 1, 0
  %v2439 = vsel %vm2375, 1, 0
  %v2440 = vsel %vm2376, 1, 0
  %v2441 = vsel %vm2377, 1, 0
  %v2442 = vsel %vm2378, 1, 0
  %v2443 = vsel %vm2379, 1, 0
  %v2444 = vsel %vm2380, 1, 0
  %v2445 = vsel %vm2381, 1, 0
  %v2446 = vsel %vm2382, 1, 0
  %v2447 = vsel %vm2383, 1, 0
  %v2448 = vsel %vm2384, 1, 0
  %v2449 = vsel %vm2385, 1, 0
  %v2450 = vsel %vm2386, 1, 0
  %v2451 = vsel %vm2387, 1, 0
  %v2452 = vsel %vm2388, 1, 0
  %v2453 = vsel %vm2389, 1, 0
  %v2454 = vsel %vm2390, 1, 0
  %v2455 = vsel %vm2391, 1, 0
  %v2456 = vsel %vm2392, 1, 0
  %v2457 = vsel %vm2393, 1, 0
  %v2458 = vsel %vm2394, 1, 0
  %v2459 = vsel %vm2395, 1, 0
  %v2460 = vsel %vm2396, 1, 0
  %v2461 = vsel %vm2397, 1, 0
  %v2462 = vsel %vm2398, 1, 0
  %v2463 = vsel %vm2399, 1, 0
  %v2464 = vsel %vm2400, 1, 0
  %vm2465 = vcmp.eq.s32.totalorder %v2433, 1
  %vm2466 = vcmp.eq.s32.totalorder %v2434, 1
  %vm2467 = vcmp.eq.s32.totalorder %v2435, 1
  %vm2468 = vcmp.eq.s32.totalorder %v2436, 1
  %vm2469 = vcmp.eq.s32.totalorder %v2437, 1
  %vm2470 = vcmp.eq.s32.totalorder %v2438, 1
  %vm2471 = vcmp.eq.s32.totalorder %v2439, 1
  %vm2472 = vcmp.eq.s32.totalorder %v2440, 1
  %vm2473 = vcmp.eq.s32.totalorder %v2441, 1
  %vm2474 = vcmp.eq.s32.totalorder %v2442, 1
  %vm2475 = vcmp.eq.s32.totalorder %v2443, 1
  %vm2476 = vcmp.eq.s32.totalorder %v2444, 1
  %vm2477 = vcmp.eq.s32.totalorder %v2445, 1
  %vm2478 = vcmp.eq.s32.totalorder %v2446, 1
  %vm2479 = vcmp.eq.s32.totalorder %v2447, 1
  %vm2480 = vcmp.eq.s32.totalorder %v2448, 1
  %vm2481 = vcmp.eq.s32.totalorder %v2449, 1
  %vm2482 = vcmp.eq.s32.totalorder %v2450, 1
  %vm2483 = vcmp.eq.s32.totalorder %v2451, 1
  %vm2484 = vcmp.eq.s32.totalorder %v2452, 1
  %vm2485 = vcmp.eq.s32.totalorder %v2453, 1
  %vm2486 = vcmp.eq.s32.totalorder %v2454, 1
  %vm2487 = vcmp.eq.s32.totalorder %v2455, 1
  %vm2488 = vcmp.eq.s32.totalorder %v2456, 1
  %vm2489 = vcmp.eq.s32.totalorder %v2457, 1
  %vm2490 = vcmp.eq.s32.totalorder %v2458, 1
  %vm2491 = vcmp.eq.s32.totalorder %v2459, 1
  %vm2492 = vcmp.eq.s32.totalorder %v2460, 1
  %vm2493 = vcmp.eq.s32.totalorder %v2461, 1
  %vm2494 = vcmp.eq.s32.totalorder %v2462, 1
  %vm2495 = vcmp.eq.s32.totalorder %v2463, 1
  %vm2496 = vcmp.eq.s32.totalorder %v2464, 1
  %v2497 = vsel %vm2465, %v2401, 0.0
  %v2498 = vsel %vm2466, %v2402, 0.0
  %v2499 = vsel %vm2467, %v2403, 0.0
  %v2500 = vsel %vm2468, %v2404, 0.0
  %v2501 = vsel %vm2469, %v2405, 0.0
  %v2502 = vsel %vm2470, %v2406, 0.0
  %v2503 = vsel %vm2471, %v2407, 0.0
  %v2504 = vsel %vm2472, %v2408, 0.0
  %v2505 = vsel %vm2473, %v2409, 0.0
  %v2506 = vsel %vm2474, %v2410, 0.0
  %v2507 = vsel %vm2475, %v2411, 0.0
  %v2508 = vsel %vm2476, %v2412, 0.0
  %v2509 = vsel %vm2477, %v2413, 0.0
  %v2510 = vsel %vm2478, %v2414, 0.0
  %v2511 = vsel %vm2479, %v2415, 0.0
  %v2512 = vsel %vm2480, %v2416, 0.0
  %v2513 = vsel %vm2481, %v2417, 0.0
  %v2514 = vsel %vm2482, %v2418, 0.0
  %v2515 = vsel %vm2483, %v2419, 0.0
  %v2516 = vsel %vm2484, %v2420, 0.0
  %v2517 = vsel %vm2485, %v2421, 0.0
  %v2518 = vsel %vm2486, %v2422, 0.0
  %v2519 = vsel %vm2487, %v2423, 0.0
  %v2520 = vsel %vm2488, %v2424, 0.0
  %v2521 = vsel %vm2489, %v2425, 0.0
  %v2522 = vsel %vm2490, %v2426, 0.0
  %v2523 = vsel %vm2491, %v2427, 0.0
  %v2524 = vsel %vm2492, %v2428, 0.0
  %v2525 = vsel %vm2493, %v2429, 0.0
  %v2526 = vsel %vm2494, %v2430, 0.0
  %v2527 = vsel %vm2495, %v2431, 0.0
  %v2528 = vsel %vm2496, %v2432, 0.0
  %2529 = vst.msk [vmem:[%s13] sm:$0xff] %vm1636, %v2497
  %2530 = vst.msk [vmem:[%s13 + $0x8] sm:$0xff] %vm1636, %v2498
  %2531 = vst.msk [vmem:[%s13 + $0x10] sm:$0xff] %vm1636, %v2499
  %2532 = vst.msk [vmem:[%s13 + $0x18] sm:$0xff] %vm1636, %v2500
  %2533 = vst.msk [vmem:[%s13 + $0x20] sm:$0xff] %vm1636, %v2501
  %2534 = vst.msk [vmem:[%s13 + $0x28] sm:$0xff] %vm1636, %v2502
  %2535 = vst.msk [vmem:[%s13 + $0x30] sm:$0xff] %vm1636, %v2503
  %2536 = vst.msk [vmem:[%s13 + $0x38] sm:$0xff] %vm1636, %v2504
  %2537 = vst.msk [vmem:[%s13 + $0x40] sm:$0xff] %vm1636, %v2505
  %2538 = vst.msk [vmem:[%s13 + $0x48] sm:$0xff] %vm1636, %v2506
  %2539 = vst.msk [vmem:[%s13 + $0x50] sm:$0xff] %vm1636, %v2507
  %2540 = vst.msk [vmem:[%s13 + $0x58] sm:$0xff] %vm1636, %v2508
  %2541 = vst.msk [vmem:[%s13 + $0x60] sm:$0xff] %vm1636, %v2509
  %2542 = vst.msk [vmem:[%s13 + $0x68] sm:$0xff] %vm1636, %v2510
  %2543 = vst.msk [vmem:[%s13 + $0x70] sm:$0xff] %vm1636, %v2511
  %2544 = vst.msk [vmem:[%s13 + $0x78] sm:$0xff] %vm1636, %v2512
  %2545 = vst.msk [vmem:[%s13 + $0x80] sm:$0xff] %vm1636, %v2513
  %2546 = vst.msk [vmem:[%s13 + $0x88] sm:$0xff] %vm1636, %v2514
  %2547 = vst.msk [vmem:[%s13 + $0x90] sm:$0xff] %vm1636, %v2515
  %2548 = vst.msk [vmem:[%s13 + $0x98] sm:$0xff] %vm1636, %v2516
  %2549 = vst.msk [vmem:[%s13 + $0xa0] sm:$0xff] %vm1636, %v2517
  %2550 = vst.msk [vmem:[%s13 + $0xa8] sm:$0xff] %vm1636, %v2518
  %2551 = vst.msk [vmem:[%s13 + $0xb0] sm:$0xff] %vm1636, %v2519
  %2552 = vst.msk [vmem:[%s13 + $0xb8] sm:$0xff] %vm1636, %v2520
  %2553 = vst.msk [vmem:[%s13 + $0xc0] sm:$0xff] %vm1636, %v2521
  %2554 = vst.msk [vmem:[%s13 + $0xc8] sm:$0xff] %vm1636, %v2522
  %2555 = vst.msk [vmem:[%s13 + $0xd0] sm:$0xff] %vm1636, %v2523
  %2556 = vst.msk [vmem:[%s13 + $0xd8] sm:$0xff] %vm1636, %v2524
  %2557 = vst.msk [vmem:[%s13 + $0xe0] sm:$0xff] %vm1636, %v2525
  %2558 = vst.msk [vmem:[%s13 + $0xe8] sm:$0xff] %vm1636, %v2526
  %2559 = vst.msk [vmem:[%s13 + $0xf0] sm:$0xff] %vm1636, %v2527
  %2560 = vst.msk [vmem:[%s13 + $0xf8] sm:$0xff] %vm1636, %v2528
  %v2561 = vld [vmem:[#allocation3] sm:$0xff]
  %v2562 = vld [vmem:[#allocation3 + $0x8] sm:$0xff]
  %v2563 = vld [vmem:[#allocation3 + $0x10] sm:$0xff]
  %v2564 = vld [vmem:[#allocation3 + $0x18] sm:$0xff]
  %v2565 = vld [vmem:[#allocation3 + $0x20] sm:$0xff]
  %v2566 = vld [vmem:[#allocation3 + $0x28] sm:$0xff]
  %v2567 = vld [vmem:[#allocation3 + $0x30] sm:$0xff]
  %v2568 = vld [vmem:[#allocation3 + $0x38] sm:$0xff]
  %2569 = vxpose.xlu0.b32.start [1/16] %v442, 128
  %2570 = vxpose.xlu0.b32.cont [2/16] %v443, 128
  %2571 = vxpose.xlu0.b32.cont [3/16] %v444, 128
  %2572 = vxpose.xlu0.b32.cont [4/16] %v445, 128
  %2573 = vxpose.xlu0.b32.cont [5/16] %v446, 128
  %2574 = vxpose.xlu0.b32.cont [6/16] %v447, 128
  %2575 = vxpose.xlu0.b32.cont [7/16] %v448, 128
  %2576 = vxpose.xlu0.b32.cont [8/16] %v449, 128
  %2577 = vxpose.xlu0.b32.cont [9/16] %v450, 128
  %2578 = vxpose.xlu0.b32.cont [10/16] %v451, 128
  %2579 = vxpose.xlu0.b32.cont [11/16] %v452, 128
  %2580 = vxpose.xlu0.b32.cont [12/16] %v453, 128
  %2581 = vxpose.xlu0.b32.cont [13/16] %v454, 128
  %2582 = vxpose.xlu0.b32.cont [14/16] %v455, 128
  %2583 = vxpose.xlu0.b32.cont [15/16] %v456, 128
  %2584 = vxpose.xlu0.b32.end [16/16] %v457, 128
  %v2585 = vpop.trf.xlu0
  %v2586 = vpop.trf.xlu0
  %v2587 = vpop.trf.xlu0
  %v2588 = vpop.trf.xlu0
  %v2589 = vpop.trf.xlu0
  %v2590 = vpop.trf.xlu0
  %v2591 = vpop.trf.xlu0
  %v2592 = vpop.trf.xlu0
  %v2593 = vpop.trf.xlu0
  %v2594 = vpop.trf.xlu0
  %v2595 = vpop.trf.xlu0
  %v2596 = vpop.trf.xlu0
  %v2597 = vpop.trf.xlu0
  %v2598 = vpop.trf.xlu0
  %v2599 = vpop.trf.xlu0
  %v2600 = vpop.trf.xlu0
  %2601 = vxpose.xlu0.b32.start [1/16] %v458, 128
  %2602 = vxpose.xlu0.b32.cont [2/16] %v459, 128
  %2603 = vxpose.xlu0.b32.cont [3/16] %v460, 128
  %2604 = vxpose.xlu0.b32.cont [4/16] %v461, 128
  %2605 = vxpose.xlu0.b32.cont [5/16] %v462, 128
  %2606 = vxpose.xlu0.b32.cont [6/16] %v463, 128
  %2607 = vxpose.xlu0.b32.cont [7/16] %v464, 128
  %2608 = vxpose.xlu0.b32.cont [8/16] %v465, 128
  %2609 = vxpose.xlu0.b32.cont [9/16] %v466, 128
  %2610 = vxpose.xlu0.b32.cont [10/16] %v467, 128
  %2611 = vxpose.xlu0.b32.cont [11/16] %v468, 128
  %2612 = vxpose.xlu0.b32.cont [12/16] %v469, 128
  %2613 = vxpose.xlu0.b32.cont [13/16] %v470, 128
  %2614 = vxpose.xlu0.b32.cont [14/16] %v471, 128
  %2615 = vxpose.xlu0.b32.cont [15/16] %v472, 128
  %2616 = vxpose.xlu0.b32.end [16/16] %v473, 128
  %v2617 = vpop.trf.xlu0
  %v2618 = vpop.trf.xlu0
  %v2619 = vpop.trf.xlu0
  %v2620 = vpop.trf.xlu0
  %v2621 = vpop.trf.xlu0
  %v2622 = vpop.trf.xlu0
  %v2623 = vpop.trf.xlu0
  %v2624 = vpop.trf.xlu0
  %v2625 = vpop.trf.xlu0
  %v2626 = vpop.trf.xlu0
  %v2627 = vpop.trf.xlu0
  %v2628 = vpop.trf.xlu0
  %v2629 = vpop.trf.xlu0
  %v2630 = vpop.trf.xlu0
  %v2631 = vpop.trf.xlu0
  %v2632 = vpop.trf.xlu0
  %2633 = vmatprep.subr.mxu0 0.0
  %2634 = vmatpush1.msra.mxu0 %v2512
  %2635 = vmatprep.subr.mxu0 0.0
  %2636 = vmatpush1.msra.mxu0 %v2511
  %2637 = vmatprep.subr.mxu0 0.0
  %2638 = vmatpush1.msra.mxu0 %v2510
  %2639 = vmatprep.subr.mxu0 0.0
  %2640 = vmatpush1.msra.mxu0 %v2509
  %2641 = vmatprep.subr.mxu0 0.0
  %2642 = vmatpush1.msra.mxu0 %v2508
  %2643 = vmatprep.subr.mxu0 0.0
  %2644 = vmatpush1.msra.mxu0 %v2507
  %2645 = vmatprep.subr.mxu0 0.0
  %2646 = vmatpush1.msra.mxu0 %v2506
  %2647 = vmatprep.subr.mxu0 0.0
  %2648 = vmatpush1.msra.mxu0 %v2505
  %2649 = vmatprep.subr.mxu0 0.0
  %2650 = vmatpush1.msra.mxu0 %v2504
  %2651 = vmatprep.subr.mxu0 0.0
  %2652 = vmatpush1.msra.mxu0 %v2503
  %2653 = vmatprep.subr.mxu0 0.0
  %2654 = vmatpush1.msra.mxu0 %v2502
  %2655 = vmatprep.subr.mxu0 0.0
  %2656 = vmatpush1.msra.mxu0 %v2501
  %2657 = vmatprep.subr.mxu0 0.0
  %2658 = vmatpush1.msra.mxu0 %v2500
  %2659 = vmatprep.subr.mxu0 0.0
  %2660 = vmatpush1.msra.mxu0 %v2499
  %2661 = vmatprep.subr.mxu0 0.0
  %2662 = vmatpush1.msra.mxu0 %v2498
  %2663 = vmatprep.subr.mxu0 0.0
  %2664 = vmatpush1.msra.mxu0 %v2497
  %2665 = vmatprep.subr.mxu0 0.0
  %2666 = vmatpush2.msra.mxu0 %v2528
  %2667 = vmatprep.subr.mxu0 0.0
  %2668 = vmatpush2.msra.mxu0 %v2527
  %2669 = vmatprep.subr.mxu0 0.0
  %2670 = vmatpush2.msra.mxu0 %v2526
  %2671 = vmatprep.subr.mxu0 0.0
  %2672 = vmatpush2.msra.mxu0 %v2525
  %2673 = vmatprep.subr.mxu0 0.0
  %2674 = vmatpush2.msra.mxu0 %v2524
  %2675 = vmatprep.subr.mxu0 0.0
  %2676 = vmatpush2.msra.mxu0 %v2523
  %2677 = vmatprep.subr.mxu0 0.0
  %2678 = vmatpush2.msra.mxu0 %v2522
  %2679 = vmatprep.subr.mxu0 0.0
  %2680 = vmatpush2.msra.mxu0 %v2521
  %2681 = vmatprep.subr.mxu0 0.0
  %2682 = vmatpush2.msra.mxu0 %v2520
  %2683 = vmatprep.subr.mxu0 0.0
  %2684 = vmatpush2.msra.mxu0 %v2519
  %2685 = vmatprep.subr.mxu0 0.0
  %2686 = vmatpush2.msra.mxu0 %v2518
  %2687 = vmatprep.subr.mxu0 0.0
  %2688 = vmatpush2.msra.mxu0 %v2517
  %2689 = vmatprep.subr.mxu0 0.0
  %2690 = vmatpush2.msra.mxu0 %v2516
  %2691 = vmatprep.subr.mxu0 0.0
  %2692 = vmatpush2.msra.mxu0 %v2515
  %2693 = vmatprep.subr.mxu0 0.0
  %2694 = vmatpush2.msra.mxu0 %v2514
  %2695 = vmatprep.subr.mxu0 0.0
  %2696 = vmatpush2.msra.mxu0 %v2513
  %2697 = vmatprep.mubr.f32.mxu0 %v2617
  %2698 = vmatmul.mubr.f32.gmra.mxu0 %v2585
  %v2699 = vpop.f32.mrf.mxu0
  %v2700 = vadd.f32 0.0, %v2699
  %v2701 = vpop.f32.mrf.mxu0
  %2702 = vmatprep.mubr.f32.mxu0 %v2618
  %2703 = vmatmul.mubr.f32.gmra.mxu0 %v2586
  %v2704 = vpop.f32.mrf.mxu0
  %v2705 = vadd.f32 0.0, %v2704
  %v2706 = vpop.f32.mrf.mxu0
  %2707 = vmatprep.mubr.f32.mxu0 %v2619
  %2708 = vmatmul.mubr.f32.gmra.mxu0 %v2587
  %v2709 = vpop.f32.mrf.mxu0
  %v2710 = vadd.f32 0.0, %v2709
  %v2711 = vpop.f32.mrf.mxu0
  %2712 = vmatprep.mubr.f32.mxu0 %v2620
  %2713 = vmatmul.mubr.f32.gmra.mxu0 %v2588
  %v2714 = vpop.f32.mrf.mxu0
  %v2715 = vadd.f32 0.0, %v2714
  %v2716 = vpop.f32.mrf.mxu0
  %2717 = vmatprep.mubr.f32.mxu0 %v2621
  %2718 = vmatmul.mubr.f32.gmra.mxu0 %v2589
  %v2719 = vpop.f32.mrf.mxu0
  %v2720 = vadd.f32 0.0, %v2719
  %v2721 = vpop.f32.mrf.mxu0
  %2722 = vmatprep.mubr.f32.mxu0 %v2622
  %2723 = vmatmul.mubr.f32.gmra.mxu0 %v2590
  %v2724 = vpop.f32.mrf.mxu0
  %v2725 = vadd.f32 0.0, %v2724
  %v2726 = vpop.f32.mrf.mxu0
  %2727 = vmatprep.mubr.f32.mxu0 %v2623
  %2728 = vmatmul.mubr.f32.gmra.mxu0 %v2591
  %v2729 = vpop.f32.mrf.mxu0
  %v2730 = vadd.f32 0.0, %v2729
  %v2731 = vpop.f32.mrf.mxu0
  %2732 = vmatprep.mubr.f32.mxu0 %v2624
  %2733 = vmatmul.mubr.f32.gmra.mxu0 %v2592
  %v2734 = vpop.f32.mrf.mxu0
  %v2735 = vadd.f32 0.0, %v2734
  %v2736 = vpop.f32.mrf.mxu0
  %2737 = vdwg.mxu0
  %v2738 = vadd.f32 %v2561, %v2700
  %v2739 = vadd.f32 %v2562, %v2705
  %v2740 = vadd.f32 %v2563, %v2710
  %v2741 = vadd.f32 %v2564, %v2715
  %v2742 = vadd.f32 %v2565, %v2720
  %v2743 = vadd.f32 %v2566, %v2725
  %v2744 = vadd.f32 %v2567, %v2730
  %v2745 = vadd.f32 %v2568, %v2735
  %2746 = vst.msk [vmem:[#allocation3] sm:$0xff] %vm1636, %v2738
  %2747 = vst.msk [vmem:[#allocation3 + $0x8] sm:$0xff] %vm1636, %v2739
  %2748 = vst.msk [vmem:[#allocation3 + $0x10] sm:$0xff] %vm1636, %v2740
  %2749 = vst.msk [vmem:[#allocation3 + $0x18] sm:$0xff] %vm1636, %v2741
  %2750 = vst.msk [vmem:[#allocation3 + $0x20] sm:$0xff] %vm1636, %v2742
  %2751 = vst.msk [vmem:[#allocation3 + $0x28] sm:$0xff] %vm1636, %v2743
  %2752 = vst.msk [vmem:[#allocation3 + $0x30] sm:$0xff] %vm1636, %v2744
  %2753 = vst.msk [vmem:[#allocation3 + $0x38] sm:$0xff] %vm1636, %v2745
  // Predicated region
  $region54: #{mpblock_forward.1} parent=0 // pred_check
    %p2754 = pneg %p44
  $region55: #{mpblock_forward.1} parent=0 // pred_check_branch
    %2756 = sbr.rel (%p2754) target = $region57
  $region56: #{mpblock_forward.1} parent=0 // pred_region
    %v2757 = vld [vmem:[#allocation3] sm:$0xff]
    %v2758 = vld [vmem:[#allocation3 + $0x8] sm:$0xff]
    %v2759 = vld [vmem:[#allocation3 + $0x10] sm:$0xff]
    %v2760 = vld [vmem:[#allocation3 + $0x18] sm:$0xff]
    %v2761 = vld [vmem:[#allocation3 + $0x20] sm:$0xff]
    %v2762 = vld [vmem:[#allocation3 + $0x28] sm:$0xff]
    %v2763 = vld [vmem:[#allocation3 + $0x30] sm:$0xff]
    %v2764 = vld [vmem:[#allocation3 + $0x38] sm:$0xff]
    %v2765 = vadd.f32 %v208, %v2757
    %v2766 = vadd.f32 %v209, %v2758
    %v2767 = vadd.f32 %v210, %v2759
    %v2768 = vadd.f32 %v211, %v2760
    %v2769 = vadd.f32 %v212, %v2761
    %v2770 = vadd.f32 %v213, %v2762
    %v2771 = vadd.f32 %v214, %v2763
    %v2772 = vadd.f32 %v215, %v2764
    %v2773 = vsub.f32 0.0, %v2765
    %v2774 = vsub.f32 0.0, %v2766
    %v2775 = vsub.f32 0.0, %v2767
    %v2776 = vsub.f32 0.0, %v2768
    %v2777 = vsub.f32 0.0, %v2769
    %v2778 = vsub.f32 0.0, %v2770
    %v2779 = vsub.f32 0.0, %v2771
    %v2780 = vsub.f32 0.0, %v2772
    %v2781 = vmul.f32 %v2773, 1.442695
    %v2782 = vpow.pop %v2781
    %v2783 = vmul.f32 %v2774, 1.442695
    %v2784 = vpow.pop %v2783
    %v2785 = vmul.f32 %v2775, 1.442695
    %v2786 = vpow.pop %v2785
    %v2787 = vmul.f32 %v2776, 1.442695
    %v2788 = vpow.pop %v2787
    %v2789 = vmul.f32 %v2777, 1.442695
    %v2790 = vpow.pop %v2789
    %v2791 = vmul.f32 %v2778, 1.442695
    %v2792 = vpow.pop %v2791
    %v2793 = vmul.f32 %v2779, 1.442695
    %v2794 = vpow.pop %v2793
    %v2795 = vmul.f32 %v2780, 1.442695
    %v2796 = vpow.pop %v2795
    %v2797 = vadd.f32 %v2782, 1.0
    %v2798 = vadd.f32 %v2784, 1.0
    %v2799 = vadd.f32 %v2786, 1.0
    %v2800 = vadd.f32 %v2788, 1.0
    %v2801 = vadd.f32 %v2790, 1.0
    %v2802 = vadd.f32 %v2792, 1.0
    %v2803 = vadd.f32 %v2794, 1.0
    %v2804 = vadd.f32 %v2796, 1.0
    %v2805 = vrcp.pop %v2797
    %v2806 = vrcp.pop %v2798
    %v2807 = vrcp.pop %v2799
    %v2808 = vrcp.pop %v2800
    %v2809 = vrcp.pop %v2801
    %v2810 = vrcp.pop %v2802
    %v2811 = vrcp.pop %v2803
    %v2812 = vrcp.pop %v2804
    %v2813 = vmul.f32 %v2765, %v2805
    %v2814 = vmul.f32 %v2766, %v2806
    %v2815 = vmul.f32 %v2767, %v2807
    %v2816 = vmul.f32 %v2768, %v2808
    %v2817 = vmul.f32 %v2769, %v2809
    %v2818 = vmul.f32 %v2770, %v2810
    %v2819 = vmul.f32 %v2771, %v2811
    %v2820 = vmul.f32 %v2772, %v2812
    %v2821 = vpack.c.bf16 %v2814, %v2813
    %v2822 = vpack.c.bf16 %v2816, %v2815
    %v2823 = vpack.c.bf16 %v2818, %v2817
    %v2824 = vpack.c.bf16 %v2820, %v2819
    %v2825 = vld [vmem:[%s10] sm:$0xf]
    %v2826 = vld [vmem:[%s10 + $0x4] sm:$0xf]
    %v2827 = vld [vmem:[%s10 + $0x8] sm:$0xf]
    %v2828 = vld [vmem:[%s10 + $0xc] sm:$0xf]
    %v2829 = vld [vmem:[%s11] sm:$0x1]
    %v2831 = vlaneseq
    %v2832 = vshrl.u32 %v2831, 7
    %v2833 = vsub.s32 0, %v2832
    %v2834 = vrot.slane %v2829, %v2833
    %v2840 = vunpack.c.l.b16 %v2825
    %v2841 = vunpack.c.l.b16 %v2826
    %v2842 = vunpack.c.l.b16 %v2827
    %v2843 = vunpack.c.l.b16 %v2828
    %v2844 = vpack.c.b16 %v2841, %v2840
    %v2845 = vpack.c.b16 %v2843, %v2842
    %v2849 = vsel %vm1636, %v2821, 0
    %v2852 = vsel %vm1636, %v2822, 0
    %v2855 = vsel %vm1636, %v2823, 0
    %v2858 = vsel %vm1636, %v2824, 0
    %2860 = vmatprep.subr.bf16.mxu0 0
    %2861 = vmatpush1.bf16.msra.mxu0 0
    %2862 = vmatprep.subr.bf16.mxu0 0
    %2863 = vmatpush1.bf16.msra.mxu0 0
    %2864 = vmatprep.subr.bf16.mxu0 0
    %2865 = vmatpush1.bf16.msra.mxu0 0
    %2866 = vmatprep.subr.bf16.mxu0 0
    %2867 = vmatpush1.bf16.msra.mxu0 0
    %2868 = vmatprep.subr.bf16.mxu0 0
    %2869 = vmatpush1.bf16.msra.mxu0 0
    %2870 = vmatprep.subr.bf16.mxu0 0
    %2871 = vmatpush1.bf16.msra.mxu0 0
    %2872 = vmatprep.subr.bf16.mxu0 0
    %2873 = vmatpush1.bf16.msra.mxu0 %v2845
    %2874 = vmatprep.subr.bf16.mxu0 0
    %2875 = vmatpush1.bf16.msra.mxu0 %v2844
    %2876 = vmatprep.subr.bf16.mxu0 0
    %2877 = vmatpush2.bf16.msra.mxu0 0
    %2878 = vmatprep.subr.bf16.mxu0 0
    %2879 = vmatpush2.bf16.msra.mxu0 0
    %2880 = vmatprep.subr.bf16.mxu0 0
    %2881 = vmatpush2.bf16.msra.mxu0 0
    %2882 = vmatprep.subr.bf16.mxu0 0
    %2883 = vmatpush2.bf16.msra.mxu0 0
    %2884 = vmatprep.subr.bf16.mxu0 0
    %2885 = vmatpush2.bf16.msra.mxu0 0
    %2886 = vmatprep.subr.bf16.mxu0 0
    %2887 = vmatpush2.bf16.msra.mxu0 0
    %2888 = vmatprep.subr.bf16.mxu0 0
    %2889 = vmatpush2.bf16.msra.mxu0 0
    %2890 = vmatprep.subr.bf16.mxu0 0
    %2891 = vmatpush2.bf16.msra.mxu0 0
    %2892 = vmatprep.mubr.bf16.mxu0 0
    %2893 = vmatmul.mubr.bf16.gmra.mxu0 %v2849
    %v2894 = vpop.f32.mrf.mxu0
    %v2895 = vadd.f32 %v2834, %v2894
    %v2896 = vpop.f32.mrf.mxu0
    %v2897 = vpop.f32.mrf.mxu0
    %v2898 = vadd.f32 %v2834, %v2897
    %v2899 = vpop.f32.mrf.mxu0
    %2900 = vmatprep.mubr.bf16.mxu0 0
    %2901 = vmatmul.mubr.bf16.gmra.mxu0 %v2852
    %v2902 = vpop.f32.mrf.mxu0
    %v2903 = vadd.f32 %v2834, %v2902
    %v2904 = vpop.f32.mrf.mxu0
    %v2905 = vpop.f32.mrf.mxu0
    %v2906 = vadd.f32 %v2834, %v2905
    %v2907 = vpop.f32.mrf.mxu0
    %2908 = vmatprep.mubr.bf16.mxu0 0
    %2909 = vmatmul.mubr.bf16.gmra.mxu0 %v2855
    %v2910 = vpop.f32.mrf.mxu0
    %v2911 = vadd.f32 %v2834, %v2910
    %v2912 = vpop.f32.mrf.mxu0
    %v2913 = vpop.f32.mrf.mxu0
    %v2914 = vadd.f32 %v2834, %v2913
    %v2915 = vpop.f32.mrf.mxu0
    %2916 = vmatprep.mubr.bf16.mxu0 0
    %2917 = vmatmul.mubr.bf16.gmra.mxu0 %v2858
    %v2918 = vpop.f32.mrf.mxu0
    %v2919 = vadd.f32 %v2834, %v2918
    %v2920 = vpop.f32.mrf.mxu0
    %v2921 = vpop.f32.mrf.mxu0
    %v2922 = vadd.f32 %v2834, %v2921
    %v2923 = vpop.f32.mrf.mxu0
    %2924 = vdwg.mxu0
    %2925 = vst.msk [vmem:[%s12] sm:$0xff] %vm1636, %v2895
    %2926 = vst.msk [vmem:[%s12 + $0x8] sm:$0xff] %vm1636, %v2898
    %2927 = vst.msk [vmem:[%s12 + $0x10] sm:$0xff] %vm1636, %v2903
    %2928 = vst.msk [vmem:[%s12 + $0x18] sm:$0xff] %vm1636, %v2906
    %2929 = vst.msk [vmem:[%s12 + $0x20] sm:$0xff] %vm1636, %v2911
    %2930 = vst.msk [vmem:[%s12 + $0x28] sm:$0xff] %vm1636, %v2914
    %2931 = vst.msk [vmem:[%s12 + $0x30] sm:$0xff] %vm1636, %v2919
    %2932 = vst.msk [vmem:[%s12 + $0x38] sm:$0xff] %vm1636, %v2922
  $region57: #{mpblock_forward.1} parent=0 // pred_fallthru
    _
  // Predicated region
  $region58: #{mpblock_forward.1} parent=0 // pred_check
    _
  $region59: #{mpblock_forward.1} parent=0 // pred_check_branch
    %2934 = sbr.rel (0) target = $region61
  $region60: #{mpblock_forward.1} parent=0 // pred_region
    _
  $region61: #{mpblock_forward.1} parent=0 // pred_fallthru
    _
  // Predicated region
  $region62: #{mpblock_forward.1} parent=0 // pred_check
    _
  $region63: #{mpblock_forward.1} parent=0 // pred_check_branch
    %2936 = sbr.rel (0) target = $region65
  $region64: #{mpblock_forward.1} parent=0 // pred_region
    _
  $region65: #{mpblock_forward.1} parent=0 // pred_fallthru
    _
  // Predicated region
  $region66: #{mpblock_forward.1} parent=0 // pred_check
    _
  $region67: #{mpblock_forward.1} parent=0 // pred_check_branch
    %2938 = sbr.rel (0) target = $region69
  $region68: #{mpblock_forward.1} parent=0 // pred_region
    _
  $region69: #{mpblock_forward.1} parent=0 // pred_fallthru
    _
  // Predicated region
  $region70: #{mpblock_forward.1} parent=0 // pred_check
    _
  $region71: #{mpblock_forward.1} parent=0 // pred_check_branch
    %2940 = sbr.rel (0) target = $region73
  $region72: #{mpblock_forward.1} parent=0 // pred_region
    _
  $region73: #{mpblock_forward.1} parent=0 // pred_fallthru
    _

</llo_original>
